<compile_context>
chip_gen: v5e
topology: v5e:2x2
jax: 0.10.0
libtpu: 0.0.40
codegen_flags: <defaults>
</compile_context>

<pallas_src>
import jax
import jax.numpy as jnp
from jax.experimental import pallas as pl
from jax.experimental.pallas import tpu as pltpu


# ----------------------------------------------------------------------------- kernel
def encoder_kernel(x_ref, w1_ref, b1_ref, w2_ref, b2_ref,
                   w3g_ref, w3l_ref, b3_ref, w4_ref, b4_ref, out_ref):
    gb, n, _ = x_ref.shape
    m = gb * n
    c = out_ref.shape[-1]

    x = x_ref[...].reshape(m, 3)                                     # (M, 3) f32

    # first_conv[0..2]: Conv1d(3,128,1) + BN + ReLU (BN folded). K=3 -> VPU FMAs.
    w1 = w1_ref[...]
    h1 = (x[:, 0:1] * w1[0:1, :]
          + x[:, 1:2] * w1[1:2, :]
          + x[:, 2:3] * w1[2:3, :]
          + b1_ref[...])
    h1 = jnp.maximum(h1, 0.0)                                        # (M, 128) f32

    # first_conv[3]: Conv1d(128,256,1) — bf16 operands, f32 accumulation.
    f = jnp.dot(h1.astype(jnp.bfloat16), w2_ref[...],
                preferred_element_type=jnp.float32) + b2_ref[...]    # (M, 256) f32
    f_b = f.astype(jnp.bfloat16)                                     # reused twice

    # per-group global max over the N points (bf16 halves the reduction vreg traffic;
    # fg feeds the next matmul as a bf16 operand anyway).
    fg = jnp.max(f_b.reshape(gb, n, -1), axis=1)                     # (GB, 256) bf16

    # second_conv[0..2]: Conv1d(512,512,1) + BN + ReLU with the concat folded away:
    #   concat([fg_expand, f]) @ w3 + b3
    #     == broadcast_over_N(fg @ w3[:256] + b3) + f @ w3[256:]
    gpart = jnp.dot(fg, w3g_ref[...],
                    preferred_element_type=jnp.float32) + b3_ref[...]   # (GB, 512) f32
    h2 = jnp.dot(f_b, w3l_ref[...], preferred_element_type=jnp.float32)  # (M, 512) f32
    h2 = h2.reshape(gb, n, -1) + gpart[:, None, :]
    h2 = jnp.maximum(h2, 0.0).reshape(m, -1).astype(jnp.bfloat16)    # (M, 512) bf16

    # second_conv[3]: Conv1d(512, C, 1)
    of = jnp.dot(h2, w4_ref[...],
                 preferred_element_type=jnp.float32) + b4_ref[...]   # (M, C) f32

    # final per-group max over the N points -> dense (GB, C) output slab (f32 for accuracy)
    out_ref[...] = jnp.max(of.reshape(gb, n, c), axis=1)


# ---------------------------------------------------------------------------- wrapper
def encoder_forward(point_groups, params, encoder_channel, gb_tile=32):
    """point_groups: (B, G, N, 3) float32 -> (B, G, encoder_channel) float32."""
    B, G, N, _ = point_groups.shape
    BG = B * G
    C = encoder_channel
    C_pad = pl.cdiv(C, 128) * 128                     # lane-dense output / w4 columns

    (w1, b1, w2, b2, w3, b3, w4, b4) = params
    # Split w3 into the rows that multiply the [global || local] halves of the
    # (never-built) concat, pre-cast matmul weights to bf16 once.
    w3g = w3[:256, :].astype(jnp.bfloat16)
    w3l = w3[256:, :].astype(jnp.bfloat16)
    w2b = w2.astype(jnp.bfloat16)
    w4b = w4.astype(jnp.bfloat16)
    if C_pad != C:                                    # future-proofing; C=256 is a no-op
        w4b = jnp.pad(w4b, ((0, 0), (0, C_pad - C)))
        b4 = jnp.pad(b4, ((0, 0), (0, C_pad - C)))

    # ---- tile-size selection -------------------------------------------------------
    gb_tile = max(8, (int(gb_tile) // 8) * 8)
    gb_tile = min(gb_tile, max(8, pl.cdiv(BG, 8) * 8))          # never bigger than BG
    # keep the per-step activation footprint well inside the scoped-VMEM budget
    bytes_per_group = N * 4 * (2 * 128 + 3 * 256 + 3 * 512 + 2 * C_pad)
    act_budget = 40 * 1024 * 1024
    while gb_tile > 8 and gb_tile * bytes_per_group > act_budget:
        gb_tile -= 8
    # guarantee >=2 grid steps when BG allows, so both v7x TensorCores get work
    while gb_tile > 8 and pl.cdiv(BG, gb_tile) < 2:
        gb_tile -= 8
    BG_pad = pl.cdiv(BG, gb_tile) * gb_tile
    n_steps = BG_pad // gb_tile

    x = point_groups.reshape(BG, N, 3).astype(jnp.float32)
    if BG_pad != BG:
        x = jnp.pad(x, ((0, BG_pad - BG), (0, 0), (0, 0)))

    def const_spec(a):
        nd = a.ndim
        return pl.BlockSpec(a.shape, lambda i: (0,) * nd)

    # advisory cost estimate: matmul FLOPs + weight/input/output traffic
    flops = int(2 * BG_pad * N * (3 * 128 + 128 * 256 + 256 * 512 + 512 * C_pad)
                + 2 * BG_pad * 256 * 512)
    weight_bytes = sum(int(a.size * a.dtype.itemsize)
                       for a in (w1, b1, w2b, b2, w3g, w3l, b3, w4b, b4))
    bytes_accessed = int(x.size * 4 + BG_pad * C_pad * 4 + weight_bytes)
    cost = pl.CostEstimate(flops=flops, transcendentals=0, bytes_accessed=bytes_accessed)

    out = pl.pallas_call(
        encoder_kernel,
        out_shape=jax.ShapeDtypeStruct((BG_pad, C_pad), jnp.float32),
        grid=(n_steps,),
        in_specs=[
            pl.BlockSpec((gb_tile, N, 3), lambda i: (i, 0, 0)),       # per-step point tile
            const_spec(w1), const_spec(b1),
            const_spec(w2b), const_spec(b2),
            const_spec(w3g), const_spec(w3l), const_spec(b3),
            const_spec(w4b), const_spec(b4),
        ],
        out_specs=pl.BlockSpec((gb_tile, C_pad), lambda i: (i, 0)),
        compiler_params=pltpu.CompilerParams(
            dimension_semantics=("parallel",),        # shards groups across TCs
            vmem_limit_bytes=48 * 1024 * 1024),
        cost_estimate=cost,
    )(x, w1, b1, w2b, b2, w3g, w3l, b3, w4b, b4)

    return out[:BG, :C].reshape(B, G, C)


# ----------------------------------------------------------------------- params / refs
def make_params(key, encoder_channel, eps=1e-5):
    """Deterministic synthetic weights. Conv1d(k=1) weight (Cout,Cin,1) is stored
    pre-transposed as (Cin, Cout). BatchNorm (gamma=1, beta=0, mean=0, var=1,
    eval mode) is folded into the preceding conv."""
    ks = jax.random.split(key, 8)
    C = encoder_channel

    def conv_w(k, cin, cout, scale=0.05):
        return (scale * jax.random.normal(k, (cin, cout))).astype(jnp.float32)

    def conv_b(k, cout, scale=0.05):
        return (scale * jax.random.normal(k, (1, cout))).astype(jnp.float32)

    w1, b1 = conv_w(ks[0], 3, 128), conv_b(ks[1], 128)
    w2, b2 = conv_w(ks[2], 128, 256), conv_b(ks[3], 256)
    w3, b3 = conv_w(ks[4], 512, 512), conv_b(ks[5], 512)
    w4, b4 = conv_w(ks[6], 512, C), conv_b(ks[7], C)

    # Fold eval-mode BN1 (128 ch) into conv1, BN2 (512 ch) into conv3.
    bn_scale1 = jnp.ones((128,), jnp.float32) / jnp.sqrt(1.0 + eps)
    bn_scale2 = jnp.ones((512,), jnp.float32) / jnp.sqrt(1.0 + eps)
    w1 = w1 * bn_scale1[None, :]
    b1 = b1 * bn_scale1[None, :]
    w3 = w3 * bn_scale2[None, :]
    b3 = b3 * bn_scale2[None, :]

    return (w1, b1, w2, b2, w3, b3, w4, b4)


def encoder_reference_f32(point_groups, params, encoder_channel):
    """Plain-JAX f32 reference mirroring the PyTorch forward (eval-mode BN folded)."""
    B, G, N, _ = point_groups.shape
    x = point_groups.reshape(B * G, N, 3).astype(jnp.float32)
    (w1, b1, w2, b2, w3, b3, w4, b4) = params
    h1 = jnp.maximum(x @ w1 + b1, 0.0)
    f = h1 @ w2 + b2
    fg = jnp.max(f, axis=1, keepdims=True)
    feat = jnp.concatenate([jnp.broadcast_to(fg, f.shape), f], axis=-1)
    h2 = jnp.maximum(feat @ w3 + b3, 0.0)
    of = h2 @ w4 + b4
    return jnp.max(of, axis=1).reshape(B, G, encoder_channel)


def encoder_reference_matched(point_groups, params, encoder_channel):
    """Same forward pass with the kernel's bf16-operand / f32-accumulate discipline."""
    B, G, N, _ = point_groups.shape
    x = point_groups.reshape(B * G, N, 3).astype(jnp.float32)
    (w1, b1, w2, b2, w3, b3, w4, b4) = params
    bf = jnp.bfloat16
    h1 = jnp.maximum(x @ w1 + b1, 0.0)
    f = jnp.dot(h1.astype(bf), w2.astype(bf), preferred_element_type=jnp.float32) + b2
    f_b = f.astype(bf)
    fg = jnp.max(f_b, axis=1, keepdims=True)
    feat = jnp.concatenate([jnp.broadcast_to(fg, f_b.shape), f_b], axis=-1)
    h2 = jnp.maximum(
        jnp.dot(feat, w3.astype(bf), preferred_element_type=jnp.float32) + b3, 0.0)
    of = jnp.dot(h2.astype(bf), w4.astype(bf), preferred_element_type=jnp.float32) + b4
    return jnp.max(of, axis=1).reshape(B, G, encoder_channel)


# -------------------------------------------------------------------------------- main
if __name__ == "__main__":
    B, G, N = 2, 4, 32
    encoder_channel = 256

    key = jax.random.PRNGKey(0)
    k_x, k_w = jax.random.split(key)
    point_groups = jax.random.normal(k_x, (B, G, N, 3), dtype=jnp.float32)
    params = make_params(k_w, encoder_channel)

    out = encoder_forward(point_groups, params, encoder_channel)
    out = jax.block_until_ready(out)
    assert out.shape == (B, G, encoder_channel)

    # Tight check vs. a reference using the same bf16 cast discipline.
    ref_m = encoder_reference_matched(point_groups, params, encoder_channel)
    assert jnp.allclose(out, ref_m, atol=2e-3, rtol=2e-3), \
        float(jnp.max(jnp.abs(out - ref_m)))

    # Loose sanity check vs. the pure-f32 reference (bf16 matmul operands in kernel).
    ref_f = encoder_reference_f32(point_groups, params, encoder_channel)
    assert jnp.allclose(out, ref_f, atol=5e-2, rtol=5e-2), \
        float(jnp.max(jnp.abs(out - ref_f)))

    print("KERNEL_OK")
</pallas_src>

<mosaic_0001>
module attributes {stable_mosaic.version = 11 : i64} {
  func.func @encoder_kernel(%arg0: i32, %arg1: memref<8x32x3xf32, #tpu.memory_space<vmem>>, %arg2: memref<3x128xf32, #tpu.memory_space<vmem>>, %arg3: memref<1x128xf32, #tpu.memory_space<vmem>>, %arg4: memref<128x256xbf16, #tpu.memory_space<vmem>>, %arg5: memref<1x256xf32, #tpu.memory_space<vmem>>, %arg6: memref<256x512xbf16, #tpu.memory_space<vmem>>, %arg7: memref<256x512xbf16, #tpu.memory_space<vmem>>, %arg8: memref<1x512xf32, #tpu.memory_space<vmem>>, %arg9: memref<512x256xbf16, #tpu.memory_space<vmem>>, %arg10: memref<1x256xf32, #tpu.memory_space<vmem>>, %arg11: memref<8x256xf32, #tpu.memory_space<vmem>>) attributes {dimension_semantics = [#tpu.dimension_semantics<parallel>], iteration_bounds = array<i64: 1>, scalar_prefetch = 0 : i64, scratch_operands = 0 : i64, tpu.core_type = #tpu.core_type<tc>, window_params = [{transform_indices = @transform_0, window_bounds = array<i64: 8, 32, 3>}, {pipeline_mode = #tpu.pipeline_mode<synchronous>, transform_indices = @transform_1, window_bounds = array<i64: 3, 128>}, {pipeline_mode = #tpu.pipeline_mode<synchronous>, transform_indices = @transform_2, window_bounds = array<i64: 1, 128>}, {pipeline_mode = #tpu.pipeline_mode<synchronous>, transform_indices = @transform_3, window_bounds = array<i64: 128, 256>}, {pipeline_mode = #tpu.pipeline_mode<synchronous>, transform_indices = @transform_4, window_bounds = array<i64: 1, 256>}, {pipeline_mode = #tpu.pipeline_mode<synchronous>, transform_indices = @transform_5, window_bounds = array<i64: 256, 512>}, {pipeline_mode = #tpu.pipeline_mode<synchronous>, transform_indices = @transform_6, window_bounds = array<i64: 256, 512>}, {pipeline_mode = #tpu.pipeline_mode<synchronous>, transform_indices = @transform_7, window_bounds = array<i64: 1, 512>}, {pipeline_mode = #tpu.pipeline_mode<synchronous>, transform_indices = @transform_8, window_bounds = array<i64: 512, 256>}, {pipeline_mode = #tpu.pipeline_mode<synchronous>, transform_indices = @transform_9, window_bounds = array<i64: 1, 256>}, {transform_indices = @transform_10, window_bounds = array<i64: 8, 256>}]} {
    %c0 = arith.constant 0 : index
    %c0_0 = arith.constant 0 : index
    %c0_1 = arith.constant 0 : index
    %0 = vector.load %arg1[%c0, %c0_0, %c0_1] : memref<8x32x3xf32, #tpu.memory_space<vmem>>, vector<8x32x3xf32>
    %1 = vector.shape_cast %0 : vector<8x32x3xf32> to vector<256x3xf32>
    %c0_2 = arith.constant 0 : index
    %c0_3 = arith.constant 0 : index
    %2 = vector.load %arg2[%c0_2, %c0_3] : memref<3x128xf32, #tpu.memory_space<vmem>>, vector<3x128xf32>
    %3 = vector.extract_strided_slice %1 {offsets = [0, 0], sizes = [256, 1], strides = [1, 1]} : vector<256x3xf32> to vector<256x1xf32>
    %4 = vector.extract_strided_slice %2 {offsets = [0, 0], sizes = [1, 128], strides = [1, 1]} : vector<3x128xf32> to vector<1x128xf32>
    %5 = vector.broadcast %3 : vector<256x1xf32> to vector<256x128xf32>
    %6 = vector.broadcast %4 : vector<1x128xf32> to vector<256x128xf32>
    %7 = arith.mulf %5, %6 : vector<256x128xf32>
    %8 = vector.extract_strided_slice %1 {offsets = [0, 1], sizes = [256, 1], strides = [1, 1]} : vector<256x3xf32> to vector<256x1xf32>
    %9 = vector.extract_strided_slice %2 {offsets = [1, 0], sizes = [1, 128], strides = [1, 1]} : vector<3x128xf32> to vector<1x128xf32>
    %10 = vector.broadcast %8 : vector<256x1xf32> to vector<256x128xf32>
    %11 = vector.broadcast %9 : vector<1x128xf32> to vector<256x128xf32>
    %12 = arith.mulf %10, %11 : vector<256x128xf32>
    %13 = arith.addf %7, %12 : vector<256x128xf32>
    %14 = vector.extract_strided_slice %1 {offsets = [0, 2], sizes = [256, 1], strides = [1, 1]} : vector<256x3xf32> to vector<256x1xf32>
    %15 = vector.extract_strided_slice %2 {offsets = [2, 0], sizes = [1, 128], strides = [1, 1]} : vector<3x128xf32> to vector<1x128xf32>
    %16 = vector.broadcast %14 : vector<256x1xf32> to vector<256x128xf32>
    %17 = vector.broadcast %15 : vector<1x128xf32> to vector<256x128xf32>
    %18 = arith.mulf %16, %17 : vector<256x128xf32>
    %19 = arith.addf %13, %18 : vector<256x128xf32>
    %c0_4 = arith.constant 0 : index
    %c0_5 = arith.constant 0 : index
    %20 = vector.load %arg3[%c0_4, %c0_5] : memref<1x128xf32, #tpu.memory_space<vmem>>, vector<1x128xf32>
    %21 = vector.broadcast %20 : vector<1x128xf32> to vector<256x128xf32>
    %22 = arith.addf %19, %21 : vector<256x128xf32>
    %cst = arith.constant 0.000000e+00 : f32
    %23 = vector.broadcast %cst : f32 to vector<256x128xf32>
    %24 = arith.maximumf %22, %23 : vector<256x128xf32>
    %25 = arith.truncf %24 : vector<256x128xf32> to vector<256x128xbf16>
    %c0_6 = arith.constant 0 : index
    %c0_7 = arith.constant 0 : index
    %26 = vector.load %arg4[%c0_6, %c0_7] : memref<128x256xbf16, #tpu.memory_space<vmem>>, vector<128x256xbf16>
    %cst_8 = arith.constant dense<0.000000e+00> : vector<256x256xf32>
    %27 = tpu.matmul %25, %26, %cst_8 {dimension_numbers = #tpu.dot_dimension_numbers<[1], [0], [0], [1], [0, 0, 1, 1], [], []>} : vector<256x128xbf16>, vector<128x256xbf16>, vector<256x256xf32> -> vector<256x256xf32>
    %c0_9 = arith.constant 0 : index
    %c0_10 = arith.constant 0 : index
    %28 = vector.load %arg5[%c0_9, %c0_10] : memref<1x256xf32, #tpu.memory_space<vmem>>, vector<1x256xf32>
    %29 = vector.broadcast %28 : vector<1x256xf32> to vector<256x256xf32>
    %30 = arith.addf %27, %29 : vector<256x256xf32>
    %31 = arith.truncf %30 : vector<256x256xf32> to vector<256x256xbf16>
    %32 = vector.shape_cast %31 : vector<256x256xbf16> to vector<8x32x256xbf16>
    %cst_11 = arith.constant dense<0xFF80> : vector<8x256xbf16>
    %33 = vector.multi_reduction <maximumf>, %32, %cst_11 [1] : vector<8x32x256xbf16> to vector<8x256xbf16>
    %c0_12 = arith.constant 0 : index
    %c0_13 = arith.constant 0 : index
    %34 = vector.load %arg6[%c0_12, %c0_13] : memref<256x512xbf16, #tpu.memory_space<vmem>>, vector<256x512xbf16>
    %cst_14 = arith.constant dense<0.000000e+00> : vector<8x512xf32>
    %35 = tpu.matmul %33, %34, %cst_14 {dimension_numbers = #tpu.dot_dimension_numbers<[1], [0], [0], [1], [0, 0, 1, 1], [], []>} : vector<8x256xbf16>, vector<256x512xbf16>, vector<8x512xf32> -> vector<8x512xf32>
    %c0_15 = arith.constant 0 : index
    %c0_16 = arith.constant 0 : index
    %36 = vector.load %arg8[%c0_15, %c0_16] : memref<1x512xf32, #tpu.memory_space<vmem>>, vector<1x512xf32>
    %37 = vector.broadcast %36 : vector<1x512xf32> to vector<8x512xf32>
    %38 = arith.addf %35, %37 : vector<8x512xf32>
    %c0_17 = arith.constant 0 : index
    %c0_18 = arith.constant 0 : index
    %39 = vector.load %arg7[%c0_17, %c0_18] : memref<256x512xbf16, #tpu.memory_space<vmem>>, vector<256x512xbf16>
    %cst_19 = arith.constant dense<0.000000e+00> : vector<256x512xf32>
    %40 = tpu.matmul %31, %39, %cst_19 {dimension_numbers = #tpu.dot_dimension_numbers<[1], [0], [0], [1], [0, 0, 1, 1], [], []>} : vector<256x256xbf16>, vector<256x512xbf16>, vector<256x512xf32> -> vector<256x512xf32>
    %41 = vector.shape_cast %40 : vector<256x512xf32> to vector<8x32x512xf32>
    %42 = vector.shape_cast %38 : vector<8x512xf32> to vector<8x1x512xf32>
    %43 = vector.broadcast %42 : vector<8x1x512xf32> to vector<8x32x512xf32>
    %44 = arith.addf %41, %43 : vector<8x32x512xf32>
    %cst_20 = arith.constant 0.000000e+00 : f32
    %45 = vector.broadcast %cst_20 : f32 to vector<8x32x512xf32>
    %46 = arith.maximumf %44, %45 : vector<8x32x512xf32>
    %47 = vector.shape_cast %46 : vector<8x32x512xf32> to vector<256x512xf32>
    %48 = arith.truncf %47 : vector<256x512xf32> to vector<256x512xbf16>
    %c0_21 = arith.constant 0 : index
    %c0_22 = arith.constant 0 : index
    %49 = vector.load %arg9[%c0_21, %c0_22] : memref<512x256xbf16, #tpu.memory_space<vmem>>, vector<512x256xbf16>
    %cst_23 = arith.constant dense<0.000000e+00> : vector<256x256xf32>
    %50 = tpu.matmul %48, %49, %cst_23 {dimension_numbers = #tpu.dot_dimension_numbers<[1], [0], [0], [1], [0, 0, 1, 1], [], []>} : vector<256x512xbf16>, vector<512x256xbf16>, vector<256x256xf32> -> vector<256x256xf32>
    %c0_24 = arith.constant 0 : index
    %c0_25 = arith.constant 0 : index
    %51 = vector.load %arg10[%c0_24, %c0_25] : memref<1x256xf32, #tpu.memory_space<vmem>>, vector<1x256xf32>
    %52 = vector.broadcast %51 : vector<1x256xf32> to vector<256x256xf32>
    %53 = arith.addf %50, %52 : vector<256x256xf32>
    %54 = vector.shape_cast %53 : vector<256x256xf32> to vector<8x32x256xf32>
    %cst_26 = arith.constant dense<0xFF800000> : vector<8x256xf32>
    %55 = vector.multi_reduction <maximumf>, %54, %cst_26 [1] : vector<8x32x256xf32> to vector<8x256xf32>
    %c0_27 = arith.constant 0 : index
    %c0_28 = arith.constant 0 : index
    %56 = vector.load %arg11[%c0_27, %c0_28] : memref<8x256xf32, #tpu.memory_space<vmem>>, vector<8x256xf32>
    tpu.vector_store %arg11[%c0_27, %c0_28], %55 {strides = array<i32>} : memref<8x256xf32, #tpu.memory_space<vmem>>, vector<8x256xf32>,
    return
  }
  func.func @transform_0(%arg0: i32) -> (i32, i32, i32) {
    %c0_i32 = arith.constant 0 : i32
    %c0_i32_0 = arith.constant 0 : i32
    %c0_i32_1 = arith.constant 0 : i32
    return %arg0, %c0_i32, %c0_i32_0 : i32, i32, i32
  }
  func.func @transform_1(%arg0: i32) -> (i32, i32) {
    %c0_i32 = arith.constant 0 : i32
    %c0_i32_0 = arith.constant 0 : i32
    %c0_i32_1 = arith.constant 0 : i32
    return %c0_i32, %c0_i32_0 : i32, i32
  }
  func.func @transform_2(%arg0: i32) -> (i32, i32) {
    %c0_i32 = arith.constant 0 : i32
    %c0_i32_0 = arith.constant 0 : i32
    %c0_i32_1 = arith.constant 0 : i32
    return %c0_i32, %c0_i32_0 : i32, i32
  }
  func.func @transform_3(%arg0: i32) -> (i32, i32) {
    %c0_i32 = arith.constant 0 : i32
    %c0_i32_0 = arith.constant 0 : i32
    %c0_i32_1 = arith.constant 0 : i32
    return %c0_i32, %c0_i32_0 : i32, i32
  }
  func.func @transform_4(%arg0: i32) -> (i32, i32) {
    %c0_i32 = arith.constant 0 : i32
    %c0_i32_0 = arith.constant 0 : i32
    %c0_i32_1 = arith.constant 0 : i32
    return %c0_i32, %c0_i32_0 : i32, i32
  }
  func.func @transform_5(%arg0: i32) -> (i32, i32) {
    %c0_i32 = arith.constant 0 : i32
    %c0_i32_0 = arith.constant 0 : i32
    %c0_i32_1 = arith.constant 0 : i32
    return %c0_i32, %c0_i32_0 : i32, i32
  }
  func.func @transform_6(%arg0: i32) -> (i32, i32) {
    %c0_i32 = arith.constant 0 : i32
    %c0_i32_0 = arith.constant 0 : i32
    %c0_i32_1 = arith.constant 0 : i32
    return %c0_i32, %c0_i32_0 : i32, i32
  }
  func.func @transform_7(%arg0: i32) -> (i32, i32) {
    %c0_i32 = arith.constant 0 : i32
    %c0_i32_0 = arith.constant 0 : i32
    %c0_i32_1 = arith.constant 0 : i32
    return %c0_i32, %c0_i32_0 : i32, i32
  }
  func.func @transform_8(%arg0: i32) -> (i32, i32) {
    %c0_i32 = arith.constant 0 : i32
    %c0_i32_0 = arith.constant 0 : i32
    %c0_i32_1 = arith.constant 0 : i32
    return %c0_i32, %c0_i32_0 : i32, i32
  }
  func.func @transform_9(%arg0: i32) -> (i32, i32) {
    %c0_i32 = arith.constant 0 : i32
    %c0_i32_0 = arith.constant 0 : i32
    %c0_i32_1 = arith.constant 0 : i32
    return %c0_i32, %c0_i32_0 : i32, i32
  }
  func.func @transform_10(%arg0: i32) -> (i32, i32) {
    %c0_i32 = arith.constant 0 : i32
    %c0_i32_0 = arith.constant 0 : i32
    return %arg0, %c0_i32 : i32, i32
  }
}

</mosaic_0001>

<llo_original>
// kernel: tpu_custom_call.1
$region0: #{tpu_custom_call.1}
  #allocation0 [shape = 'u32[]', space=smem, size = 0x4, offset = 0x4, fixed_abs, tag = 'smem constant byte address 0x4 - core index']
  #allocation1 [shape = 'u32[72,128]{1,0:T(1,128)}', space=vmem, size = 0x9000, scoped, tag = 'internal scratch']
  %s0 = inlined_call_operand.vmem [shape: f32[8,32,3], index: 0, kind: input, shape index: {}]
  %s1 = inlined_call_operand.vmem [shape: f32[3,128], index: 1, kind: input, shape index: {}]
  %s2 = inlined_call_operand.vmem [shape: f32[1,128], index: 2, kind: input, shape index: {}]
  %s3 = inlined_call_operand.vmem [shape: bf16[128,256], index: 3, kind: input, shape index: {}]
  %s4 = inlined_call_operand.vmem [shape: f32[1,256], index: 4, kind: input, shape index: {}]
  %s5 = inlined_call_operand.hbm [shape: bf16[256,512], index: 5, kind: input, shape index: {}]
  %s6 = inlined_call_operand.hbm [shape: bf16[256,512], index: 6, kind: input, shape index: {}]
  %s7 = inlined_call_operand.vmem [shape: f32[1,512], index: 7, kind: input, shape index: {}]
  %s8 = inlined_call_operand.hbm [shape: bf16[512,256], index: 8, kind: input, shape index: {}]
  %s9 = inlined_call_operand.vmem [shape: f32[1,256], index: 9, kind: input, shape index: {}]
  %s10 = inlined_call_operand.hbm [shape: f32[8,256], index: 10, kind: output, shape index: {}]
  %s11 = sld [smem:[#allocation0]]
  $region62: #{tpu_custom_call.1} parent=0
    _
  %s13 = ssub.s32 1, %s11
  %s14 = scalar_select 0, %s13, %s11
  $region1: #{tpu_custom_call.1} parent=0
    #allocation2 [shape = 'u8[262144]{0}', space=vmem, size = 0x40000, scoped, tag = 'input window, operand 5, single buffered']
    #allocation3 [shape = 's32[1]{0}', space=sflag, size = 0x4, scoped, tag = 'scoped memory for tpu_custom_call.1']
    #allocation4 [shape = 's32[1]{0}', space=sflag, size = 0x4, scoped, tag = 'scoped memory for tpu_custom_call.1']
    #allocation5 [shape = 'u8[262144]{0}', space=vmem, size = 0x40000, scoped, tag = 'input window, operand 6, single buffered']
    #allocation6 [shape = 's32[1]{0}', space=sflag, size = 0x4, scoped, tag = 'scoped memory for tpu_custom_call.1']
    #allocation7 [shape = 'u8[262144]{0}', space=vmem, size = 0x40000, scoped, tag = 'input window, operand 8, single buffered']
    #allocation8 [shape = 'u8[8192]{0}', space=vmem, size = 0x2000, scoped, tag = 'output window, operand 0, single buffered']
    %15 = vsyncpa [#allocation3], 0
    %16 = vsyncpa [#allocation6], 0
    %17 = vsyncpa [#allocation4], 0
    // Predicated region
    $region2: #{tpu_custom_call.1} parent=1 // pred_check
      _
    $region3: #{tpu_custom_call.1} parent=1 // pred_check_branch
      %19 = sbr.rel (0) target = $region5
    $region4: #{tpu_custom_call.1} parent=1 // pred_region
      _
    $region5: #{tpu_custom_call.1} parent=1 // pred_fallthru
      _
    // Predicated region
    $region6: #{tpu_custom_call.1} parent=1 // pred_check
      _
    $region7: #{tpu_custom_call.1} parent=1 // pred_check_branch
      %21 = sbr.rel (0) target = $region9
    $region8: #{tpu_custom_call.1} parent=1 // pred_region
      _
    $region9: #{tpu_custom_call.1} parent=1 // pred_fallthru
      _
    // Predicated region
    $region10: #{tpu_custom_call.1} parent=1 // pred_check
      _
    $region11: #{tpu_custom_call.1} parent=1 // pred_check_branch
      %23 = sbr.rel (0) target = $region13
    $region12: #{tpu_custom_call.1} parent=1 // pred_region
      _
    $region13: #{tpu_custom_call.1} parent=1 // pred_fallthru
      _
    // Predicated region
    $region14: #{tpu_custom_call.1} parent=1 // pred_check
      _
    $region15: #{tpu_custom_call.1} parent=1 // pred_check_branch
      %25 = sbr.rel (0) target = $region17
    $region16: #{tpu_custom_call.1} parent=1 // pred_region
      _
    $region17: #{tpu_custom_call.1} parent=1 // pred_fallthru
      _
    // Predicated region
    $region18: #{tpu_custom_call.1} parent=1 // pred_check
      _
    $region19: #{tpu_custom_call.1} parent=1 // pred_check_branch
      %27 = sbr.rel (0) target = $region21
    $region20: #{tpu_custom_call.1} parent=1 // pred_region
      _
    $region21: #{tpu_custom_call.1} parent=1 // pred_fallthru
      _
    // Predicated region
    $region22: #{tpu_custom_call.1} parent=1 // pred_check
      _
    $region23: #{tpu_custom_call.1} parent=1 // pred_check_branch
      %29 = sbr.rel (0) target = $region25
    $region24: #{tpu_custom_call.1} parent=1 // pred_region
      %31 = vsyncadd [#allocation3], 0
      %s32 = sshll.u32 %s5, 4
      %s33 = int_to_ptr.hbm [resolvable:$true] %s32
      %s34 = sshll.u32 [#allocation2], 4
      %s35 = int_to_ptr.vmem [resolvable:$true] %s34
      %40 = dma.hbm_to_vmem [thread:$0]  %s33, 8192, %s35, [#allocation3], 256, 256, 16
    $region25: #{tpu_custom_call.1} parent=1 // pred_fallthru
      _
    // Predicated region
    $region26: #{tpu_custom_call.1} parent=1 // pred_check
      _
    $region27: #{tpu_custom_call.1} parent=1 // pred_check_branch
      %42 = sbr.rel (0) target = $region29
    $region28: #{tpu_custom_call.1} parent=1 // pred_region
      %44 = vsyncadd [#allocation6], 0
      %s45 = sshll.u32 %s6, 4
      %s46 = int_to_ptr.hbm [resolvable:$true] %s45
      %s47 = sshll.u32 [#allocation5], 4
      %s48 = int_to_ptr.vmem [resolvable:$true] %s47
      %53 = dma.hbm_to_vmem [thread:$0]  %s46, 8192, %s48, [#allocation6], 256, 256, 16
    $region29: #{tpu_custom_call.1} parent=1 // pred_fallthru
      _
    // Predicated region
    $region30: #{tpu_custom_call.1} parent=1 // pred_check
      _
    $region31: #{tpu_custom_call.1} parent=1 // pred_check_branch
      %55 = sbr.rel (0) target = $region33
    $region32: #{tpu_custom_call.1} parent=1 // pred_region
      _
    $region33: #{tpu_custom_call.1} parent=1 // pred_fallthru
      _
    // Predicated region
    $region34: #{tpu_custom_call.1} parent=1 // pred_check
      _
    $region35: #{tpu_custom_call.1} parent=1 // pred_check_branch
      %57 = sbr.rel (0) target = $region37
    $region36: #{tpu_custom_call.1} parent=1 // pred_region
      %59 = vsyncadd [#allocation6], 0
      %s60 = sshll.u32 %s8, 4
      %s61 = int_to_ptr.hbm [resolvable:$true] %s60
      %s62 = sshll.u32 [#allocation7], 4
      %s63 = int_to_ptr.vmem [resolvable:$true] %s62
      %68 = dma.hbm_to_vmem [thread:$0]  %s61, 8192, %s63, [#allocation6], 128, 128, 8
    $region37: #{tpu_custom_call.1} parent=1 // pred_fallthru
      _
    // Predicated region
    $region38: #{tpu_custom_call.1} parent=1 // pred_check
      _
    $region39: #{tpu_custom_call.1} parent=1 // pred_check_branch
      %70 = sbr.rel (0) target = $region41
    $region40: #{tpu_custom_call.1} parent=1 // pred_region
      _
    $region41: #{tpu_custom_call.1} parent=1 // pred_fallthru
      _
    // Predicated region
    $region42: #{tpu_custom_call.1} parent=1 // pred_check
      _
    $region43: #{tpu_custom_call.1} parent=1 // pred_check_branch
      %72 = sbr.rel (0) target = $region45
    $region44: #{tpu_custom_call.1} parent=1 // pred_region
      %74 = dma.done [#allocation3], 8192
    $region45: #{tpu_custom_call.1} parent=1 // pred_fallthru
      _
    // Predicated region
    $region46: #{tpu_custom_call.1} parent=1 // pred_check
      _
    $region47: #{tpu_custom_call.1} parent=1 // pred_check_branch
      %76 = sbr.rel (0) target = $region49
    $region48: #{tpu_custom_call.1} parent=1 // pred_region
      %78 = dma.done [#allocation6], 8192
    $region49: #{tpu_custom_call.1} parent=1 // pred_fallthru
      _
    // Predicated region
    $region50: #{tpu_custom_call.1} parent=1 // pred_check
      _
    $region51: #{tpu_custom_call.1} parent=1 // pred_check_branch
      %80 = sbr.rel (0) target = $region53
    $region52: #{tpu_custom_call.1} parent=1 // pred_region
      %82 = dma.done [#allocation6], 8192
    $region53: #{tpu_custom_call.1} parent=1 // pred_fallthru
      _
    %v83 = vld [vmem:[%s0] sm:$0xff]
    %v84 = vld [vmem:[%s0 + $0x8] sm:$0xff]
    %v85 = vld [vmem:[%s0 + $0x10] sm:$0xff]
    %v86 = vld [vmem:[%s0 + $0x18] sm:$0xff]
    %v87 = vld [vmem:[%s0 + $0x20] sm:$0xff]
    %v88 = vld [vmem:[%s0 + $0x28] sm:$0xff]
    %v89 = vld [vmem:[%s0 + $0x30] sm:$0xff]
    %v90 = vld [vmem:[%s0 + $0x38] sm:$0xff]
    %v91 = vld [vmem:[%s0 + $0x40] sm:$0xff]
    %v92 = vld [vmem:[%s0 + $0x48] sm:$0xff]
    %v93 = vld [vmem:[%s0 + $0x50] sm:$0xff]
    %v94 = vld [vmem:[%s0 + $0x58] sm:$0xff]
    %v95 = vld [vmem:[%s0 + $0x60] sm:$0xff]
    %v96 = vld [vmem:[%s0 + $0x68] sm:$0xff]
    %v97 = vld [vmem:[%s0 + $0x70] sm:$0xff]
    %v98 = vld [vmem:[%s0 + $0x78] sm:$0xff]
    %v99 = vld [vmem:[%s0 + $0x80] sm:$0xff]
    %v100 = vld [vmem:[%s0 + $0x88] sm:$0xff]
    %v101 = vld [vmem:[%s0 + $0x90] sm:$0xff]
    %v102 = vld [vmem:[%s0 + $0x98] sm:$0xff]
    %v103 = vld [vmem:[%s0 + $0xa0] sm:$0xff]
    %v104 = vld [vmem:[%s0 + $0xa8] sm:$0xff]
    %v105 = vld [vmem:[%s0 + $0xb0] sm:$0xff]
    %v106 = vld [vmem:[%s0 + $0xb8] sm:$0xff]
    %v107 = vld [vmem:[%s0 + $0xc0] sm:$0xff]
    %v108 = vld [vmem:[%s0 + $0xc8] sm:$0xff]
    %v109 = vld [vmem:[%s0 + $0xd0] sm:$0xff]
    %v110 = vld [vmem:[%s0 + $0xd8] sm:$0xff]
    %v111 = vld [vmem:[%s0 + $0xe0] sm:$0xff]
    %v112 = vld [vmem:[%s0 + $0xe8] sm:$0xff]
    %v113 = vld [vmem:[%s0 + $0xf0] sm:$0xff]
    %v114 = vld [vmem:[%s0 + $0xf8] sm:$0xff]
    %v115 = vld [vmem:[%s1] sm:$0x7]
    %117 = vset.pattern.permute.xlu0 0
    %118 = vperm.xlu0 %117, %v83
    %v119 = vpop.permute.xlu0 %118
    %122 = vset.pattern.permute.xlu0 0
    %123 = vperm.xlu0 %122, %v84
    %v124 = vpop.permute.xlu0 %123
    %127 = vset.pattern.permute.xlu0 0
    %128 = vperm.xlu0 %127, %v85
    %v129 = vpop.permute.xlu0 %128
    %132 = vset.pattern.permute.xlu0 0
    %133 = vperm.xlu0 %132, %v86
    %v134 = vpop.permute.xlu0 %133
    %137 = vset.pattern.permute.xlu0 0
    %138 = vperm.xlu0 %137, %v87
    %v139 = vpop.permute.xlu0 %138
    %142 = vset.pattern.permute.xlu0 0
    %143 = vperm.xlu0 %142, %v88
    %v144 = vpop.permute.xlu0 %143
    %147 = vset.pattern.permute.xlu0 0
    %148 = vperm.xlu0 %147, %v89
    %v149 = vpop.permute.xlu0 %148
    %152 = vset.pattern.permute.xlu0 0
    %153 = vperm.xlu0 %152, %v90
    %v154 = vpop.permute.xlu0 %153
    %157 = vset.pattern.permute.xlu0 0
    %158 = vperm.xlu0 %157, %v91
    %v159 = vpop.permute.xlu0 %158
    %162 = vset.pattern.permute.xlu0 0
    %163 = vperm.xlu0 %162, %v92
    %v164 = vpop.permute.xlu0 %163
    %167 = vset.pattern.permute.xlu0 0
    %168 = vperm.xlu0 %167, %v93
    %v169 = vpop.permute.xlu0 %168
    %172 = vset.pattern.permute.xlu0 0
    %173 = vperm.xlu0 %172, %v94
    %v174 = vpop.permute.xlu0 %173
    %177 = vset.pattern.permute.xlu0 0
    %178 = vperm.xlu0 %177, %v95
    %v179 = vpop.permute.xlu0 %178
    %182 = vset.pattern.permute.xlu0 0
    %183 = vperm.xlu0 %182, %v96
    %v184 = vpop.permute.xlu0 %183
    %187 = vset.pattern.permute.xlu0 0
    %188 = vperm.xlu0 %187, %v97
    %v189 = vpop.permute.xlu0 %188
    %192 = vset.pattern.permute.xlu0 0
    %193 = vperm.xlu0 %192, %v98
    %v194 = vpop.permute.xlu0 %193
    %197 = vset.pattern.permute.xlu0 0
    %198 = vperm.xlu0 %197, %v99
    %v199 = vpop.permute.xlu0 %198
    %202 = vset.pattern.permute.xlu0 0
    %203 = vperm.xlu0 %202, %v100
    %v204 = vpop.permute.xlu0 %203
    %207 = vset.pattern.permute.xlu0 0
    %208 = vperm.xlu0 %207, %v101
    %v209 = vpop.permute.xlu0 %208
    %212 = vset.pattern.permute.xlu0 0
    %213 = vperm.xlu0 %212, %v102
    %v214 = vpop.permute.xlu0 %213
    %217 = vset.pattern.permute.xlu0 0
    %218 = vperm.xlu0 %217, %v103
    %v219 = vpop.permute.xlu0 %218
    %222 = vset.pattern.permute.xlu0 0
    %223 = vperm.xlu0 %222, %v104
    %v224 = vpop.permute.xlu0 %223
    %227 = vset.pattern.permute.xlu0 0
    %228 = vperm.xlu0 %227, %v105
    %v229 = vpop.permute.xlu0 %228
    %232 = vset.pattern.permute.xlu0 0
    %233 = vperm.xlu0 %232, %v106
    %v234 = vpop.permute.xlu0 %233
    %237 = vset.pattern.permute.xlu0 0
    %238 = vperm.xlu0 %237, %v107
    %v239 = vpop.permute.xlu0 %238
    %242 = vset.pattern.permute.xlu0 0
    %243 = vperm.xlu0 %242, %v108
    %v244 = vpop.permute.xlu0 %243
    %247 = vset.pattern.permute.xlu0 0
    %248 = vperm.xlu0 %247, %v109
    %v249 = vpop.permute.xlu0 %248
    %252 = vset.pattern.permute.xlu0 0
    %253 = vperm.xlu0 %252, %v110
    %v254 = vpop.permute.xlu0 %253
    %257 = vset.pattern.permute.xlu0 0
    %258 = vperm.xlu0 %257, %v111
    %v259 = vpop.permute.xlu0 %258
    %262 = vset.pattern.permute.xlu0 0
    %263 = vperm.xlu0 %262, %v112
    %v264 = vpop.permute.xlu0 %263
    %267 = vset.pattern.permute.xlu0 0
    %268 = vperm.xlu0 %267, %v113
    %v269 = vpop.permute.xlu0 %268
    %272 = vset.pattern.permute.xlu0 0
    %273 = vperm.xlu0 %272, %v114
    %v274 = vpop.permute.xlu0 %273
    %v276 = vperm.slane %v115, 0
    %v277 = vmul.f32 %v119, %v276
    %v278 = vmul.f32 %v124, %v276
    %v279 = vmul.f32 %v129, %v276
    %v280 = vmul.f32 %v134, %v276
    %v281 = vmul.f32 %v139, %v276
    %v282 = vmul.f32 %v144, %v276
    %v283 = vmul.f32 %v149, %v276
    %v284 = vmul.f32 %v154, %v276
    %v285 = vmul.f32 %v159, %v276
    %v286 = vmul.f32 %v164, %v276
    %v287 = vmul.f32 %v169, %v276
    %v288 = vmul.f32 %v174, %v276
    %v289 = vmul.f32 %v179, %v276
    %v290 = vmul.f32 %v184, %v276
    %v291 = vmul.f32 %v189, %v276
    %v292 = vmul.f32 %v194, %v276
    %v293 = vmul.f32 %v199, %v276
    %v294 = vmul.f32 %v204, %v276
    %v295 = vmul.f32 %v209, %v276
    %v296 = vmul.f32 %v214, %v276
    %v297 = vmul.f32 %v219, %v276
    %v298 = vmul.f32 %v224, %v276
    %v299 = vmul.f32 %v229, %v276
    %v300 = vmul.f32 %v234, %v276
    %v301 = vmul.f32 %v239, %v276
    %v302 = vmul.f32 %v244, %v276
    %v303 = vmul.f32 %v249, %v276
    %v304 = vmul.f32 %v254, %v276
    %v305 = vmul.f32 %v259, %v276
    %v306 = vmul.f32 %v264, %v276
    %v307 = vmul.f32 %v269, %v276
    %v308 = vmul.f32 %v274, %v276
    %309 = vset.pattern.permute.xlu0 1
    %310 = vperm.xlu0 %309, %v83
    %v311 = vpop.permute.xlu0 %310
    %313 = vset.pattern.permute.xlu0 1
    %314 = vperm.xlu0 %313, %v84
    %v315 = vpop.permute.xlu0 %314
    %317 = vset.pattern.permute.xlu0 1
    %318 = vperm.xlu0 %317, %v85
    %v319 = vpop.permute.xlu0 %318
    %321 = vset.pattern.permute.xlu0 1
    %322 = vperm.xlu0 %321, %v86
    %v323 = vpop.permute.xlu0 %322
    %325 = vset.pattern.permute.xlu0 1
    %326 = vperm.xlu0 %325, %v87
    %v327 = vpop.permute.xlu0 %326
    %329 = vset.pattern.permute.xlu0 1
    %330 = vperm.xlu0 %329, %v88
    %v331 = vpop.permute.xlu0 %330
    %333 = vset.pattern.permute.xlu0 1
    %334 = vperm.xlu0 %333, %v89
    %v335 = vpop.permute.xlu0 %334
    %337 = vset.pattern.permute.xlu0 1
    %338 = vperm.xlu0 %337, %v90
    %v339 = vpop.permute.xlu0 %338
    %341 = vset.pattern.permute.xlu0 1
    %342 = vperm.xlu0 %341, %v91
    %v343 = vpop.permute.xlu0 %342
    %345 = vset.pattern.permute.xlu0 1
    %346 = vperm.xlu0 %345, %v92
    %v347 = vpop.permute.xlu0 %346
    %349 = vset.pattern.permute.xlu0 1
    %350 = vperm.xlu0 %349, %v93
    %v351 = vpop.permute.xlu0 %350
    %353 = vset.pattern.permute.xlu0 1
    %354 = vperm.xlu0 %353, %v94
    %v355 = vpop.permute.xlu0 %354
    %357 = vset.pattern.permute.xlu0 1
    %358 = vperm.xlu0 %357, %v95
    %v359 = vpop.permute.xlu0 %358
    %361 = vset.pattern.permute.xlu0 1
    %362 = vperm.xlu0 %361, %v96
    %v363 = vpop.permute.xlu0 %362
    %365 = vset.pattern.permute.xlu0 1
    %366 = vperm.xlu0 %365, %v97
    %v367 = vpop.permute.xlu0 %366
    %369 = vset.pattern.permute.xlu0 1
    %370 = vperm.xlu0 %369, %v98
    %v371 = vpop.permute.xlu0 %370
    %373 = vset.pattern.permute.xlu0 1
    %374 = vperm.xlu0 %373, %v99
    %v375 = vpop.permute.xlu0 %374
    %377 = vset.pattern.permute.xlu0 1
    %378 = vperm.xlu0 %377, %v100
    %v379 = vpop.permute.xlu0 %378
    %381 = vset.pattern.permute.xlu0 1
    %382 = vperm.xlu0 %381, %v101
    %v383 = vpop.permute.xlu0 %382
    %385 = vset.pattern.permute.xlu0 1
    %386 = vperm.xlu0 %385, %v102
    %v387 = vpop.permute.xlu0 %386
    %389 = vset.pattern.permute.xlu0 1
    %390 = vperm.xlu0 %389, %v103
    %v391 = vpop.permute.xlu0 %390
    %393 = vset.pattern.permute.xlu0 1
    %394 = vperm.xlu0 %393, %v104
    %v395 = vpop.permute.xlu0 %394
    %397 = vset.pattern.permute.xlu0 1
    %398 = vperm.xlu0 %397, %v105
    %v399 = vpop.permute.xlu0 %398
    %401 = vset.pattern.permute.xlu0 1
    %402 = vperm.xlu0 %401, %v106
    %v403 = vpop.permute.xlu0 %402
    %405 = vset.pattern.permute.xlu0 1
    %406 = vperm.xlu0 %405, %v107
    %v407 = vpop.permute.xlu0 %406
    %409 = vset.pattern.permute.xlu0 1
    %410 = vperm.xlu0 %409, %v108
    %v411 = vpop.permute.xlu0 %410
    %413 = vset.pattern.permute.xlu0 1
    %414 = vperm.xlu0 %413, %v109
    %v415 = vpop.permute.xlu0 %414
    %417 = vset.pattern.permute.xlu0 1
    %418 = vperm.xlu0 %417, %v110
    %v419 = vpop.permute.xlu0 %418
    %421 = vset.pattern.permute.xlu0 1
    %422 = vperm.xlu0 %421, %v111
    %v423 = vpop.permute.xlu0 %422
    %425 = vset.pattern.permute.xlu0 1
    %426 = vperm.xlu0 %425, %v112
    %v427 = vpop.permute.xlu0 %426
    %429 = vset.pattern.permute.xlu0 1
    %430 = vperm.xlu0 %429, %v113
    %v431 = vpop.permute.xlu0 %430
    %433 = vset.pattern.permute.xlu0 1
    %434 = vperm.xlu0 %433, %v114
    %v435 = vpop.permute.xlu0 %434
    %v437 = vperm.slane %v115, 1
    %v438 = vmul.f32 %v311, %v437
    %v439 = vmul.f32 %v315, %v437
    %v440 = vmul.f32 %v319, %v437
    %v441 = vmul.f32 %v323, %v437
    %v442 = vmul.f32 %v327, %v437
    %v443 = vmul.f32 %v331, %v437
    %v444 = vmul.f32 %v335, %v437
    %v445 = vmul.f32 %v339, %v437
    %v446 = vmul.f32 %v343, %v437
    %v447 = vmul.f32 %v347, %v437
    %v448 = vmul.f32 %v351, %v437
    %v449 = vmul.f32 %v355, %v437
    %v450 = vmul.f32 %v359, %v437
    %v451 = vmul.f32 %v363, %v437
    %v452 = vmul.f32 %v367, %v437
    %v453 = vmul.f32 %v371, %v437
    %v454 = vmul.f32 %v375, %v437
    %v455 = vmul.f32 %v379, %v437
    %v456 = vmul.f32 %v383, %v437
    %v457 = vmul.f32 %v387, %v437
    %v458 = vmul.f32 %v391, %v437
    %v459 = vmul.f32 %v395, %v437
    %v460 = vmul.f32 %v399, %v437
    %v461 = vmul.f32 %v403, %v437
    %v462 = vmul.f32 %v407, %v437
    %v463 = vmul.f32 %v411, %v437
    %v464 = vmul.f32 %v415, %v437
    %v465 = vmul.f32 %v419, %v437
    %v466 = vmul.f32 %v423, %v437
    %v467 = vmul.f32 %v427, %v437
    %v468 = vmul.f32 %v431, %v437
    %v469 = vmul.f32 %v435, %v437
    %v470 = vadd.f32 %v277, %v438
    %v471 = vadd.f32 %v278, %v439
    %v472 = vadd.f32 %v279, %v440
    %v473 = vadd.f32 %v280, %v441
    %v474 = vadd.f32 %v281, %v442
    %v475 = vadd.f32 %v282, %v443
    %v476 = vadd.f32 %v283, %v444
    %v477 = vadd.f32 %v284, %v445
    %v478 = vadd.f32 %v285, %v446
    %v479 = vadd.f32 %v286, %v447
    %v480 = vadd.f32 %v287, %v448
    %v481 = vadd.f32 %v288, %v449
    %v482 = vadd.f32 %v289, %v450
    %v483 = vadd.f32 %v290, %v451
    %v484 = vadd.f32 %v291, %v452
    %v485 = vadd.f32 %v292, %v453
    %v486 = vadd.f32 %v293, %v454
    %v487 = vadd.f32 %v294, %v455
    %v488 = vadd.f32 %v295, %v456
    %v489 = vadd.f32 %v296, %v457
    %v490 = vadd.f32 %v297, %v458
    %v491 = vadd.f32 %v298, %v459
    %v492 = vadd.f32 %v299, %v460
    %v493 = vadd.f32 %v300, %v461
    %v494 = vadd.f32 %v301, %v462
    %v495 = vadd.f32 %v302, %v463
    %v496 = vadd.f32 %v303, %v464
    %v497 = vadd.f32 %v304, %v465
    %v498 = vadd.f32 %v305, %v466
    %v499 = vadd.f32 %v306, %v467
    %v500 = vadd.f32 %v307, %v468
    %v501 = vadd.f32 %v308, %v469
    %502 = vset.pattern.permute.xlu0 2
    %503 = vperm.xlu0 %502, %v83
    %v504 = vpop.permute.xlu0 %503
    %506 = vset.pattern.permute.xlu0 2
    %507 = vperm.xlu0 %506, %v84
    %v508 = vpop.permute.xlu0 %507
    %510 = vset.pattern.permute.xlu0 2
    %511 = vperm.xlu0 %510, %v85
    %v512 = vpop.permute.xlu0 %511
    %514 = vset.pattern.permute.xlu0 2
    %515 = vperm.xlu0 %514, %v86
    %v516 = vpop.permute.xlu0 %515
    %518 = vset.pattern.permute.xlu0 2
    %519 = vperm.xlu0 %518, %v87
    %v520 = vpop.permute.xlu0 %519
    %522 = vset.pattern.permute.xlu0 2
    %523 = vperm.xlu0 %522, %v88
    %v524 = vpop.permute.xlu0 %523
    %526 = vset.pattern.permute.xlu0 2
    %527 = vperm.xlu0 %526, %v89
    %v528 = vpop.permute.xlu0 %527
    %530 = vset.pattern.permute.xlu0 2
    %531 = vperm.xlu0 %530, %v90
    %v532 = vpop.permute.xlu0 %531
    %534 = vset.pattern.permute.xlu0 2
    %535 = vperm.xlu0 %534, %v91
    %v536 = vpop.permute.xlu0 %535
    %538 = vset.pattern.permute.xlu0 2
    %539 = vperm.xlu0 %538, %v92
    %v540 = vpop.permute.xlu0 %539
    %542 = vset.pattern.permute.xlu0 2
    %543 = vperm.xlu0 %542, %v93
    %v544 = vpop.permute.xlu0 %543
    %546 = vset.pattern.permute.xlu0 2
    %547 = vperm.xlu0 %546, %v94
    %v548 = vpop.permute.xlu0 %547
    %550 = vset.pattern.permute.xlu0 2
    %551 = vperm.xlu0 %550, %v95
    %v552 = vpop.permute.xlu0 %551
    %554 = vset.pattern.permute.xlu0 2
    %555 = vperm.xlu0 %554, %v96
    %v556 = vpop.permute.xlu0 %555
    %558 = vset.pattern.permute.xlu0 2
    %559 = vperm.xlu0 %558, %v97
    %v560 = vpop.permute.xlu0 %559
    %562 = vset.pattern.permute.xlu0 2
    %563 = vperm.xlu0 %562, %v98
    %v564 = vpop.permute.xlu0 %563
    %566 = vset.pattern.permute.xlu0 2
    %567 = vperm.xlu0 %566, %v99
    %v568 = vpop.permute.xlu0 %567
    %570 = vset.pattern.permute.xlu0 2
    %571 = vperm.xlu0 %570, %v100
    %v572 = vpop.permute.xlu0 %571
    %574 = vset.pattern.permute.xlu0 2
    %575 = vperm.xlu0 %574, %v101
    %v576 = vpop.permute.xlu0 %575
    %578 = vset.pattern.permute.xlu0 2
    %579 = vperm.xlu0 %578, %v102
    %v580 = vpop.permute.xlu0 %579
    %582 = vset.pattern.permute.xlu0 2
    %583 = vperm.xlu0 %582, %v103
    %v584 = vpop.permute.xlu0 %583
    %586 = vset.pattern.permute.xlu0 2
    %587 = vperm.xlu0 %586, %v104
    %v588 = vpop.permute.xlu0 %587
    %590 = vset.pattern.permute.xlu0 2
    %591 = vperm.xlu0 %590, %v105
    %v592 = vpop.permute.xlu0 %591
    %594 = vset.pattern.permute.xlu0 2
    %595 = vperm.xlu0 %594, %v106
    %v596 = vpop.permute.xlu0 %595
    %598 = vset.pattern.permute.xlu0 2
    %599 = vperm.xlu0 %598, %v107
    %v600 = vpop.permute.xlu0 %599
    %602 = vset.pattern.permute.xlu0 2
    %603 = vperm.xlu0 %602, %v108
    %v604 = vpop.permute.xlu0 %603
    %606 = vset.pattern.permute.xlu0 2
    %607 = vperm.xlu0 %606, %v109
    %v608 = vpop.permute.xlu0 %607
    %610 = vset.pattern.permute.xlu0 2
    %611 = vperm.xlu0 %610, %v110
    %v612 = vpop.permute.xlu0 %611
    %614 = vset.pattern.permute.xlu0 2
    %615 = vperm.xlu0 %614, %v111
    %v616 = vpop.permute.xlu0 %615
    %618 = vset.pattern.permute.xlu0 2
    %619 = vperm.xlu0 %618, %v112
    %v620 = vpop.permute.xlu0 %619
    %622 = vset.pattern.permute.xlu0 2
    %623 = vperm.xlu0 %622, %v113
    %v624 = vpop.permute.xlu0 %623
    %626 = vset.pattern.permute.xlu0 2
    %627 = vperm.xlu0 %626, %v114
    %v628 = vpop.permute.xlu0 %627
    %v630 = vperm.slane %v115, 2
    %v631 = vmul.f32 %v504, %v630
    %v632 = vmul.f32 %v508, %v630
    %v633 = vmul.f32 %v512, %v630
    %v634 = vmul.f32 %v516, %v630
    %v635 = vmul.f32 %v520, %v630
    %v636 = vmul.f32 %v524, %v630
    %v637 = vmul.f32 %v528, %v630
    %v638 = vmul.f32 %v532, %v630
    %v639 = vmul.f32 %v536, %v630
    %v640 = vmul.f32 %v540, %v630
    %v641 = vmul.f32 %v544, %v630
    %v642 = vmul.f32 %v548, %v630
    %v643 = vmul.f32 %v552, %v630
    %v644 = vmul.f32 %v556, %v630
    %v645 = vmul.f32 %v560, %v630
    %v646 = vmul.f32 %v564, %v630
    %v647 = vmul.f32 %v568, %v630
    %v648 = vmul.f32 %v572, %v630
    %v649 = vmul.f32 %v576, %v630
    %v650 = vmul.f32 %v580, %v630
    %v651 = vmul.f32 %v584, %v630
    %v652 = vmul.f32 %v588, %v630
    %v653 = vmul.f32 %v592, %v630
    %v654 = vmul.f32 %v596, %v630
    %v655 = vmul.f32 %v600, %v630
    %v656 = vmul.f32 %v604, %v630
    %v657 = vmul.f32 %v608, %v630
    %v658 = vmul.f32 %v612, %v630
    %v659 = vmul.f32 %v616, %v630
    %v660 = vmul.f32 %v620, %v630
    %v661 = vmul.f32 %v624, %v630
    %v662 = vmul.f32 %v628, %v630
    %v663 = vadd.f32 %v470, %v631
    %v664 = vadd.f32 %v471, %v632
    %v665 = vadd.f32 %v472, %v633
    %v666 = vadd.f32 %v473, %v634
    %v667 = vadd.f32 %v474, %v635
    %v668 = vadd.f32 %v475, %v636
    %v669 = vadd.f32 %v476, %v637
    %v670 = vadd.f32 %v477, %v638
    %v671 = vadd.f32 %v478, %v639
    %v672 = vadd.f32 %v479, %v640
    %v673 = vadd.f32 %v480, %v641
    %v674 = vadd.f32 %v481, %v642
    %v675 = vadd.f32 %v482, %v643
    %v676 = vadd.f32 %v483, %v644
    %v677 = vadd.f32 %v484, %v645
    %v678 = vadd.f32 %v485, %v646
    %v679 = vadd.f32 %v486, %v647
    %v680 = vadd.f32 %v487, %v648
    %v681 = vadd.f32 %v488, %v649
    %v682 = vadd.f32 %v489, %v650
    %v683 = vadd.f32 %v490, %v651
    %v684 = vadd.f32 %v491, %v652
    %v685 = vadd.f32 %v492, %v653
    %v686 = vadd.f32 %v493, %v654
    %v687 = vadd.f32 %v494, %v655
    %v688 = vadd.f32 %v495, %v656
    %v689 = vadd.f32 %v496, %v657
    %v690 = vadd.f32 %v497, %v658
    %v691 = vadd.f32 %v498, %v659
    %v692 = vadd.f32 %v499, %v660
    %v693 = vadd.f32 %v500, %v661
    %v694 = vadd.f32 %v501, %v662
    %v695 = vld [vmem:[%s2] sm:$0x1]
    %v697 = vperm.slane %v695, 0
    %v699 = vadd.f32 %v663, %v697
    %v700 = vadd.f32 %v664, %v697
    %v701 = vadd.f32 %v665, %v697
    %v702 = vadd.f32 %v666, %v697
    %v703 = vadd.f32 %v667, %v697
    %v704 = vadd.f32 %v668, %v697
    %v705 = vadd.f32 %v669, %v697
    %v706 = vadd.f32 %v670, %v697
    %v707 = vadd.f32 %v671, %v697
    %v708 = vadd.f32 %v672, %v697
    %v709 = vadd.f32 %v673, %v697
    %v710 = vadd.f32 %v674, %v697
    %v711 = vadd.f32 %v675, %v697
    %v712 = vadd.f32 %v676, %v697
    %v713 = vadd.f32 %v677, %v697
    %v714 = vadd.f32 %v678, %v697
    %v715 = vadd.f32 %v679, %v697
    %v716 = vadd.f32 %v680, %v697
    %v717 = vadd.f32 %v681, %v697
    %v718 = vadd.f32 %v682, %v697
    %v719 = vadd.f32 %v683, %v697
    %v720 = vadd.f32 %v684, %v697
    %v721 = vadd.f32 %v685, %v697
    %v722 = vadd.f32 %v686, %v697
    %v723 = vadd.f32 %v687, %v697
    %v724 = vadd.f32 %v688, %v697
    %v725 = vadd.f32 %v689, %v697
    %v726 = vadd.f32 %v690, %v697
    %v727 = vadd.f32 %v691, %v697
    %v728 = vadd.f32 %v692, %v697
    %v729 = vadd.f32 %v693, %v697
    %v730 = vadd.f32 %v694, %v697
    %v731 = vmax.f32 %v699, 0.0
    %v732 = vmax.f32 %v700, 0.0
    %v733 = vmax.f32 %v701, 0.0
    %v734 = vmax.f32 %v702, 0.0
    %v735 = vmax.f32 %v703, 0.0
    %v736 = vmax.f32 %v704, 0.0
    %v737 = vmax.f32 %v705, 0.0
    %v738 = vmax.f32 %v706, 0.0
    %v739 = vmax.f32 %v707, 0.0
    %v740 = vmax.f32 %v708, 0.0
    %v741 = vmax.f32 %v709, 0.0
    %v742 = vmax.f32 %v710, 0.0
    %v743 = vmax.f32 %v711, 0.0
    %v744 = vmax.f32 %v712, 0.0
    %v745 = vmax.f32 %v713, 0.0
    %v746 = vmax.f32 %v714, 0.0
    %v747 = vmax.f32 %v715, 0.0
    %v748 = vmax.f32 %v716, 0.0
    %v749 = vmax.f32 %v717, 0.0
    %v750 = vmax.f32 %v718, 0.0
    %v751 = vmax.f32 %v719, 0.0
    %v752 = vmax.f32 %v720, 0.0
    %v753 = vmax.f32 %v721, 0.0
    %v754 = vmax.f32 %v722, 0.0
    %v755 = vmax.f32 %v723, 0.0
    %v756 = vmax.f32 %v724, 0.0
    %v757 = vmax.f32 %v725, 0.0
    %v758 = vmax.f32 %v726, 0.0
    %v759 = vmax.f32 %v727, 0.0
    %v760 = vmax.f32 %v728, 0.0
    %v761 = vmax.f32 %v729, 0.0
    %v762 = vmax.f32 %v730, 0.0
    %v763 = vpack.c.bf16 %v732, %v731
    %v764 = vpack.c.bf16 %v734, %v733
    %v765 = vpack.c.bf16 %v736, %v735
    %v766 = vpack.c.bf16 %v738, %v737
    %v767 = vpack.c.bf16 %v740, %v739
    %v768 = vpack.c.bf16 %v742, %v741
    %v769 = vpack.c.bf16 %v744, %v743
    %v770 = vpack.c.bf16 %v746, %v745
    %v771 = vpack.c.bf16 %v748, %v747
    %v772 = vpack.c.bf16 %v750, %v749
    %v773 = vpack.c.bf16 %v752, %v751
    %v774 = vpack.c.bf16 %v754, %v753
    %v775 = vpack.c.bf16 %v756, %v755
    %v776 = vpack.c.bf16 %v758, %v757
    %v777 = vpack.c.bf16 %v760, %v759
    %v778 = vpack.c.bf16 %v762, %v761
    %v779 = vld [vmem:[%s3] sm:$0xff]
    %v780 = vld [vmem:[%s3 + $0x8] sm:$0xff]
    %v781 = vld [vmem:[%s3 + $0x10] sm:$0xff]
    %v782 = vld [vmem:[%s3 + $0x18] sm:$0xff]
    %v783 = vld [vmem:[%s3 + $0x20] sm:$0xff]
    %v784 = vld [vmem:[%s3 + $0x28] sm:$0xff]
    %v785 = vld [vmem:[%s3 + $0x30] sm:$0xff]
    %v786 = vld [vmem:[%s3 + $0x38] sm:$0xff]
    %v787 = vld [vmem:[%s3 + $0x40] sm:$0xff]
    %v788 = vld [vmem:[%s3 + $0x48] sm:$0xff]
    %v789 = vld [vmem:[%s3 + $0x50] sm:$0xff]
    %v790 = vld [vmem:[%s3 + $0x58] sm:$0xff]
    %v791 = vld [vmem:[%s3 + $0x60] sm:$0xff]
    %v792 = vld [vmem:[%s3 + $0x68] sm:$0xff]
    %v793 = vld [vmem:[%s3 + $0x70] sm:$0xff]
    %v794 = vld [vmem:[%s3 + $0x78] sm:$0xff]
    %v795 = vld [vmem:[%s4] sm:$0x3]
    %v797 = vperm.slane %v795, 0
    %v798 = vperm.slane %v795, 1
    %v817 = vunpack.c.l.b16 %v779
    %v818 = vunpack.c.h.b16 %v779
    %v819 = vunpack.c.l.b16 %v780
    %v820 = vunpack.c.h.b16 %v780
    %v821 = vunpack.c.l.b16 %v781
    %v822 = vunpack.c.h.b16 %v781
    %v823 = vunpack.c.l.b16 %v782
    %v824 = vunpack.c.h.b16 %v782
    %v825 = vunpack.c.l.b16 %v783
    %v826 = vunpack.c.h.b16 %v783
    %v827 = vunpack.c.l.b16 %v784
    %v828 = vunpack.c.h.b16 %v784
    %v829 = vunpack.c.l.b16 %v785
    %v830 = vunpack.c.h.b16 %v785
    %v831 = vunpack.c.l.b16 %v786
    %v832 = vunpack.c.h.b16 %v786
    %v833 = vunpack.c.l.b16 %v787
    %v834 = vunpack.c.h.b16 %v787
    %v835 = vunpack.c.l.b16 %v788
    %v836 = vunpack.c.h.b16 %v788
    %v837 = vunpack.c.l.b16 %v789
    %v838 = vunpack.c.h.b16 %v789
    %v839 = vunpack.c.l.b16 %v790
    %v840 = vunpack.c.h.b16 %v790
    %v841 = vunpack.c.l.b16 %v791
    %v842 = vunpack.c.h.b16 %v791
    %v843 = vunpack.c.l.b16 %v792
    %v844 = vunpack.c.h.b16 %v792
    %v845 = vunpack.c.l.b16 %v793
    %v846 = vunpack.c.h.b16 %v793
    %v847 = vunpack.c.l.b16 %v794
    %v848 = vunpack.c.h.b16 %v794
    %v849 = vpack.c.b16 %v819, %v817
    %v850 = vpack.c.b16 %v820, %v818
    %v851 = vpack.c.b16 %v823, %v821
    %v852 = vpack.c.b16 %v824, %v822
    %v853 = vpack.c.b16 %v827, %v825
    %v854 = vpack.c.b16 %v828, %v826
    %v855 = vpack.c.b16 %v831, %v829
    %v856 = vpack.c.b16 %v832, %v830
    %v857 = vpack.c.b16 %v835, %v833
    %v858 = vpack.c.b16 %v836, %v834
    %v859 = vpack.c.b16 %v839, %v837
    %v860 = vpack.c.b16 %v840, %v838
    %v861 = vpack.c.b16 %v843, %v841
    %v862 = vpack.c.b16 %v844, %v842
    %v863 = vpack.c.b16 %v847, %v845
    %v864 = vpack.c.b16 %v848, %v846
    %881 = vmatpush.bf16.msra.mxu0 %v863
    %882 = vmatpush.bf16.msra.mxu0 %v861
    %883 = vmatpush.bf16.msra.mxu0 %v859
    %884 = vmatpush.bf16.msra.mxu0 %v857
    %885 = vmatpush.bf16.msra.mxu0 %v855
    %886 = vmatpush.bf16.msra.mxu0 %v853
    %887 = vmatpush.bf16.msra.mxu0 %v851
    %888 = vmatpush.bf16.msra.mxu0 %v849
    %889 = vmatmul.bf16.gmra.mxu0 %v763
    %v890 = vpop.f32.mrf.mxu0
    %v891 = vadd.f32 %v797, %v890
    %v892 = vpop.f32.mrf.mxu0
    %v893 = vadd.f32 %v797, %v892
    %894 = vmatmul.bf16.gmra.mxu0 %v764
    %v895 = vpop.f32.mrf.mxu0
    %v896 = vadd.f32 %v797, %v895
    %v897 = vpop.f32.mrf.mxu0
    %v898 = vadd.f32 %v797, %v897
    %899 = vmatmul.bf16.gmra.mxu0 %v765
    %v900 = vpop.f32.mrf.mxu0
    %v901 = vadd.f32 %v797, %v900
    %v902 = vpop.f32.mrf.mxu0
    %v903 = vadd.f32 %v797, %v902
    %904 = vmatmul.bf16.gmra.mxu0 %v766
    %v905 = vpop.f32.mrf.mxu0
    %v906 = vadd.f32 %v797, %v905
    %v907 = vpop.f32.mrf.mxu0
    %v908 = vadd.f32 %v797, %v907
    %909 = vmatmul.bf16.gmra.mxu0 %v767
    %v910 = vpop.f32.mrf.mxu0
    %v911 = vadd.f32 %v797, %v910
    %v912 = vpop.f32.mrf.mxu0
    %v913 = vadd.f32 %v797, %v912
    %914 = vmatmul.bf16.gmra.mxu0 %v768
    %v915 = vpop.f32.mrf.mxu0
    %v916 = vadd.f32 %v797, %v915
    %v917 = vpop.f32.mrf.mxu0
    %v918 = vadd.f32 %v797, %v917
    %919 = vmatmul.bf16.gmra.mxu0 %v769
    %v920 = vpop.f32.mrf.mxu0
    %v921 = vadd.f32 %v797, %v920
    %v922 = vpop.f32.mrf.mxu0
    %v923 = vadd.f32 %v797, %v922
    %924 = vmatmul.bf16.gmra.mxu0 %v770
    %v925 = vpop.f32.mrf.mxu0
    %v926 = vadd.f32 %v797, %v925
    %v927 = vpop.f32.mrf.mxu0
    %v928 = vadd.f32 %v797, %v927
    %929 = vmatmul.bf16.gmra.mxu0 %v771
    %v930 = vpop.f32.mrf.mxu0
    %v931 = vadd.f32 %v797, %v930
    %v932 = vpop.f32.mrf.mxu0
    %v933 = vadd.f32 %v797, %v932
    %934 = vmatmul.bf16.gmra.mxu0 %v772
    %v935 = vpop.f32.mrf.mxu0
    %v936 = vadd.f32 %v797, %v935
    %v937 = vpop.f32.mrf.mxu0
    %v938 = vadd.f32 %v797, %v937
    %939 = vmatmul.bf16.gmra.mxu0 %v773
    %v940 = vpop.f32.mrf.mxu0
    %v941 = vadd.f32 %v797, %v940
    %v942 = vpop.f32.mrf.mxu0
    %v943 = vadd.f32 %v797, %v942
    %944 = vmatmul.bf16.gmra.mxu0 %v774
    %v945 = vpop.f32.mrf.mxu0
    %v946 = vadd.f32 %v797, %v945
    %v947 = vpop.f32.mrf.mxu0
    %v948 = vadd.f32 %v797, %v947
    %949 = vmatmul.bf16.gmra.mxu0 %v775
    %v950 = vpop.f32.mrf.mxu0
    %v951 = vadd.f32 %v797, %v950
    %v952 = vpop.f32.mrf.mxu0
    %v953 = vadd.f32 %v797, %v952
    %954 = vmatmul.bf16.gmra.mxu0 %v776
    %v955 = vpop.f32.mrf.mxu0
    %v956 = vadd.f32 %v797, %v955
    %v957 = vpop.f32.mrf.mxu0
    %v958 = vadd.f32 %v797, %v957
    %959 = vmatmul.bf16.gmra.mxu0 %v777
    %v960 = vpop.f32.mrf.mxu0
    %v961 = vadd.f32 %v797, %v960
    %v962 = vpop.f32.mrf.mxu0
    %v963 = vadd.f32 %v797, %v962
    %964 = vmatmul.bf16.gmra.mxu0 %v778
    %v965 = vpop.f32.mrf.mxu0
    %v966 = vadd.f32 %v797, %v965
    %v967 = vpop.f32.mrf.mxu0
    %v968 = vadd.f32 %v797, %v967
    %969 = vdwg.mxu0
    %970 = vmatpush.bf16.msra.mxu0 %v864
    %971 = vmatpush.bf16.msra.mxu0 %v862
    %972 = vmatpush.bf16.msra.mxu0 %v860
    %973 = vmatpush.bf16.msra.mxu0 %v858
    %974 = vmatpush.bf16.msra.mxu0 %v856
    %975 = vmatpush.bf16.msra.mxu0 %v854
    %976 = vmatpush.bf16.msra.mxu0 %v852
    %977 = vmatpush.bf16.msra.mxu0 %v850
    %978 = vmatmul.bf16.gmra.mxu0 %v763
    %v979 = vpop.f32.mrf.mxu0
    %v980 = vadd.f32 %v798, %v979
    %v981 = vpop.f32.mrf.mxu0
    %v982 = vadd.f32 %v798, %v981
    %983 = vmatmul.bf16.gmra.mxu0 %v764
    %v984 = vpop.f32.mrf.mxu0
    %v985 = vadd.f32 %v798, %v984
    %v986 = vpop.f32.mrf.mxu0
    %v987 = vadd.f32 %v798, %v986
    %988 = vmatmul.bf16.gmra.mxu0 %v765
    %v989 = vpop.f32.mrf.mxu0
    %v990 = vadd.f32 %v798, %v989
    %v991 = vpop.f32.mrf.mxu0
    %v992 = vadd.f32 %v798, %v991
    %993 = vmatmul.bf16.gmra.mxu0 %v766
    %v994 = vpop.f32.mrf.mxu0
    %v995 = vadd.f32 %v798, %v994
    %v996 = vpop.f32.mrf.mxu0
    %v997 = vadd.f32 %v798, %v996
    %998 = vmatmul.bf16.gmra.mxu0 %v767
    %v999 = vpop.f32.mrf.mxu0
    %v1000 = vadd.f32 %v798, %v999
    %v1001 = vpop.f32.mrf.mxu0
    %v1002 = vadd.f32 %v798, %v1001
    %1003 = vmatmul.bf16.gmra.mxu0 %v768
    %v1004 = vpop.f32.mrf.mxu0
    %v1005 = vadd.f32 %v798, %v1004
    %v1006 = vpop.f32.mrf.mxu0
    %v1007 = vadd.f32 %v798, %v1006
    %1008 = vmatmul.bf16.gmra.mxu0 %v769
    %v1009 = vpop.f32.mrf.mxu0
    %v1010 = vadd.f32 %v798, %v1009
    %v1011 = vpop.f32.mrf.mxu0
    %v1012 = vadd.f32 %v798, %v1011
    %1013 = vmatmul.bf16.gmra.mxu0 %v770
    %v1014 = vpop.f32.mrf.mxu0
    %v1015 = vadd.f32 %v798, %v1014
    %v1016 = vpop.f32.mrf.mxu0
    %v1017 = vadd.f32 %v798, %v1016
    %1018 = vmatmul.bf16.gmra.mxu0 %v771
    %v1019 = vpop.f32.mrf.mxu0
    %v1020 = vadd.f32 %v798, %v1019
    %v1021 = vpop.f32.mrf.mxu0
    %v1022 = vadd.f32 %v798, %v1021
    %1023 = vmatmul.bf16.gmra.mxu0 %v772
    %v1024 = vpop.f32.mrf.mxu0
    %v1025 = vadd.f32 %v798, %v1024
    %v1026 = vpop.f32.mrf.mxu0
    %v1027 = vadd.f32 %v798, %v1026
    %1028 = vmatmul.bf16.gmra.mxu0 %v773
    %v1029 = vpop.f32.mrf.mxu0
    %v1030 = vadd.f32 %v798, %v1029
    %v1031 = vpop.f32.mrf.mxu0
    %v1032 = vadd.f32 %v798, %v1031
    %1033 = vmatmul.bf16.gmra.mxu0 %v774
    %v1034 = vpop.f32.mrf.mxu0
    %v1035 = vadd.f32 %v798, %v1034
    %v1036 = vpop.f32.mrf.mxu0
    %v1037 = vadd.f32 %v798, %v1036
    %1038 = vmatmul.bf16.gmra.mxu0 %v775
    %v1039 = vpop.f32.mrf.mxu0
    %v1040 = vadd.f32 %v798, %v1039
    %v1041 = vpop.f32.mrf.mxu0
    %v1042 = vadd.f32 %v798, %v1041
    %1043 = vmatmul.bf16.gmra.mxu0 %v776
    %v1044 = vpop.f32.mrf.mxu0
    %v1045 = vadd.f32 %v798, %v1044
    %v1046 = vpop.f32.mrf.mxu0
    %v1047 = vadd.f32 %v798, %v1046
    %1048 = vmatmul.bf16.gmra.mxu0 %v777
    %v1049 = vpop.f32.mrf.mxu0
    %v1050 = vadd.f32 %v798, %v1049
    %v1051 = vpop.f32.mrf.mxu0
    %v1052 = vadd.f32 %v798, %v1051
    %1053 = vmatmul.bf16.gmra.mxu0 %v778
    %v1054 = vpop.f32.mrf.mxu0
    %v1055 = vadd.f32 %v798, %v1054
    %v1056 = vpop.f32.mrf.mxu0
    %v1057 = vadd.f32 %v798, %v1056
    %1058 = vdwg.mxu0
    %v1059 = vpack.c.bf16 %v980, %v891
    %v1060 = vpack.c.bf16 %v982, %v893
    %v1061 = vpack.c.bf16 %v985, %v896
    %v1062 = vpack.c.bf16 %v987, %v898
    %v1063 = vpack.c.bf16 %v990, %v901
    %v1064 = vpack.c.bf16 %v992, %v903
    %v1065 = vpack.c.bf16 %v995, %v906
    %v1066 = vpack.c.bf16 %v997, %v908
    %v1067 = vpack.c.bf16 %v1000, %v911
    %v1068 = vpack.c.bf16 %v1002, %v913
    %v1069 = vpack.c.bf16 %v1005, %v916
    %v1070 = vpack.c.bf16 %v1007, %v918
    %v1071 = vpack.c.bf16 %v1010, %v921
    %v1072 = vpack.c.bf16 %v1012, %v923
    %v1073 = vpack.c.bf16 %v1015, %v926
    %v1074 = vpack.c.bf16 %v1017, %v928
    %v1075 = vpack.c.bf16 %v1020, %v931
    %v1076 = vpack.c.bf16 %v1022, %v933
    %v1077 = vpack.c.bf16 %v1025, %v936
    %v1078 = vpack.c.bf16 %v1027, %v938
    %v1079 = vpack.c.bf16 %v1030, %v941
    %v1080 = vpack.c.bf16 %v1032, %v943
    %v1081 = vpack.c.bf16 %v1035, %v946
    %v1082 = vpack.c.bf16 %v1037, %v948
    %v1083 = vpack.c.bf16 %v1040, %v951
    %v1084 = vpack.c.bf16 %v1042, %v953
    %v1085 = vpack.c.bf16 %v1045, %v956
    %v1086 = vpack.c.bf16 %v1047, %v958
    %v1087 = vpack.c.bf16 %v1050, %v961
    %v1088 = vpack.c.bf16 %v1052, %v963
    %v1089 = vpack.c.bf16 %v1055, %v966
    %v1090 = vpack.c.bf16 %v1057, %v968
    %v1091 = vunpack.c.l.bf16 %v1059
    %v1092 = vunpack.c.h.bf16 %v1059
    %v1093 = vunpack.c.l.bf16 %v1060
    %v1094 = vunpack.c.h.bf16 %v1060
    %v1095 = vunpack.c.l.bf16 %v1061
    %v1096 = vunpack.c.h.bf16 %v1061
    %v1097 = vunpack.c.l.bf16 %v1062
    %v1098 = vunpack.c.h.bf16 %v1062
    %v1099 = vunpack.c.l.bf16 %v1063
    %v1100 = vunpack.c.h.bf16 %v1063
    %v1101 = vunpack.c.l.bf16 %v1064
    %v1102 = vunpack.c.h.bf16 %v1064
    %v1103 = vunpack.c.l.bf16 %v1065
    %v1104 = vunpack.c.h.bf16 %v1065
    %v1105 = vunpack.c.l.bf16 %v1066
    %v1106 = vunpack.c.h.bf16 %v1066
    %v1107 = vunpack.c.l.bf16 %v1067
    %v1108 = vunpack.c.h.bf16 %v1067
    %v1109 = vunpack.c.l.bf16 %v1068
    %v1110 = vunpack.c.h.bf16 %v1068
    %v1111 = vunpack.c.l.bf16 %v1069
    %v1112 = vunpack.c.h.bf16 %v1069
    %v1113 = vunpack.c.l.bf16 %v1070
    %v1114 = vunpack.c.h.bf16 %v1070
    %v1115 = vunpack.c.l.bf16 %v1071
    %v1116 = vunpack.c.h.bf16 %v1071
    %v1117 = vunpack.c.l.bf16 %v1072
    %v1118 = vunpack.c.h.bf16 %v1072
    %v1119 = vunpack.c.l.bf16 %v1073
    %v1120 = vunpack.c.h.bf16 %v1073
    %v1121 = vunpack.c.l.bf16 %v1074
    %v1122 = vunpack.c.h.bf16 %v1074
    %v1123 = vunpack.c.l.bf16 %v1075
    %v1124 = vunpack.c.h.bf16 %v1075
    %v1125 = vunpack.c.l.bf16 %v1076
    %v1126 = vunpack.c.h.bf16 %v1076
    %v1127 = vunpack.c.l.bf16 %v1077
    %v1128 = vunpack.c.h.bf16 %v1077
    %v1129 = vunpack.c.l.bf16 %v1078
    %v1130 = vunpack.c.h.bf16 %v1078
    %v1131 = vunpack.c.l.bf16 %v1079
    %v1132 = vunpack.c.h.bf16 %v1079
    %v1133 = vunpack.c.l.bf16 %v1080
    %v1134 = vunpack.c.h.bf16 %v1080
    %v1135 = vunpack.c.l.bf16 %v1081
    %v1136 = vunpack.c.h.bf16 %v1081
    %v1137 = vunpack.c.l.bf16 %v1082
    %v1138 = vunpack.c.h.bf16 %v1082
    %v1139 = vunpack.c.l.bf16 %v1083
    %v1140 = vunpack.c.h.bf16 %v1083
    %v1141 = vunpack.c.l.bf16 %v1084
    %v1142 = vunpack.c.h.bf16 %v1084
    %v1143 = vunpack.c.l.bf16 %v1085
    %v1144 = vunpack.c.h.bf16 %v1085
    %v1145 = vunpack.c.l.bf16 %v1086
    %v1146 = vunpack.c.h.bf16 %v1086
    %v1147 = vunpack.c.l.bf16 %v1087
    %v1148 = vunpack.c.h.bf16 %v1087
    %v1149 = vunpack.c.l.bf16 %v1088
    %v1150 = vunpack.c.h.bf16 %v1088
    %v1151 = vunpack.c.l.bf16 %v1089
    %v1152 = vunpack.c.h.bf16 %v1089
    %v1153 = vunpack.c.l.bf16 %v1090
    %v1154 = vunpack.c.h.bf16 %v1090
    %v1155 = vmax.f32 %v1091, %v1093
    %v1156 = vmax.f32 %v1155, %v1095
    %v1157 = vmax.f32 %v1156, %v1097
    %v1158 = vrot.slane %v1157, 4
    %v1159 = vmax.f32 %v1157, %v1158
    %v1160 = vrot.slane %v1159, 2
    %v1161 = vmax.f32 %v1159, %v1160
    %v1162 = vrot.slane %v1161, 1
    %v1163 = vmax.f32 %v1161, %v1162
    %v1164 = vmax.f32 %v1092, %v1094
    %v1165 = vmax.f32 %v1164, %v1096
    %v1166 = vmax.f32 %v1165, %v1098
    %v1167 = vrot.slane %v1166, 4
    %v1168 = vmax.f32 %v1166, %v1167
    %v1169 = vrot.slane %v1168, 2
    %v1170 = vmax.f32 %v1168, %v1169
    %v1171 = vrot.slane %v1170, 1
    %v1172 = vmax.f32 %v1170, %v1171
    %v1173 = vmax.f32 %v1099, %v1101
    %v1174 = vmax.f32 %v1173, %v1103
    %v1175 = vmax.f32 %v1174, %v1105
    %v1176 = vrot.slane %v1175, 4
    %v1177 = vmax.f32 %v1175, %v1176
    %v1178 = vrot.slane %v1177, 2
    %v1179 = vmax.f32 %v1177, %v1178
    %v1180 = vrot.slane %v1179, 1
    %v1181 = vmax.f32 %v1179, %v1180
    %v1182 = vmax.f32 %v1100, %v1102
    %v1183 = vmax.f32 %v1182, %v1104
    %v1184 = vmax.f32 %v1183, %v1106
    %v1185 = vrot.slane %v1184, 4
    %v1186 = vmax.f32 %v1184, %v1185
    %v1187 = vrot.slane %v1186, 2
    %v1188 = vmax.f32 %v1186, %v1187
    %v1189 = vrot.slane %v1188, 1
    %v1190 = vmax.f32 %v1188, %v1189
    %v1191 = vmax.f32 %v1107, %v1109
    %v1192 = vmax.f32 %v1191, %v1111
    %v1193 = vmax.f32 %v1192, %v1113
    %v1194 = vrot.slane %v1193, 4
    %v1195 = vmax.f32 %v1193, %v1194
    %v1196 = vrot.slane %v1195, 2
    %v1197 = vmax.f32 %v1195, %v1196
    %v1198 = vrot.slane %v1197, 1
    %v1199 = vmax.f32 %v1197, %v1198
    %v1200 = vmax.f32 %v1108, %v1110
    %v1201 = vmax.f32 %v1200, %v1112
    %v1202 = vmax.f32 %v1201, %v1114
    %v1203 = vrot.slane %v1202, 4
    %v1204 = vmax.f32 %v1202, %v1203
    %v1205 = vrot.slane %v1204, 2
    %v1206 = vmax.f32 %v1204, %v1205
    %v1207 = vrot.slane %v1206, 1
    %v1208 = vmax.f32 %v1206, %v1207
    %v1209 = vmax.f32 %v1115, %v1117
    %v1210 = vmax.f32 %v1209, %v1119
    %v1211 = vmax.f32 %v1210, %v1121
    %v1212 = vrot.slane %v1211, 4
    %v1213 = vmax.f32 %v1211, %v1212
    %v1214 = vrot.slane %v1213, 2
    %v1215 = vmax.f32 %v1213, %v1214
    %v1216 = vrot.slane %v1215, 1
    %v1217 = vmax.f32 %v1215, %v1216
    %v1218 = vmax.f32 %v1116, %v1118
    %v1219 = vmax.f32 %v1218, %v1120
    %v1220 = vmax.f32 %v1219, %v1122
    %v1221 = vrot.slane %v1220, 4
    %v1222 = vmax.f32 %v1220, %v1221
    %v1223 = vrot.slane %v1222, 2
    %v1224 = vmax.f32 %v1222, %v1223
    %v1225 = vrot.slane %v1224, 1
    %v1226 = vmax.f32 %v1224, %v1225
    %v1227 = vmax.f32 %v1123, %v1125
    %v1228 = vmax.f32 %v1227, %v1127
    %v1229 = vmax.f32 %v1228, %v1129
    %v1230 = vrot.slane %v1229, 4
    %v1231 = vmax.f32 %v1229, %v1230
    %v1232 = vrot.slane %v1231, 2
    %v1233 = vmax.f32 %v1231, %v1232
    %v1234 = vrot.slane %v1233, 1
    %v1235 = vmax.f32 %v1233, %v1234
    %v1236 = vmax.f32 %v1124, %v1126
    %v1237 = vmax.f32 %v1236, %v1128
    %v1238 = vmax.f32 %v1237, %v1130
    %v1239 = vrot.slane %v1238, 4
    %v1240 = vmax.f32 %v1238, %v1239
    %v1241 = vrot.slane %v1240, 2
    %v1242 = vmax.f32 %v1240, %v1241
    %v1243 = vrot.slane %v1242, 1
    %v1244 = vmax.f32 %v1242, %v1243
    %v1245 = vmax.f32 %v1131, %v1133
    %v1246 = vmax.f32 %v1245, %v1135
    %v1247 = vmax.f32 %v1246, %v1137
    %v1248 = vrot.slane %v1247, 4
    %v1249 = vmax.f32 %v1247, %v1248
    %v1250 = vrot.slane %v1249, 2
    %v1251 = vmax.f32 %v1249, %v1250
    %v1252 = vrot.slane %v1251, 1
    %v1253 = vmax.f32 %v1251, %v1252
    %v1254 = vmax.f32 %v1132, %v1134
    %v1255 = vmax.f32 %v1254, %v1136
    %v1256 = vmax.f32 %v1255, %v1138
    %v1257 = vrot.slane %v1256, 4
    %v1258 = vmax.f32 %v1256, %v1257
    %v1259 = vrot.slane %v1258, 2
    %v1260 = vmax.f32 %v1258, %v1259
    %v1261 = vrot.slane %v1260, 1
    %v1262 = vmax.f32 %v1260, %v1261
    %v1263 = vmax.f32 %v1139, %v1141
    %v1264 = vmax.f32 %v1263, %v1143
    %v1265 = vmax.f32 %v1264, %v1145
    %v1266 = vrot.slane %v1265, 4
    %v1267 = vmax.f32 %v1265, %v1266
    %v1268 = vrot.slane %v1267, 2
    %v1269 = vmax.f32 %v1267, %v1268
    %v1270 = vrot.slane %v1269, 1
    %v1271 = vmax.f32 %v1269, %v1270
    %v1272 = vmax.f32 %v1140, %v1142
    %v1273 = vmax.f32 %v1272, %v1144
    %v1274 = vmax.f32 %v1273, %v1146
    %v1275 = vrot.slane %v1274, 4
    %v1276 = vmax.f32 %v1274, %v1275
    %v1277 = vrot.slane %v1276, 2
    %v1278 = vmax.f32 %v1276, %v1277
    %v1279 = vrot.slane %v1278, 1
    %v1280 = vmax.f32 %v1278, %v1279
    %v1281 = vmax.f32 %v1147, %v1149
    %v1282 = vmax.f32 %v1281, %v1151
    %v1283 = vmax.f32 %v1282, %v1153
    %v1284 = vrot.slane %v1283, 4
    %v1285 = vmax.f32 %v1283, %v1284
    %v1286 = vrot.slane %v1285, 2
    %v1287 = vmax.f32 %v1285, %v1286
    %v1288 = vrot.slane %v1287, 1
    %v1289 = vmax.f32 %v1287, %v1288
    %v1290 = vmax.f32 %v1148, %v1150
    %v1291 = vmax.f32 %v1290, %v1152
    %v1292 = vmax.f32 %v1291, %v1154
    %v1293 = vrot.slane %v1292, 4
    %v1294 = vmax.f32 %v1292, %v1293
    %v1295 = vrot.slane %v1294, 2
    %v1296 = vmax.f32 %v1294, %v1295
    %v1297 = vrot.slane %v1296, 1
    %v1298 = vmax.f32 %v1296, %v1297
    %v1299 = vpack.c.bf16 %v1163, %v1163
    %v1300 = vpack.c.bf16 %v1172, %v1172
    %v1301 = vpack.c.bf16 %v1181, %v1181
    %v1302 = vpack.c.bf16 %v1190, %v1190
    %v1303 = vpack.c.bf16 %v1199, %v1199
    %v1304 = vpack.c.bf16 %v1208, %v1208
    %v1305 = vpack.c.bf16 %v1217, %v1217
    %v1306 = vpack.c.bf16 %v1226, %v1226
    %v1307 = vpack.c.bf16 %v1235, %v1235
    %v1308 = vpack.c.bf16 %v1244, %v1244
    %v1309 = vpack.c.bf16 %v1253, %v1253
    %v1310 = vpack.c.bf16 %v1262, %v1262
    %v1311 = vpack.c.bf16 %v1271, %v1271
    %v1312 = vpack.c.bf16 %v1280, %v1280
    %v1313 = vpack.c.bf16 %v1289, %v1289
    %v1314 = vpack.c.bf16 %v1298, %v1298
    %v1315 = vld [vmem:[#allocation2] sm:$0xff]
    %v1316 = vld [vmem:[#allocation2 + $0x8] sm:$0xff]
    %v1317 = vld [vmem:[#allocation2 + $0x10] sm:$0xff]
    %v1318 = vld [vmem:[#allocation2 + $0x18] sm:$0xff]
    %v1319 = vld [vmem:[#allocation2 + $0x20] sm:$0xff]
    %v1320 = vld [vmem:[#allocation2 + $0x28] sm:$0xff]
    %v1321 = vld [vmem:[#allocation2 + $0x30] sm:$0xff]
    %v1322 = vld [vmem:[#allocation2 + $0x38] sm:$0xff]
    %v1323 = vld [vmem:[#allocation2 + $0x40] sm:$0xff]
    %v1324 = vld [vmem:[#allocation2 + $0x48] sm:$0xff]
    %v1325 = vld [vmem:[#allocation2 + $0x50] sm:$0xff]
    %v1326 = vld [vmem:[#allocation2 + $0x58] sm:$0xff]
    %v1327 = vld [vmem:[#allocation2 + $0x60] sm:$0xff]
    %v1328 = vld [vmem:[#allocation2 + $0x68] sm:$0xff]
    %v1329 = vld [vmem:[#allocation2 + $0x70] sm:$0xff]
    %v1330 = vld [vmem:[#allocation2 + $0x78] sm:$0xff]
    %v1331 = vld [vmem:[#allocation2 + $0x80] sm:$0xff]
    %v1332 = vld [vmem:[#allocation2 + $0x88] sm:$0xff]
    %v1333 = vld [vmem:[#allocation2 + $0x90] sm:$0xff]
    %v1334 = vld [vmem:[#allocation2 + $0x98] sm:$0xff]
    %v1335 = vld [vmem:[#allocation2 + $0xa0] sm:$0xff]
    %v1336 = vld [vmem:[#allocation2 + $0xa8] sm:$0xff]
    %v1337 = vld [vmem:[#allocation2 + $0xb0] sm:$0xff]
    %v1338 = vld [vmem:[#allocation2 + $0xb8] sm:$0xff]
    %v1339 = vld [vmem:[#allocation2 + $0xc0] sm:$0xff]
    %v1340 = vld [vmem:[#allocation2 + $0xc8] sm:$0xff]
    %v1341 = vld [vmem:[#allocation2 + $0xd0] sm:$0xff]
    %v1342 = vld [vmem:[#allocation2 + $0xd8] sm:$0xff]
    %v1343 = vld [vmem:[#allocation2 + $0xe0] sm:$0xff]
    %v1344 = vld [vmem:[#allocation2 + $0xe8] sm:$0xff]
    %v1345 = vld [vmem:[#allocation2 + $0xf0] sm:$0xff]
    %v1346 = vld [vmem:[#allocation2 + $0xf8] sm:$0xff]
    %v1347 = vld [vmem:[#allocation2 + $0x100] sm:$0xff]
    %v1348 = vld [vmem:[#allocation2 + $0x108] sm:$0xff]
    %v1349 = vld [vmem:[#allocation2 + $0x110] sm:$0xff]
    %v1350 = vld [vmem:[#allocation2 + $0x118] sm:$0xff]
    %v1351 = vld [vmem:[#allocation2 + $0x120] sm:$0xff]
    %v1352 = vld [vmem:[#allocation2 + $0x128] sm:$0xff]
    %v1353 = vld [vmem:[#allocation2 + $0x130] sm:$0xff]
    %v1354 = vld [vmem:[#allocation2 + $0x138] sm:$0xff]
    %v1355 = vld [vmem:[#allocation2 + $0x140] sm:$0xff]
    %v1356 = vld [vmem:[#allocation2 + $0x148] sm:$0xff]
    %v1357 = vld [vmem:[#allocation2 + $0x150] sm:$0xff]
    %v1358 = vld [vmem:[#allocation2 + $0x158] sm:$0xff]
    %v1359 = vld [vmem:[#allocation2 + $0x160] sm:$0xff]
    %v1360 = vld [vmem:[#allocation2 + $0x168] sm:$0xff]
    %v1361 = vld [vmem:[#allocation2 + $0x170] sm:$0xff]
    %v1362 = vld [vmem:[#allocation2 + $0x178] sm:$0xff]
    %v1363 = vld [vmem:[#allocation2 + $0x180] sm:$0xff]
    %v1364 = vld [vmem:[#allocation2 + $0x188] sm:$0xff]
    %v1365 = vld [vmem:[#allocation2 + $0x190] sm:$0xff]
    %v1366 = vld [vmem:[#allocation2 + $0x198] sm:$0xff]
    %v1367 = vld [vmem:[#allocation2 + $0x1a0] sm:$0xff]
    %v1368 = vld [vmem:[#allocation2 + $0x1a8] sm:$0xff]
    %v1369 = vld [vmem:[#allocation2 + $0x1b0] sm:$0xff]
    %v1370 = vld [vmem:[#allocation2 + $0x1b8] sm:$0xff]
    %v1371 = vld [vmem:[#allocation2 + $0x1c0] sm:$0xff]
    %v1372 = vld [vmem:[#allocation2 + $0x1c8] sm:$0xff]
    %v1373 = vld [vmem:[#allocation2 + $0x1d0] sm:$0xff]
    %v1374 = vld [vmem:[#allocation2 + $0x1d8] sm:$0xff]
    %v1375 = vld [vmem:[#allocation2 + $0x1e0] sm:$0xff]
    %v1376 = vld [vmem:[#allocation2 + $0x1e8] sm:$0xff]
    %v1377 = vld [vmem:[#allocation2 + $0x1f0] sm:$0xff]
    %v1378 = vld [vmem:[#allocation2 + $0x1f8] sm:$0xff]
    %v1379 = vld [vmem:[%s7] sm:$0xf]
    %v1381 = vperm.slane %v1379, 0
    %v1382 = vperm.slane %v1379, 1
    %v1383 = vperm.slane %v1379, 2
    %v1384 = vperm.slane %v1379, 3
    %v1405 = vunpack.c.l.b16 %v1299
    %v1406 = vunpack.c.l.b16 %v1300
    %v1407 = vunpack.c.l.b16 %v1301
    %v1408 = vunpack.c.l.b16 %v1302
    %v1409 = vunpack.c.l.b16 %v1303
    %v1410 = vunpack.c.l.b16 %v1304
    %v1411 = vunpack.c.l.b16 %v1305
    %v1412 = vunpack.c.l.b16 %v1306
    %v1413 = vunpack.c.l.b16 %v1307
    %v1414 = vunpack.c.l.b16 %v1308
    %v1415 = vunpack.c.l.b16 %v1309
    %v1416 = vunpack.c.l.b16 %v1310
    %v1417 = vunpack.c.l.b16 %v1311
    %v1418 = vunpack.c.l.b16 %v1312
    %v1419 = vunpack.c.l.b16 %v1313
    %v1420 = vunpack.c.l.b16 %v1314
    %vm1421 = vcmask 1041409
    %v1422 = vsel %vm1421, %v1407, %v1405
    %vm1423 = vcmask 1042434
    %v1424 = vsel %vm1423, %v1409, %v1422
    %vm1425 = vcmask 1043459
    %v1426 = vsel %vm1425, %v1411, %v1424
    %vm1427 = vcmask 1044484
    %v1428 = vsel %vm1427, %v1413, %v1426
    %vm1429 = vcmask 1045509
    %v1430 = vsel %vm1429, %v1415, %v1428
    %vm1431 = vcmask 1046534
    %v1432 = vsel %vm1431, %v1417, %v1430
    %vm1433 = vcmask 1047559
    %v1434 = vsel %vm1433, %v1419, %v1432
    %v1435 = vsel %vm1421, %v1408, %v1406
    %v1436 = vsel %vm1423, %v1410, %v1435
    %v1437 = vsel %vm1425, %v1412, %v1436
    %v1438 = vsel %vm1427, %v1414, %v1437
    %v1439 = vsel %vm1429, %v1416, %v1438
    %v1440 = vsel %vm1431, %v1418, %v1439
    %v1441 = vsel %vm1433, %v1420, %v1440
    %v1442 = vpack.c.b16 %v1434, %v1434
    %v1443 = vpack.c.b16 %v1441, %v1441
    %v1510 = vunpack.c.l.b16 %v1315
    %v1511 = vunpack.c.h.b16 %v1315
    %v1512 = vunpack.c.l.b16 %v1316
    %v1513 = vunpack.c.h.b16 %v1316
    %v1514 = vunpack.c.l.b16 %v1317
    %v1515 = vunpack.c.h.b16 %v1317
    %v1516 = vunpack.c.l.b16 %v1318
    %v1517 = vunpack.c.h.b16 %v1318
    %v1518 = vunpack.c.l.b16 %v1319
    %v1519 = vunpack.c.h.b16 %v1319
    %v1520 = vunpack.c.l.b16 %v1320
    %v1521 = vunpack.c.h.b16 %v1320
    %v1522 = vunpack.c.l.b16 %v1321
    %v1523 = vunpack.c.h.b16 %v1321
    %v1524 = vunpack.c.l.b16 %v1322
    %v1525 = vunpack.c.h.b16 %v1322
    %v1526 = vunpack.c.l.b16 %v1323
    %v1527 = vunpack.c.h.b16 %v1323
    %v1528 = vunpack.c.l.b16 %v1324
    %v1529 = vunpack.c.h.b16 %v1324
    %v1530 = vunpack.c.l.b16 %v1325
    %v1531 = vunpack.c.h.b16 %v1325
    %v1532 = vunpack.c.l.b16 %v1326
    %v1533 = vunpack.c.h.b16 %v1326
    %v1534 = vunpack.c.l.b16 %v1327
    %v1535 = vunpack.c.h.b16 %v1327
    %v1536 = vunpack.c.l.b16 %v1328
    %v1537 = vunpack.c.h.b16 %v1328
    %v1538 = vunpack.c.l.b16 %v1329
    %v1539 = vunpack.c.h.b16 %v1329
    %v1540 = vunpack.c.l.b16 %v1330
    %v1541 = vunpack.c.h.b16 %v1330
    %v1542 = vunpack.c.l.b16 %v1331
    %v1543 = vunpack.c.h.b16 %v1331
    %v1544 = vunpack.c.l.b16 %v1332
    %v1545 = vunpack.c.h.b16 %v1332
    %v1546 = vunpack.c.l.b16 %v1333
    %v1547 = vunpack.c.h.b16 %v1333
    %v1548 = vunpack.c.l.b16 %v1334
    %v1549 = vunpack.c.h.b16 %v1334
    %v1550 = vunpack.c.l.b16 %v1335
    %v1551 = vunpack.c.h.b16 %v1335
    %v1552 = vunpack.c.l.b16 %v1336
    %v1553 = vunpack.c.h.b16 %v1336
    %v1554 = vunpack.c.l.b16 %v1337
    %v1555 = vunpack.c.h.b16 %v1337
    %v1556 = vunpack.c.l.b16 %v1338
    %v1557 = vunpack.c.h.b16 %v1338
    %v1558 = vunpack.c.l.b16 %v1339
    %v1559 = vunpack.c.h.b16 %v1339
    %v1560 = vunpack.c.l.b16 %v1340
    %v1561 = vunpack.c.h.b16 %v1340
    %v1562 = vunpack.c.l.b16 %v1341
    %v1563 = vunpack.c.h.b16 %v1341
    %v1564 = vunpack.c.l.b16 %v1342
    %v1565 = vunpack.c.h.b16 %v1342
    %v1566 = vunpack.c.l.b16 %v1343
    %v1567 = vunpack.c.h.b16 %v1343
    %v1568 = vunpack.c.l.b16 %v1344
    %v1569 = vunpack.c.h.b16 %v1344
    %v1570 = vunpack.c.l.b16 %v1345
    %v1571 = vunpack.c.h.b16 %v1345
    %v1572 = vunpack.c.l.b16 %v1346
    %v1573 = vunpack.c.h.b16 %v1346
    %v1574 = vunpack.c.l.b16 %v1347
    %v1575 = vunpack.c.h.b16 %v1347
    %v1576 = vunpack.c.l.b16 %v1348
    %v1577 = vunpack.c.h.b16 %v1348
    %v1578 = vunpack.c.l.b16 %v1349
    %v1579 = vunpack.c.h.b16 %v1349
    %v1580 = vunpack.c.l.b16 %v1350
    %v1581 = vunpack.c.h.b16 %v1350
    %v1582 = vunpack.c.l.b16 %v1351
    %v1583 = vunpack.c.h.b16 %v1351
    %v1584 = vunpack.c.l.b16 %v1352
    %v1585 = vunpack.c.h.b16 %v1352
    %v1586 = vunpack.c.l.b16 %v1353
    %v1587 = vunpack.c.h.b16 %v1353
    %v1588 = vunpack.c.l.b16 %v1354
    %v1589 = vunpack.c.h.b16 %v1354
    %v1590 = vunpack.c.l.b16 %v1355
    %v1591 = vunpack.c.h.b16 %v1355
    %v1592 = vunpack.c.l.b16 %v1356
    %v1593 = vunpack.c.h.b16 %v1356
    %v1594 = vunpack.c.l.b16 %v1357
    %v1595 = vunpack.c.h.b16 %v1357
    %v1596 = vunpack.c.l.b16 %v1358
    %v1597 = vunpack.c.h.b16 %v1358
    %v1598 = vunpack.c.l.b16 %v1359
    %v1599 = vunpack.c.h.b16 %v1359
    %v1600 = vunpack.c.l.b16 %v1360
    %v1601 = vunpack.c.h.b16 %v1360
    %v1602 = vunpack.c.l.b16 %v1361
    %v1603 = vunpack.c.h.b16 %v1361
    %v1604 = vunpack.c.l.b16 %v1362
    %v1605 = vunpack.c.h.b16 %v1362
    %v1606 = vunpack.c.l.b16 %v1363
    %v1607 = vunpack.c.h.b16 %v1363
    %v1608 = vunpack.c.l.b16 %v1364
    %v1609 = vunpack.c.h.b16 %v1364
    %v1610 = vunpack.c.l.b16 %v1365
    %v1611 = vunpack.c.h.b16 %v1365
    %v1612 = vunpack.c.l.b16 %v1366
    %v1613 = vunpack.c.h.b16 %v1366
    %v1614 = vunpack.c.l.b16 %v1367
    %v1615 = vunpack.c.h.b16 %v1367
    %v1616 = vunpack.c.l.b16 %v1368
    %v1617 = vunpack.c.h.b16 %v1368
    %v1618 = vunpack.c.l.b16 %v1369
    %v1619 = vunpack.c.h.b16 %v1369
    %v1620 = vunpack.c.l.b16 %v1370
    %v1621 = vunpack.c.h.b16 %v1370
    %v1622 = vunpack.c.l.b16 %v1371
    %v1623 = vunpack.c.h.b16 %v1371
    %v1624 = vunpack.c.l.b16 %v1372
    %v1625 = vunpack.c.h.b16 %v1372
    %v1626 = vunpack.c.l.b16 %v1373
    %v1627 = vunpack.c.h.b16 %v1373
    %v1628 = vunpack.c.l.b16 %v1374
    %v1629 = vunpack.c.h.b16 %v1374
    %v1630 = vunpack.c.l.b16 %v1375
    %v1631 = vunpack.c.h.b16 %v1375
    %v1632 = vunpack.c.l.b16 %v1376
    %v1633 = vunpack.c.h.b16 %v1376
    %v1634 = vunpack.c.l.b16 %v1377
    %v1635 = vunpack.c.h.b16 %v1377
    %v1636 = vunpack.c.l.b16 %v1378
    %v1637 = vunpack.c.h.b16 %v1378
    %v1638 = vpack.c.b16 %v1514, %v1510
    %v1639 = vpack.c.b16 %v1515, %v1511
    %v1640 = vpack.c.b16 %v1516, %v1512
    %v1641 = vpack.c.b16 %v1517, %v1513
    %v1642 = vpack.c.b16 %v1522, %v1518
    %v1643 = vpack.c.b16 %v1523, %v1519
    %v1644 = vpack.c.b16 %v1524, %v1520
    %v1645 = vpack.c.b16 %v1525, %v1521
    %v1646 = vpack.c.b16 %v1530, %v1526
    %v1647 = vpack.c.b16 %v1531, %v1527
    %v1648 = vpack.c.b16 %v1532, %v1528
    %v1649 = vpack.c.b16 %v1533, %v1529
    %v1650 = vpack.c.b16 %v1538, %v1534
    %v1651 = vpack.c.b16 %v1539, %v1535
    %v1652 = vpack.c.b16 %v1540, %v1536
    %v1653 = vpack.c.b16 %v1541, %v1537
    %v1654 = vpack.c.b16 %v1546, %v1542
    %v1655 = vpack.c.b16 %v1547, %v1543
    %v1656 = vpack.c.b16 %v1548, %v1544
    %v1657 = vpack.c.b16 %v1549, %v1545
    %v1658 = vpack.c.b16 %v1554, %v1550
    %v1659 = vpack.c.b16 %v1555, %v1551
    %v1660 = vpack.c.b16 %v1556, %v1552
    %v1661 = vpack.c.b16 %v1557, %v1553
    %v1662 = vpack.c.b16 %v1562, %v1558
    %v1663 = vpack.c.b16 %v1563, %v1559
    %v1664 = vpack.c.b16 %v1564, %v1560
    %v1665 = vpack.c.b16 %v1565, %v1561
    %v1666 = vpack.c.b16 %v1570, %v1566
    %v1667 = vpack.c.b16 %v1571, %v1567
    %v1668 = vpack.c.b16 %v1572, %v1568
    %v1669 = vpack.c.b16 %v1573, %v1569
    %v1670 = vpack.c.b16 %v1578, %v1574
    %v1671 = vpack.c.b16 %v1579, %v1575
    %v1672 = vpack.c.b16 %v1580, %v1576
    %v1673 = vpack.c.b16 %v1581, %v1577
    %v1674 = vpack.c.b16 %v1586, %v1582
    %v1675 = vpack.c.b16 %v1587, %v1583
    %v1676 = vpack.c.b16 %v1588, %v1584
    %v1677 = vpack.c.b16 %v1589, %v1585
    %v1678 = vpack.c.b16 %v1594, %v1590
    %v1679 = vpack.c.b16 %v1595, %v1591
    %v1680 = vpack.c.b16 %v1596, %v1592
    %v1681 = vpack.c.b16 %v1597, %v1593
    %v1682 = vpack.c.b16 %v1602, %v1598
    %v1683 = vpack.c.b16 %v1603, %v1599
    %v1684 = vpack.c.b16 %v1604, %v1600
    %v1685 = vpack.c.b16 %v1605, %v1601
    %v1686 = vpack.c.b16 %v1610, %v1606
    %v1687 = vpack.c.b16 %v1611, %v1607
    %v1688 = vpack.c.b16 %v1612, %v1608
    %v1689 = vpack.c.b16 %v1613, %v1609
    %v1690 = vpack.c.b16 %v1618, %v1614
    %v1691 = vpack.c.b16 %v1619, %v1615
    %v1692 = vpack.c.b16 %v1620, %v1616
    %v1693 = vpack.c.b16 %v1621, %v1617
    %v1694 = vpack.c.b16 %v1626, %v1622
    %v1695 = vpack.c.b16 %v1627, %v1623
    %v1696 = vpack.c.b16 %v1628, %v1624
    %v1697 = vpack.c.b16 %v1629, %v1625
    %v1698 = vpack.c.b16 %v1634, %v1630
    %v1699 = vpack.c.b16 %v1635, %v1631
    %v1700 = vpack.c.b16 %v1636, %v1632
    %v1701 = vpack.c.b16 %v1637, %v1633
    %1766 = vmatpush.bf16.msra.mxu0 %v1666
    %1767 = vmatpush.bf16.msra.mxu0 %v1662
    %1768 = vmatpush.bf16.msra.mxu0 %v1658
    %1769 = vmatpush.bf16.msra.mxu0 %v1654
    %1770 = vmatpush.bf16.msra.mxu0 %v1650
    %1771 = vmatpush.bf16.msra.mxu0 %v1646
    %1772 = vmatpush.bf16.msra.mxu0 %v1642
    %1773 = vmatpush.bf16.msra.mxu0 %v1638
    %1774 = vmatmul.bf16.gmra.mxu0 %v1442
    %v1775 = vpop.f32.mrf.mxu0
    %v1776 = vadd.f32 %v1381, %v1775
    %v1777 = vpop.f32.mrf.mxu0
    %1778 = vdwg.mxu0
    %1779 = vmatpush.bf16.msra.mxu0 %v1698
    %1780 = vmatpush.bf16.msra.mxu0 %v1694
    %1781 = vmatpush.bf16.msra.mxu0 %v1690
    %1782 = vmatpush.bf16.msra.mxu0 %v1686
    %1783 = vmatpush.bf16.msra.mxu0 %v1682
    %1784 = vmatpush.bf16.msra.mxu0 %v1678
    %1785 = vmatpush.bf16.msra.mxu0 %v1674
    %1786 = vmatpush.bf16.msra.mxu0 %v1670
    %1787 = vmatmul.bf16.gmra.mxu0 %v1443
    %v1788 = vpop.f32.mrf.mxu0
    %v1789 = vadd.f32 %v1776, %v1788
    %v1790 = vpop.f32.mrf.mxu0
    %1791 = vdwg.mxu0
    %1792 = vmatpush.bf16.msra.mxu0 %v1667
    %1793 = vmatpush.bf16.msra.mxu0 %v1663
    %1794 = vmatpush.bf16.msra.mxu0 %v1659
    %1795 = vmatpush.bf16.msra.mxu0 %v1655
    %1796 = vmatpush.bf16.msra.mxu0 %v1651
    %1797 = vmatpush.bf16.msra.mxu0 %v1647
    %1798 = vmatpush.bf16.msra.mxu0 %v1643
    %1799 = vmatpush.bf16.msra.mxu0 %v1639
    %1800 = vmatmul.bf16.gmra.mxu0 %v1442
    %v1801 = vpop.f32.mrf.mxu0
    %v1802 = vadd.f32 %v1382, %v1801
    %v1803 = vpop.f32.mrf.mxu0
    %1804 = vdwg.mxu0
    %1805 = vmatpush.bf16.msra.mxu0 %v1699
    %1806 = vmatpush.bf16.msra.mxu0 %v1695
    %1807 = vmatpush.bf16.msra.mxu0 %v1691
    %1808 = vmatpush.bf16.msra.mxu0 %v1687
    %1809 = vmatpush.bf16.msra.mxu0 %v1683
    %1810 = vmatpush.bf16.msra.mxu0 %v1679
    %1811 = vmatpush.bf16.msra.mxu0 %v1675
    %1812 = vmatpush.bf16.msra.mxu0 %v1671
    %1813 = vmatmul.bf16.gmra.mxu0 %v1443
    %v1814 = vpop.f32.mrf.mxu0
    %v1815 = vadd.f32 %v1802, %v1814
    %v1816 = vpop.f32.mrf.mxu0
    %1817 = vdwg.mxu0
    %1818 = vmatpush.bf16.msra.mxu0 %v1668
    %1819 = vmatpush.bf16.msra.mxu0 %v1664
    %1820 = vmatpush.bf16.msra.mxu0 %v1660
    %1821 = vmatpush.bf16.msra.mxu0 %v1656
    %1822 = vmatpush.bf16.msra.mxu0 %v1652
    %1823 = vmatpush.bf16.msra.mxu0 %v1648
    %1824 = vmatpush.bf16.msra.mxu0 %v1644
    %1825 = vmatpush.bf16.msra.mxu0 %v1640
    %1826 = vmatmul.bf16.gmra.mxu0 %v1442
    %v1827 = vpop.f32.mrf.mxu0
    %v1828 = vadd.f32 %v1383, %v1827
    %v1829 = vpop.f32.mrf.mxu0
    %1830 = vdwg.mxu0
    %1831 = vmatpush.bf16.msra.mxu0 %v1700
    %1832 = vmatpush.bf16.msra.mxu0 %v1696
    %1833 = vmatpush.bf16.msra.mxu0 %v1692
    %1834 = vmatpush.bf16.msra.mxu0 %v1688
    %1835 = vmatpush.bf16.msra.mxu0 %v1684
    %1836 = vmatpush.bf16.msra.mxu0 %v1680
    %1837 = vmatpush.bf16.msra.mxu0 %v1676
    %1838 = vmatpush.bf16.msra.mxu0 %v1672
    %1839 = vmatmul.bf16.gmra.mxu0 %v1443
    %v1840 = vpop.f32.mrf.mxu0
    %v1841 = vadd.f32 %v1828, %v1840
    %v1842 = vpop.f32.mrf.mxu0
    %1843 = vdwg.mxu0
    %1844 = vmatpush.bf16.msra.mxu0 %v1669
    %1845 = vmatpush.bf16.msra.mxu0 %v1665
    %1846 = vmatpush.bf16.msra.mxu0 %v1661
    %1847 = vmatpush.bf16.msra.mxu0 %v1657
    %1848 = vmatpush.bf16.msra.mxu0 %v1653
    %1849 = vmatpush.bf16.msra.mxu0 %v1649
    %1850 = vmatpush.bf16.msra.mxu0 %v1645
    %1851 = vmatpush.bf16.msra.mxu0 %v1641
    %1852 = vmatmul.bf16.gmra.mxu0 %v1442
    %v1853 = vpop.f32.mrf.mxu0
    %v1854 = vadd.f32 %v1384, %v1853
    %v1855 = vpop.f32.mrf.mxu0
    %1856 = vdwg.mxu0
    %1857 = vmatpush.bf16.msra.mxu0 %v1701
    %1858 = vmatpush.bf16.msra.mxu0 %v1697
    %1859 = vmatpush.bf16.msra.mxu0 %v1693
    %1860 = vmatpush.bf16.msra.mxu0 %v1689
    %1861 = vmatpush.bf16.msra.mxu0 %v1685
    %1862 = vmatpush.bf16.msra.mxu0 %v1681
    %1863 = vmatpush.bf16.msra.mxu0 %v1677
    %1864 = vmatpush.bf16.msra.mxu0 %v1673
    %1865 = vmatmul.bf16.gmra.mxu0 %v1443
    %v1866 = vpop.f32.mrf.mxu0
    %v1867 = vadd.f32 %v1854, %v1866
    %v1868 = vpop.f32.mrf.mxu0
    %1869 = vdwg.mxu0
    %v1870 = vld [vmem:[#allocation5] sm:$0xff]
    %v1871 = vld [vmem:[#allocation5 + $0x8] sm:$0xff]
    %v1872 = vld [vmem:[#allocation5 + $0x10] sm:$0xff]
    %v1873 = vld [vmem:[#allocation5 + $0x18] sm:$0xff]
    %v1874 = vld [vmem:[#allocation5 + $0x20] sm:$0xff]
    %v1875 = vld [vmem:[#allocation5 + $0x28] sm:$0xff]
    %v1876 = vld [vmem:[#allocation5 + $0x30] sm:$0xff]
    %v1877 = vld [vmem:[#allocation5 + $0x38] sm:$0xff]
    %v1878 = vld [vmem:[#allocation5 + $0x40] sm:$0xff]
    %v1879 = vld [vmem:[#allocation5 + $0x48] sm:$0xff]
    %v1880 = vld [vmem:[#allocation5 + $0x50] sm:$0xff]
    %v1881 = vld [vmem:[#allocation5 + $0x58] sm:$0xff]
    %v1882 = vld [vmem:[#allocation5 + $0x60] sm:$0xff]
    %v1883 = vld [vmem:[#allocation5 + $0x68] sm:$0xff]
    %v1884 = vld [vmem:[#allocation5 + $0x70] sm:$0xff]
    %v1885 = vld [vmem:[#allocation5 + $0x78] sm:$0xff]
    %v1886 = vld [vmem:[#allocation5 + $0x80] sm:$0xff]
    %v1887 = vld [vmem:[#allocation5 + $0x88] sm:$0xff]
    %v1888 = vld [vmem:[#allocation5 + $0x90] sm:$0xff]
    %v1889 = vld [vmem:[#allocation5 + $0x98] sm:$0xff]
    %v1890 = vld [vmem:[#allocation5 + $0xa0] sm:$0xff]
    %v1891 = vld [vmem:[#allocation5 + $0xa8] sm:$0xff]
    %v1892 = vld [vmem:[#allocation5 + $0xb0] sm:$0xff]
    %v1893 = vld [vmem:[#allocation5 + $0xb8] sm:$0xff]
    %v1894 = vld [vmem:[#allocation5 + $0xc0] sm:$0xff]
    %v1895 = vld [vmem:[#allocation5 + $0xc8] sm:$0xff]
    %v1896 = vld [vmem:[#allocation5 + $0xd0] sm:$0xff]
    %v1897 = vld [vmem:[#allocation5 + $0xd8] sm:$0xff]
    %v1898 = vld [vmem:[#allocation5 + $0xe0] sm:$0xff]
    %v1899 = vld [vmem:[#allocation5 + $0xe8] sm:$0xff]
    %v1900 = vld [vmem:[#allocation5 + $0xf0] sm:$0xff]
    %v1901 = vld [vmem:[#allocation5 + $0xf8] sm:$0xff]
    %v1902 = vld [vmem:[#allocation5 + $0x100] sm:$0xff]
    %v1903 = vld [vmem:[#allocation5 + $0x108] sm:$0xff]
    %v1904 = vld [vmem:[#allocation5 + $0x110] sm:$0xff]
    %v1905 = vld [vmem:[#allocation5 + $0x118] sm:$0xff]
    %v1906 = vld [vmem:[#allocation5 + $0x120] sm:$0xff]
    %v1907 = vld [vmem:[#allocation5 + $0x128] sm:$0xff]
    %v1908 = vld [vmem:[#allocation5 + $0x130] sm:$0xff]
    %v1909 = vld [vmem:[#allocation5 + $0x138] sm:$0xff]
    %v1910 = vld [vmem:[#allocation5 + $0x140] sm:$0xff]
    %v1911 = vld [vmem:[#allocation5 + $0x148] sm:$0xff]
    %v1912 = vld [vmem:[#allocation5 + $0x150] sm:$0xff]
    %v1913 = vld [vmem:[#allocation5 + $0x158] sm:$0xff]
    %v1914 = vld [vmem:[#allocation5 + $0x160] sm:$0xff]
    %v1915 = vld [vmem:[#allocation5 + $0x168] sm:$0xff]
    %v1916 = vld [vmem:[#allocation5 + $0x170] sm:$0xff]
    %v1917 = vld [vmem:[#allocation5 + $0x178] sm:$0xff]
    %v1918 = vld [vmem:[#allocation5 + $0x180] sm:$0xff]
    %v1919 = vld [vmem:[#allocation5 + $0x188] sm:$0xff]
    %v1920 = vld [vmem:[#allocation5 + $0x190] sm:$0xff]
    %v1921 = vld [vmem:[#allocation5 + $0x198] sm:$0xff]
    %v1922 = vld [vmem:[#allocation5 + $0x1a0] sm:$0xff]
    %v1923 = vld [vmem:[#allocation5 + $0x1a8] sm:$0xff]
    %v1924 = vld [vmem:[#allocation5 + $0x1b0] sm:$0xff]
    %v1925 = vld [vmem:[#allocation5 + $0x1b8] sm:$0xff]
    %v1926 = vld [vmem:[#allocation5 + $0x1c0] sm:$0xff]
    %v1927 = vld [vmem:[#allocation5 + $0x1c8] sm:$0xff]
    %v1928 = vld [vmem:[#allocation5 + $0x1d0] sm:$0xff]
    %v1929 = vld [vmem:[#allocation5 + $0x1d8] sm:$0xff]
    %v1930 = vld [vmem:[#allocation5 + $0x1e0] sm:$0xff]
    %v1931 = vld [vmem:[#allocation5 + $0x1e8] sm:$0xff]
    %v1932 = vld [vmem:[#allocation5 + $0x1f0] sm:$0xff]
    %v1933 = vld [vmem:[#allocation5 + $0x1f8] sm:$0xff]
    %v1966 = vunpack.c.l.b16 %v1059
    %v1967 = vunpack.c.h.b16 %v1059
    %v1968 = vunpack.c.l.b16 %v1060
    %v1969 = vunpack.c.h.b16 %v1060
    %v1970 = vunpack.c.l.b16 %v1061
    %v1971 = vunpack.c.h.b16 %v1061
    %v1972 = vunpack.c.l.b16 %v1062
    %v1973 = vunpack.c.h.b16 %v1062
    %v1974 = vunpack.c.l.b16 %v1063
    %v1975 = vunpack.c.h.b16 %v1063
    %v1976 = vunpack.c.l.b16 %v1064
    %v1977 = vunpack.c.h.b16 %v1064
    %v1978 = vunpack.c.l.b16 %v1065
    %v1979 = vunpack.c.h.b16 %v1065
    %v1980 = vunpack.c.l.b16 %v1066
    %v1981 = vunpack.c.h.b16 %v1066
    %v1982 = vunpack.c.l.b16 %v1067
    %v1983 = vunpack.c.h.b16 %v1067
    %v1984 = vunpack.c.l.b16 %v1068
    %v1985 = vunpack.c.h.b16 %v1068
    %v1986 = vunpack.c.l.b16 %v1069
    %v1987 = vunpack.c.h.b16 %v1069
    %v1988 = vunpack.c.l.b16 %v1070
    %v1989 = vunpack.c.h.b16 %v1070
    %v1990 = vunpack.c.l.b16 %v1071
    %v1991 = vunpack.c.h.b16 %v1071
    %v1992 = vunpack.c.l.b16 %v1072
    %v1993 = vunpack.c.h.b16 %v1072
    %v1994 = vunpack.c.l.b16 %v1073
    %v1995 = vunpack.c.h.b16 %v1073
    %v1996 = vunpack.c.l.b16 %v1074
    %v1997 = vunpack.c.h.b16 %v1074
    %v1998 = vunpack.c.l.b16 %v1075
    %v1999 = vunpack.c.h.b16 %v1075
    %v2000 = vunpack.c.l.b16 %v1076
    %v2001 = vunpack.c.h.b16 %v1076
    %v2002 = vunpack.c.l.b16 %v1077
    %v2003 = vunpack.c.h.b16 %v1077
    %v2004 = vunpack.c.l.b16 %v1078
    %v2005 = vunpack.c.h.b16 %v1078
    %v2006 = vunpack.c.l.b16 %v1079
    %v2007 = vunpack.c.h.b16 %v1079
    %v2008 = vunpack.c.l.b16 %v1080
    %v2009 = vunpack.c.h.b16 %v1080
    %v2010 = vunpack.c.l.b16 %v1081
    %v2011 = vunpack.c.h.b16 %v1081
    %v2012 = vunpack.c.l.b16 %v1082
    %v2013 = vunpack.c.h.b16 %v1082
    %v2014 = vunpack.c.l.b16 %v1083
    %v2015 = vunpack.c.h.b16 %v1083
    %v2016 = vunpack.c.l.b16 %v1084
    %v2017 = vunpack.c.h.b16 %v1084
    %v2018 = vunpack.c.l.b16 %v1085
    %v2019 = vunpack.c.h.b16 %v1085
    %v2020 = vunpack.c.l.b16 %v1086
    %v2021 = vunpack.c.h.b16 %v1086
    %v2022 = vunpack.c.l.b16 %v1087
    %v2023 = vunpack.c.h.b16 %v1087
    %v2024 = vunpack.c.l.b16 %v1088
    %v2025 = vunpack.c.h.b16 %v1088
    %v2026 = vunpack.c.l.b16 %v1089
    %v2027 = vunpack.c.h.b16 %v1089
    %v2028 = vunpack.c.l.b16 %v1090
    %v2029 = vunpack.c.h.b16 %v1090
    %v2030 = vpack.c.b16 %v1968, %v1966
    %v2031 = vpack.c.b16 %v1969, %v1967
    %v2032 = vpack.c.b16 %v1972, %v1970
    %v2033 = vpack.c.b16 %v1973, %v1971
    %v2034 = vpack.c.b16 %v1976, %v1974
    %v2035 = vpack.c.b16 %v1977, %v1975
    %v2036 = vpack.c.b16 %v1980, %v1978
    %v2037 = vpack.c.b16 %v1981, %v1979
    %v2038 = vpack.c.b16 %v1984, %v1982
    %v2039 = vpack.c.b16 %v1985, %v1983
    %v2040 = vpack.c.b16 %v1988, %v1986
    %v2041 = vpack.c.b16 %v1989, %v1987
    %v2042 = vpack.c.b16 %v1992, %v1990
    %v2043 = vpack.c.b16 %v1993, %v1991
    %v2044 = vpack.c.b16 %v1996, %v1994
    %v2045 = vpack.c.b16 %v1997, %v1995
    %v2046 = vpack.c.b16 %v2000, %v1998
    %v2047 = vpack.c.b16 %v2001, %v1999
    %v2048 = vpack.c.b16 %v2004, %v2002
    %v2049 = vpack.c.b16 %v2005, %v2003
    %v2050 = vpack.c.b16 %v2008, %v2006
    %v2051 = vpack.c.b16 %v2009, %v2007
    %v2052 = vpack.c.b16 %v2012, %v2010
    %v2053 = vpack.c.b16 %v2013, %v2011
    %v2054 = vpack.c.b16 %v2016, %v2014
    %v2055 = vpack.c.b16 %v2017, %v2015
    %v2056 = vpack.c.b16 %v2020, %v2018
    %v2057 = vpack.c.b16 %v2021, %v2019
    %v2058 = vpack.c.b16 %v2024, %v2022
    %v2059 = vpack.c.b16 %v2025, %v2023
    %v2060 = vpack.c.b16 %v2028, %v2026
    %v2061 = vpack.c.b16 %v2029, %v2027
    %v2158 = vunpack.c.l.b16 %v1870
    %v2159 = vunpack.c.h.b16 %v1870
    %v2160 = vunpack.c.l.b16 %v1871
    %v2161 = vunpack.c.h.b16 %v1871
    %v2162 = vunpack.c.l.b16 %v1872
    %v2163 = vunpack.c.h.b16 %v1872
    %v2164 = vunpack.c.l.b16 %v1873
    %v2165 = vunpack.c.h.b16 %v1873
    %v2166 = vunpack.c.l.b16 %v1874
    %v2167 = vunpack.c.h.b16 %v1874
    %v2168 = vunpack.c.l.b16 %v1875
    %v2169 = vunpack.c.h.b16 %v1875
    %v2170 = vunpack.c.l.b16 %v1876
    %v2171 = vunpack.c.h.b16 %v1876
    %v2172 = vunpack.c.l.b16 %v1877
    %v2173 = vunpack.c.h.b16 %v1877
    %v2174 = vunpack.c.l.b16 %v1878
    %v2175 = vunpack.c.h.b16 %v1878
    %v2176 = vunpack.c.l.b16 %v1879
    %v2177 = vunpack.c.h.b16 %v1879
    %v2178 = vunpack.c.l.b16 %v1880
    %v2179 = vunpack.c.h.b16 %v1880
    %v2180 = vunpack.c.l.b16 %v1881
    %v2181 = vunpack.c.h.b16 %v1881
    %v2182 = vunpack.c.l.b16 %v1882
    %v2183 = vunpack.c.h.b16 %v1882
    %v2184 = vunpack.c.l.b16 %v1883
    %v2185 = vunpack.c.h.b16 %v1883
    %v2186 = vunpack.c.l.b16 %v1884
    %v2187 = vunpack.c.h.b16 %v1884
    %v2188 = vunpack.c.l.b16 %v1885
    %v2189 = vunpack.c.h.b16 %v1885
    %v2190 = vunpack.c.l.b16 %v1886
    %v2191 = vunpack.c.h.b16 %v1886
    %v2192 = vunpack.c.l.b16 %v1887
    %v2193 = vunpack.c.h.b16 %v1887
    %v2194 = vunpack.c.l.b16 %v1888
    %v2195 = vunpack.c.h.b16 %v1888
    %v2196 = vunpack.c.l.b16 %v1889
    %v2197 = vunpack.c.h.b16 %v1889
    %v2198 = vunpack.c.l.b16 %v1890
    %v2199 = vunpack.c.h.b16 %v1890
    %v2200 = vunpack.c.l.b16 %v1891
    %v2201 = vunpack.c.h.b16 %v1891
    %v2202 = vunpack.c.l.b16 %v1892
    %v2203 = vunpack.c.h.b16 %v1892
    %v2204 = vunpack.c.l.b16 %v1893
    %v2205 = vunpack.c.h.b16 %v1893
    %v2206 = vunpack.c.l.b16 %v1894
    %v2207 = vunpack.c.h.b16 %v1894
    %v2208 = vunpack.c.l.b16 %v1895
    %v2209 = vunpack.c.h.b16 %v1895
    %v2210 = vunpack.c.l.b16 %v1896
    %v2211 = vunpack.c.h.b16 %v1896
    %v2212 = vunpack.c.l.b16 %v1897
    %v2213 = vunpack.c.h.b16 %v1897
    %v2214 = vunpack.c.l.b16 %v1898
    %v2215 = vunpack.c.h.b16 %v1898
    %v2216 = vunpack.c.l.b16 %v1899
    %v2217 = vunpack.c.h.b16 %v1899
    %v2218 = vunpack.c.l.b16 %v1900
    %v2219 = vunpack.c.h.b16 %v1900
    %v2220 = vunpack.c.l.b16 %v1901
    %v2221 = vunpack.c.h.b16 %v1901
    %v2222 = vunpack.c.l.b16 %v1902
    %v2223 = vunpack.c.h.b16 %v1902
    %v2224 = vunpack.c.l.b16 %v1903
    %v2225 = vunpack.c.h.b16 %v1903
    %v2226 = vunpack.c.l.b16 %v1904
    %v2227 = vunpack.c.h.b16 %v1904
    %v2228 = vunpack.c.l.b16 %v1905
    %v2229 = vunpack.c.h.b16 %v1905
    %v2230 = vunpack.c.l.b16 %v1906
    %v2231 = vunpack.c.h.b16 %v1906
    %v2232 = vunpack.c.l.b16 %v1907
    %v2233 = vunpack.c.h.b16 %v1907
    %v2234 = vunpack.c.l.b16 %v1908
    %v2235 = vunpack.c.h.b16 %v1908
    %v2236 = vunpack.c.l.b16 %v1909
    %v2237 = vunpack.c.h.b16 %v1909
    %v2238 = vunpack.c.l.b16 %v1910
    %v2239 = vunpack.c.h.b16 %v1910
    %v2240 = vunpack.c.l.b16 %v1911
    %v2241 = vunpack.c.h.b16 %v1911
    %v2242 = vunpack.c.l.b16 %v1912
    %v2243 = vunpack.c.h.b16 %v1912
    %v2244 = vunpack.c.l.b16 %v1913
    %v2245 = vunpack.c.h.b16 %v1913
    %v2246 = vunpack.c.l.b16 %v1914
    %v2247 = vunpack.c.h.b16 %v1914
    %v2248 = vunpack.c.l.b16 %v1915
    %v2249 = vunpack.c.h.b16 %v1915
    %v2250 = vunpack.c.l.b16 %v1916
    %v2251 = vunpack.c.h.b16 %v1916
    %v2252 = vunpack.c.l.b16 %v1917
    %v2253 = vunpack.c.h.b16 %v1917
    %v2254 = vunpack.c.l.b16 %v1918
    %v2255 = vunpack.c.h.b16 %v1918
    %v2256 = vunpack.c.l.b16 %v1919
    %v2257 = vunpack.c.h.b16 %v1919
    %v2258 = vunpack.c.l.b16 %v1920
    %v2259 = vunpack.c.h.b16 %v1920
    %v2260 = vunpack.c.l.b16 %v1921
    %v2261 = vunpack.c.h.b16 %v1921
    %v2262 = vunpack.c.l.b16 %v1922
    %v2263 = vunpack.c.h.b16 %v1922
    %v2264 = vunpack.c.l.b16 %v1923
    %v2265 = vunpack.c.h.b16 %v1923
    %v2266 = vunpack.c.l.b16 %v1924
    %v2267 = vunpack.c.h.b16 %v1924
    %v2268 = vunpack.c.l.b16 %v1925
    %v2269 = vunpack.c.h.b16 %v1925
    %v2270 = vunpack.c.l.b16 %v1926
    %v2271 = vunpack.c.h.b16 %v1926
    %v2272 = vunpack.c.l.b16 %v1927
    %v2273 = vunpack.c.h.b16 %v1927
    %v2274 = vunpack.c.l.b16 %v1928
    %v2275 = vunpack.c.h.b16 %v1928
    %v2276 = vunpack.c.l.b16 %v1929
    %v2277 = vunpack.c.h.b16 %v1929
    %v2278 = vunpack.c.l.b16 %v1930
    %v2279 = vunpack.c.h.b16 %v1930
    %v2280 = vunpack.c.l.b16 %v1931
    %v2281 = vunpack.c.h.b16 %v1931
    %v2282 = vunpack.c.l.b16 %v1932
    %v2283 = vunpack.c.h.b16 %v1932
    %v2284 = vunpack.c.l.b16 %v1933
    %v2285 = vunpack.c.h.b16 %v1933
    %v2286 = vpack.c.b16 %v2162, %v2158
    %v2287 = vpack.c.b16 %v2163, %v2159
    %v2288 = vpack.c.b16 %v2164, %v2160
    %v2289 = vpack.c.b16 %v2165, %v2161
    %v2290 = vpack.c.b16 %v2170, %v2166
    %v2291 = vpack.c.b16 %v2171, %v2167
    %v2292 = vpack.c.b16 %v2172, %v2168
    %v2293 = vpack.c.b16 %v2173, %v2169
    %v2294 = vpack.c.b16 %v2178, %v2174
    %v2295 = vpack.c.b16 %v2179, %v2175
    %v2296 = vpack.c.b16 %v2180, %v2176
    %v2297 = vpack.c.b16 %v2181, %v2177
    %v2298 = vpack.c.b16 %v2186, %v2182
    %v2299 = vpack.c.b16 %v2187, %v2183
    %v2300 = vpack.c.b16 %v2188, %v2184
    %v2301 = vpack.c.b16 %v2189, %v2185
    %v2302 = vpack.c.b16 %v2194, %v2190
    %v2303 = vpack.c.b16 %v2195, %v2191
    %v2304 = vpack.c.b16 %v2196, %v2192
    %v2305 = vpack.c.b16 %v2197, %v2193
    %v2306 = vpack.c.b16 %v2202, %v2198
    %v2307 = vpack.c.b16 %v2203, %v2199
    %v2308 = vpack.c.b16 %v2204, %v2200
    %v2309 = vpack.c.b16 %v2205, %v2201
    %v2310 = vpack.c.b16 %v2210, %v2206
    %v2311 = vpack.c.b16 %v2211, %v2207
    %v2312 = vpack.c.b16 %v2212, %v2208
    %v2313 = vpack.c.b16 %v2213, %v2209
    %v2314 = vpack.c.b16 %v2218, %v2214
    %v2315 = vpack.c.b16 %v2219, %v2215
    %v2316 = vpack.c.b16 %v2220, %v2216
    %v2317 = vpack.c.b16 %v2221, %v2217
    %v2318 = vpack.c.b16 %v2226, %v2222
    %v2319 = vpack.c.b16 %v2227, %v2223
    %v2320 = vpack.c.b16 %v2228, %v2224
    %v2321 = vpack.c.b16 %v2229, %v2225
    %v2322 = vpack.c.b16 %v2234, %v2230
    %v2323 = vpack.c.b16 %v2235, %v2231
    %v2324 = vpack.c.b16 %v2236, %v2232
    %v2325 = vpack.c.b16 %v2237, %v2233
    %v2326 = vpack.c.b16 %v2242, %v2238
    %v2327 = vpack.c.b16 %v2243, %v2239
    %v2328 = vpack.c.b16 %v2244, %v2240
    %v2329 = vpack.c.b16 %v2245, %v2241
    %v2330 = vpack.c.b16 %v2250, %v2246
    %v2331 = vpack.c.b16 %v2251, %v2247
    %v2332 = vpack.c.b16 %v2252, %v2248
    %v2333 = vpack.c.b16 %v2253, %v2249
    %v2334 = vpack.c.b16 %v2258, %v2254
    %v2335 = vpack.c.b16 %v2259, %v2255
    %v2336 = vpack.c.b16 %v2260, %v2256
    %v2337 = vpack.c.b16 %v2261, %v2257
    %v2338 = vpack.c.b16 %v2266, %v2262
    %v2339 = vpack.c.b16 %v2267, %v2263
    %v2340 = vpack.c.b16 %v2268, %v2264
    %v2341 = vpack.c.b16 %v2269, %v2265
    %v2342 = vpack.c.b16 %v2274, %v2270
    %v2343 = vpack.c.b16 %v2275, %v2271
    %v2344 = vpack.c.b16 %v2276, %v2272
    %v2345 = vpack.c.b16 %v2277, %v2273
    %v2346 = vpack.c.b16 %v2282, %v2278
    %v2347 = vpack.c.b16 %v2283, %v2279
    %v2348 = vpack.c.b16 %v2284, %v2280
    %v2349 = vpack.c.b16 %v2285, %v2281
    %2414 = vmatpush.bf16.msra.mxu0 %v2314
    %2415 = vmatpush.bf16.msra.mxu0 %v2310
    %2416 = vmatpush.bf16.msra.mxu0 %v2306
    %2417 = vmatpush.bf16.msra.mxu0 %v2302
    %2418 = vmatpush.bf16.msra.mxu0 %v2298
    %2419 = vmatpush.bf16.msra.mxu0 %v2294
    %2420 = vmatpush.bf16.msra.mxu0 %v2290
    %2421 = vmatpush.bf16.msra.mxu0 %v2286
    %2422 = vmatmul.bf16.gmra.mxu0 %v2030
    %v2423 = vpop.f32.mrf.mxu0
    %v2424 = vadd.f32 0.0, %v2423
    %v2425 = vpop.f32.mrf.mxu0
    %v2426 = vadd.f32 0.0, %v2425
    %2427 = vmatmul.bf16.gmra.mxu0 %v2032
    %v2428 = vpop.f32.mrf.mxu0
    %v2429 = vadd.f32 0.0, %v2428
    %v2430 = vpop.f32.mrf.mxu0
    %v2431 = vadd.f32 0.0, %v2430
    %2432 = vmatmul.bf16.gmra.mxu0 %v2034
    %v2433 = vpop.f32.mrf.mxu0
    %v2434 = vadd.f32 0.0, %v2433
    %v2435 = vpop.f32.mrf.mxu0
    %v2436 = vadd.f32 0.0, %v2435
    %2437 = vmatmul.bf16.gmra.mxu0 %v2036
    %v2438 = vpop.f32.mrf.mxu0
    %v2439 = vadd.f32 0.0, %v2438
    %v2440 = vpop.f32.mrf.mxu0
    %v2441 = vadd.f32 0.0, %v2440
    %2442 = vmatmul.bf16.gmra.mxu0 %v2038
    %v2443 = vpop.f32.mrf.mxu0
    %v2444 = vadd.f32 0.0, %v2443
    %v2445 = vpop.f32.mrf.mxu0
    %v2446 = vadd.f32 0.0, %v2445
    %2447 = vmatmul.bf16.gmra.mxu0 %v2040
    %v2448 = vpop.f32.mrf.mxu0
    %v2449 = vadd.f32 0.0, %v2448
    %v2450 = vpop.f32.mrf.mxu0
    %v2451 = vadd.f32 0.0, %v2450
    %2452 = vmatmul.bf16.gmra.mxu0 %v2042
    %v2453 = vpop.f32.mrf.mxu0
    %v2454 = vadd.f32 0.0, %v2453
    %v2455 = vpop.f32.mrf.mxu0
    %v2456 = vadd.f32 0.0, %v2455
    %2457 = vmatmul.bf16.gmra.mxu0 %v2044
    %v2458 = vpop.f32.mrf.mxu0
    %v2459 = vadd.f32 0.0, %v2458
    %v2460 = vpop.f32.mrf.mxu0
    %v2461 = vadd.f32 0.0, %v2460
    %2462 = vmatmul.bf16.gmra.mxu0 %v2046
    %v2463 = vpop.f32.mrf.mxu0
    %v2464 = vadd.f32 0.0, %v2463
    %v2465 = vpop.f32.mrf.mxu0
    %v2466 = vadd.f32 0.0, %v2465
    %2467 = vmatmul.bf16.gmra.mxu0 %v2048
    %v2468 = vpop.f32.mrf.mxu0
    %v2469 = vadd.f32 0.0, %v2468
    %v2470 = vpop.f32.mrf.mxu0
    %v2471 = vadd.f32 0.0, %v2470
    %2472 = vmatmul.bf16.gmra.mxu0 %v2050
    %v2473 = vpop.f32.mrf.mxu0
    %v2474 = vadd.f32 0.0, %v2473
    %v2475 = vpop.f32.mrf.mxu0
    %v2476 = vadd.f32 0.0, %v2475
    %2477 = vmatmul.bf16.gmra.mxu0 %v2052
    %v2478 = vpop.f32.mrf.mxu0
    %v2479 = vadd.f32 0.0, %v2478
    %v2480 = vpop.f32.mrf.mxu0
    %v2481 = vadd.f32 0.0, %v2480
    %2482 = vmatmul.bf16.gmra.mxu0 %v2054
    %v2483 = vpop.f32.mrf.mxu0
    %v2484 = vadd.f32 0.0, %v2483
    %v2485 = vpop.f32.mrf.mxu0
    %v2486 = vadd.f32 0.0, %v2485
    %2487 = vmatmul.bf16.gmra.mxu0 %v2056
    %v2488 = vpop.f32.mrf.mxu0
    %v2489 = vadd.f32 0.0, %v2488
    %v2490 = vpop.f32.mrf.mxu0
    %v2491 = vadd.f32 0.0, %v2490
    %2492 = vmatmul.bf16.gmra.mxu0 %v2058
    %v2493 = vpop.f32.mrf.mxu0
    %v2494 = vadd.f32 0.0, %v2493
    %v2495 = vpop.f32.mrf.mxu0
    %v2496 = vadd.f32 0.0, %v2495
    %2497 = vmatmul.bf16.gmra.mxu0 %v2060
    %v2498 = vpop.f32.mrf.mxu0
    %v2499 = vadd.f32 0.0, %v2498
    %v2500 = vpop.f32.mrf.mxu0
    %v2501 = vadd.f32 0.0, %v2500
    %2502 = vdwg.mxu0
    %2503 = vmatpush.bf16.msra.mxu0 %v2346
    %2504 = vmatpush.bf16.msra.mxu0 %v2342
    %2505 = vmatpush.bf16.msra.mxu0 %v2338
    %2506 = vmatpush.bf16.msra.mxu0 %v2334
    %2507 = vmatpush.bf16.msra.mxu0 %v2330
    %2508 = vmatpush.bf16.msra.mxu0 %v2326
    %2509 = vmatpush.bf16.msra.mxu0 %v2322
    %2510 = vmatpush.bf16.msra.mxu0 %v2318
    %2511 = vmatmul.bf16.gmra.mxu0 %v2031
    %v2512 = vpop.f32.mrf.mxu0
    %v2513 = vadd.f32 %v2424, %v2512
    %v2514 = vpop.f32.mrf.mxu0
    %v2515 = vadd.f32 %v2426, %v2514
    %2516 = vmatmul.bf16.gmra.mxu0 %v2033
    %v2517 = vpop.f32.mrf.mxu0
    %v2518 = vadd.f32 %v2429, %v2517
    %v2519 = vpop.f32.mrf.mxu0
    %v2520 = vadd.f32 %v2431, %v2519
    %2521 = vmatmul.bf16.gmra.mxu0 %v2035
    %v2522 = vpop.f32.mrf.mxu0
    %v2523 = vadd.f32 %v2434, %v2522
    %v2524 = vpop.f32.mrf.mxu0
    %v2525 = vadd.f32 %v2436, %v2524
    %2526 = vmatmul.bf16.gmra.mxu0 %v2037
    %v2527 = vpop.f32.mrf.mxu0
    %v2528 = vadd.f32 %v2439, %v2527
    %v2529 = vpop.f32.mrf.mxu0
    %v2530 = vadd.f32 %v2441, %v2529
    %2531 = vmatmul.bf16.gmra.mxu0 %v2039
    %v2532 = vpop.f32.mrf.mxu0
    %v2533 = vadd.f32 %v2444, %v2532
    %v2534 = vpop.f32.mrf.mxu0
    %v2535 = vadd.f32 %v2446, %v2534
    %2536 = vmatmul.bf16.gmra.mxu0 %v2041
    %v2537 = vpop.f32.mrf.mxu0
    %v2538 = vadd.f32 %v2449, %v2537
    %v2539 = vpop.f32.mrf.mxu0
    %v2540 = vadd.f32 %v2451, %v2539
    %2541 = vmatmul.bf16.gmra.mxu0 %v2043
    %v2542 = vpop.f32.mrf.mxu0
    %v2543 = vadd.f32 %v2454, %v2542
    %v2544 = vpop.f32.mrf.mxu0
    %v2545 = vadd.f32 %v2456, %v2544
    %2546 = vmatmul.bf16.gmra.mxu0 %v2045
    %v2547 = vpop.f32.mrf.mxu0
    %v2548 = vadd.f32 %v2459, %v2547
    %v2549 = vpop.f32.mrf.mxu0
    %v2550 = vadd.f32 %v2461, %v2549
    %2551 = vmatmul.bf16.gmra.mxu0 %v2047
    %v2552 = vpop.f32.mrf.mxu0
    %v2553 = vadd.f32 %v2464, %v2552
    %v2554 = vpop.f32.mrf.mxu0
    %v2555 = vadd.f32 %v2466, %v2554
    %2556 = vmatmul.bf16.gmra.mxu0 %v2049
    %v2557 = vpop.f32.mrf.mxu0
    %v2558 = vadd.f32 %v2469, %v2557
    %v2559 = vpop.f32.mrf.mxu0
    %v2560 = vadd.f32 %v2471, %v2559
    %2561 = vmatmul.bf16.gmra.mxu0 %v2051
    %v2562 = vpop.f32.mrf.mxu0
    %v2563 = vadd.f32 %v2474, %v2562
    %v2564 = vpop.f32.mrf.mxu0
    %v2565 = vadd.f32 %v2476, %v2564
    %2566 = vmatmul.bf16.gmra.mxu0 %v2053
    %v2567 = vpop.f32.mrf.mxu0
    %v2568 = vadd.f32 %v2479, %v2567
    %v2569 = vpop.f32.mrf.mxu0
    %v2570 = vadd.f32 %v2481, %v2569
    %2571 = vmatmul.bf16.gmra.mxu0 %v2055
    %v2572 = vpop.f32.mrf.mxu0
    %v2573 = vadd.f32 %v2484, %v2572
    %v2574 = vpop.f32.mrf.mxu0
    %v2575 = vadd.f32 %v2486, %v2574
    %2576 = vmatmul.bf16.gmra.mxu0 %v2057
    %v2577 = vpop.f32.mrf.mxu0
    %v2578 = vadd.f32 %v2489, %v2577
    %v2579 = vpop.f32.mrf.mxu0
    %v2580 = vadd.f32 %v2491, %v2579
    %2581 = vmatmul.bf16.gmra.mxu0 %v2059
    %v2582 = vpop.f32.mrf.mxu0
    %v2583 = vadd.f32 %v2494, %v2582
    %v2584 = vpop.f32.mrf.mxu0
    %v2585 = vadd.f32 %v2496, %v2584
    %2586 = vmatmul.bf16.gmra.mxu0 %v2061
    %v2587 = vpop.f32.mrf.mxu0
    %v2588 = vadd.f32 %v2499, %v2587
    %v2589 = vpop.f32.mrf.mxu0
    %v2590 = vadd.f32 %v2501, %v2589
    %2591 = vdwg.mxu0
    %2592 = vmatpush.bf16.msra.mxu0 %v2315
    %2593 = vmatpush.bf16.msra.mxu0 %v2311
    %2594 = vmatpush.bf16.msra.mxu0 %v2307
    %2595 = vmatpush.bf16.msra.mxu0 %v2303
    %2596 = vmatpush.bf16.msra.mxu0 %v2299
    %2597 = vmatpush.bf16.msra.mxu0 %v2295
    %2598 = vmatpush.bf16.msra.mxu0 %v2291
    %2599 = vmatpush.bf16.msra.mxu0 %v2287
    %2600 = vmatmul.bf16.gmra.mxu0 %v2030
    %v2601 = vpop.f32.mrf.mxu0
    %v2602 = vadd.f32 0.0, %v2601
    %v2603 = vpop.f32.mrf.mxu0
    %v2604 = vadd.f32 0.0, %v2603
    %2605 = vmatmul.bf16.gmra.mxu0 %v2032
    %v2606 = vpop.f32.mrf.mxu0
    %v2607 = vadd.f32 0.0, %v2606
    %v2608 = vpop.f32.mrf.mxu0
    %v2609 = vadd.f32 0.0, %v2608
    %2610 = vmatmul.bf16.gmra.mxu0 %v2034
    %v2611 = vpop.f32.mrf.mxu0
    %v2612 = vadd.f32 0.0, %v2611
    %v2613 = vpop.f32.mrf.mxu0
    %v2614 = vadd.f32 0.0, %v2613
    %2615 = vmatmul.bf16.gmra.mxu0 %v2036
    %v2616 = vpop.f32.mrf.mxu0
    %v2617 = vadd.f32 0.0, %v2616
    %v2618 = vpop.f32.mrf.mxu0
    %v2619 = vadd.f32 0.0, %v2618
    %2620 = vmatmul.bf16.gmra.mxu0 %v2038
    %v2621 = vpop.f32.mrf.mxu0
    %v2622 = vadd.f32 0.0, %v2621
    %v2623 = vpop.f32.mrf.mxu0
    %v2624 = vadd.f32 0.0, %v2623
    %2625 = vmatmul.bf16.gmra.mxu0 %v2040
    %v2626 = vpop.f32.mrf.mxu0
    %v2627 = vadd.f32 0.0, %v2626
    %v2628 = vpop.f32.mrf.mxu0
    %v2629 = vadd.f32 0.0, %v2628
    %2630 = vmatmul.bf16.gmra.mxu0 %v2042
    %v2631 = vpop.f32.mrf.mxu0
    %v2632 = vadd.f32 0.0, %v2631
    %v2633 = vpop.f32.mrf.mxu0
    %v2634 = vadd.f32 0.0, %v2633
    %2635 = vmatmul.bf16.gmra.mxu0 %v2044
    %v2636 = vpop.f32.mrf.mxu0
    %v2637 = vadd.f32 0.0, %v2636
    %v2638 = vpop.f32.mrf.mxu0
    %v2639 = vadd.f32 0.0, %v2638
    %2640 = vmatmul.bf16.gmra.mxu0 %v2046
    %v2641 = vpop.f32.mrf.mxu0
    %v2642 = vadd.f32 0.0, %v2641
    %v2643 = vpop.f32.mrf.mxu0
    %v2644 = vadd.f32 0.0, %v2643
    %2645 = vmatmul.bf16.gmra.mxu0 %v2048
    %v2646 = vpop.f32.mrf.mxu0
    %v2647 = vadd.f32 0.0, %v2646
    %v2648 = vpop.f32.mrf.mxu0
    %v2649 = vadd.f32 0.0, %v2648
    %2650 = vmatmul.bf16.gmra.mxu0 %v2050
    %v2651 = vpop.f32.mrf.mxu0
    %v2652 = vadd.f32 0.0, %v2651
    %v2653 = vpop.f32.mrf.mxu0
    %v2654 = vadd.f32 0.0, %v2653
    %2655 = vmatmul.bf16.gmra.mxu0 %v2052
    %v2656 = vpop.f32.mrf.mxu0
    %v2657 = vadd.f32 0.0, %v2656
    %v2658 = vpop.f32.mrf.mxu0
    %v2659 = vadd.f32 0.0, %v2658
    %2660 = vmatmul.bf16.gmra.mxu0 %v2054
    %v2661 = vpop.f32.mrf.mxu0
    %v2662 = vadd.f32 0.0, %v2661
    %v2663 = vpop.f32.mrf.mxu0
    %v2664 = vadd.f32 0.0, %v2663
    %2665 = vmatmul.bf16.gmra.mxu0 %v2056
    %v2666 = vpop.f32.mrf.mxu0
    %v2667 = vadd.f32 0.0, %v2666
    %v2668 = vpop.f32.mrf.mxu0
    %v2669 = vadd.f32 0.0, %v2668
    %2670 = vmatmul.bf16.gmra.mxu0 %v2058
    %v2671 = vpop.f32.mrf.mxu0
    %v2672 = vadd.f32 0.0, %v2671
    %v2673 = vpop.f32.mrf.mxu0
    %v2674 = vadd.f32 0.0, %v2673
    %2675 = vmatmul.bf16.gmra.mxu0 %v2060
    %v2676 = vpop.f32.mrf.mxu0
    %v2677 = vadd.f32 0.0, %v2676
    %v2678 = vpop.f32.mrf.mxu0
    %v2679 = vadd.f32 0.0, %v2678
    %2680 = vdwg.mxu0
    %2681 = vmatpush.bf16.msra.mxu0 %v2347
    %2682 = vmatpush.bf16.msra.mxu0 %v2343
    %2683 = vmatpush.bf16.msra.mxu0 %v2339
    %2684 = vmatpush.bf16.msra.mxu0 %v2335
    %2685 = vmatpush.bf16.msra.mxu0 %v2331
    %2686 = vmatpush.bf16.msra.mxu0 %v2327
    %2687 = vmatpush.bf16.msra.mxu0 %v2323
    %2688 = vmatpush.bf16.msra.mxu0 %v2319
    %2689 = vmatmul.bf16.gmra.mxu0 %v2031
    %v2690 = vpop.f32.mrf.mxu0
    %v2691 = vadd.f32 %v2602, %v2690
    %v2692 = vpop.f32.mrf.mxu0
    %v2693 = vadd.f32 %v2604, %v2692
    %2694 = vmatmul.bf16.gmra.mxu0 %v2033
    %v2695 = vpop.f32.mrf.mxu0
    %v2696 = vadd.f32 %v2607, %v2695
    %v2697 = vpop.f32.mrf.mxu0
    %v2698 = vadd.f32 %v2609, %v2697
    %2699 = vmatmul.bf16.gmra.mxu0 %v2035
    %v2700 = vpop.f32.mrf.mxu0
    %v2701 = vadd.f32 %v2612, %v2700
    %v2702 = vpop.f32.mrf.mxu0
    %v2703 = vadd.f32 %v2614, %v2702
    %2704 = vmatmul.bf16.gmra.mxu0 %v2037
    %v2705 = vpop.f32.mrf.mxu0
    %v2706 = vadd.f32 %v2617, %v2705
    %v2707 = vpop.f32.mrf.mxu0
    %v2708 = vadd.f32 %v2619, %v2707
    %2709 = vmatmul.bf16.gmra.mxu0 %v2039
    %v2710 = vpop.f32.mrf.mxu0
    %v2711 = vadd.f32 %v2622, %v2710
    %v2712 = vpop.f32.mrf.mxu0
    %v2713 = vadd.f32 %v2624, %v2712
    %2714 = vmatmul.bf16.gmra.mxu0 %v2041
    %v2715 = vpop.f32.mrf.mxu0
    %v2716 = vadd.f32 %v2627, %v2715
    %v2717 = vpop.f32.mrf.mxu0
    %v2718 = vadd.f32 %v2629, %v2717
    %2719 = vmatmul.bf16.gmra.mxu0 %v2043
    %v2720 = vpop.f32.mrf.mxu0
    %v2721 = vadd.f32 %v2632, %v2720
    %v2722 = vpop.f32.mrf.mxu0
    %v2723 = vadd.f32 %v2634, %v2722
    %2724 = vmatmul.bf16.gmra.mxu0 %v2045
    %v2725 = vpop.f32.mrf.mxu0
    %v2726 = vadd.f32 %v2637, %v2725
    %v2727 = vpop.f32.mrf.mxu0
    %v2728 = vadd.f32 %v2639, %v2727
    %2729 = vmatmul.bf16.gmra.mxu0 %v2047
    %v2730 = vpop.f32.mrf.mxu0
    %v2731 = vadd.f32 %v2642, %v2730
    %v2732 = vpop.f32.mrf.mxu0
    %v2733 = vadd.f32 %v2644, %v2732
    %2734 = vmatmul.bf16.gmra.mxu0 %v2049
    %v2735 = vpop.f32.mrf.mxu0
    %v2736 = vadd.f32 %v2647, %v2735
    %v2737 = vpop.f32.mrf.mxu0
    %v2738 = vadd.f32 %v2649, %v2737
    %2739 = vmatmul.bf16.gmra.mxu0 %v2051
    %v2740 = vpop.f32.mrf.mxu0
    %v2741 = vadd.f32 %v2652, %v2740
    %v2742 = vpop.f32.mrf.mxu0
    %v2743 = vadd.f32 %v2654, %v2742
    %2744 = vmatmul.bf16.gmra.mxu0 %v2053
    %v2745 = vpop.f32.mrf.mxu0
    %v2746 = vadd.f32 %v2657, %v2745
    %v2747 = vpop.f32.mrf.mxu0
    %v2748 = vadd.f32 %v2659, %v2747
    %2749 = vmatmul.bf16.gmra.mxu0 %v2055
    %v2750 = vpop.f32.mrf.mxu0
    %v2751 = vadd.f32 %v2662, %v2750
    %v2752 = vpop.f32.mrf.mxu0
    %v2753 = vadd.f32 %v2664, %v2752
    %2754 = vmatmul.bf16.gmra.mxu0 %v2057
    %v2755 = vpop.f32.mrf.mxu0
    %v2756 = vadd.f32 %v2667, %v2755
    %v2757 = vpop.f32.mrf.mxu0
    %v2758 = vadd.f32 %v2669, %v2757
    %2759 = vmatmul.bf16.gmra.mxu0 %v2059
    %v2760 = vpop.f32.mrf.mxu0
    %v2761 = vadd.f32 %v2672, %v2760
    %v2762 = vpop.f32.mrf.mxu0
    %v2763 = vadd.f32 %v2674, %v2762
    %2764 = vmatmul.bf16.gmra.mxu0 %v2061
    %v2765 = vpop.f32.mrf.mxu0
    %v2766 = vadd.f32 %v2677, %v2765
    %v2767 = vpop.f32.mrf.mxu0
    %v2768 = vadd.f32 %v2679, %v2767
    %2769 = vdwg.mxu0
    %2770 = vmatpush.bf16.msra.mxu0 %v2316
    %2771 = vmatpush.bf16.msra.mxu0 %v2312
    %2772 = vmatpush.bf16.msra.mxu0 %v2308
    %2773 = vmatpush.bf16.msra.mxu0 %v2304
    %2774 = vmatpush.bf16.msra.mxu0 %v2300
    %2775 = vmatpush.bf16.msra.mxu0 %v2296
    %2776 = vmatpush.bf16.msra.mxu0 %v2292
    %2777 = vmatpush.bf16.msra.mxu0 %v2288
    %2778 = vmatmul.bf16.gmra.mxu0 %v2030
    %v2779 = vpop.f32.mrf.mxu0
    %v2780 = vadd.f32 0.0, %v2779
    %v2781 = vpop.f32.mrf.mxu0
    %v2782 = vadd.f32 0.0, %v2781
    %2783 = vmatmul.bf16.gmra.mxu0 %v2032
    %v2784 = vpop.f32.mrf.mxu0
    %v2785 = vadd.f32 0.0, %v2784
    %v2786 = vpop.f32.mrf.mxu0
    %v2787 = vadd.f32 0.0, %v2786
    %2788 = vmatmul.bf16.gmra.mxu0 %v2034
    %v2789 = vpop.f32.mrf.mxu0
    %v2790 = vadd.f32 0.0, %v2789
    %v2791 = vpop.f32.mrf.mxu0
    %v2792 = vadd.f32 0.0, %v2791
    %2793 = vmatmul.bf16.gmra.mxu0 %v2036
    %v2794 = vpop.f32.mrf.mxu0
    %v2795 = vadd.f32 0.0, %v2794
    %v2796 = vpop.f32.mrf.mxu0
    %v2797 = vadd.f32 0.0, %v2796
    %2798 = vmatmul.bf16.gmra.mxu0 %v2038
    %v2799 = vpop.f32.mrf.mxu0
    %v2800 = vadd.f32 0.0, %v2799
    %v2801 = vpop.f32.mrf.mxu0
    %v2802 = vadd.f32 0.0, %v2801
    %2803 = vmatmul.bf16.gmra.mxu0 %v2040
    %v2804 = vpop.f32.mrf.mxu0
    %v2805 = vadd.f32 0.0, %v2804
    %v2806 = vpop.f32.mrf.mxu0
    %v2807 = vadd.f32 0.0, %v2806
    %2808 = vmatmul.bf16.gmra.mxu0 %v2042
    %v2809 = vpop.f32.mrf.mxu0
    %v2810 = vadd.f32 0.0, %v2809
    %v2811 = vpop.f32.mrf.mxu0
    %v2812 = vadd.f32 0.0, %v2811
    %2813 = vmatmul.bf16.gmra.mxu0 %v2044
    %v2814 = vpop.f32.mrf.mxu0
    %v2815 = vadd.f32 0.0, %v2814
    %v2816 = vpop.f32.mrf.mxu0
    %v2817 = vadd.f32 0.0, %v2816
    %2818 = vmatmul.bf16.gmra.mxu0 %v2046
    %v2819 = vpop.f32.mrf.mxu0
    %v2820 = vadd.f32 0.0, %v2819
    %v2821 = vpop.f32.mrf.mxu0
    %v2822 = vadd.f32 0.0, %v2821
    %2823 = vmatmul.bf16.gmra.mxu0 %v2048
    %v2824 = vpop.f32.mrf.mxu0
    %v2825 = vadd.f32 0.0, %v2824
    %v2826 = vpop.f32.mrf.mxu0
    %v2827 = vadd.f32 0.0, %v2826
    %2828 = vmatmul.bf16.gmra.mxu0 %v2050
    %v2829 = vpop.f32.mrf.mxu0
    %v2830 = vadd.f32 0.0, %v2829
    %v2831 = vpop.f32.mrf.mxu0
    %v2832 = vadd.f32 0.0, %v2831
    %2833 = vmatmul.bf16.gmra.mxu0 %v2052
    %v2834 = vpop.f32.mrf.mxu0
    %v2835 = vadd.f32 0.0, %v2834
    %v2836 = vpop.f32.mrf.mxu0
    %v2837 = vadd.f32 0.0, %v2836
    %2838 = vmatmul.bf16.gmra.mxu0 %v2054
    %v2839 = vpop.f32.mrf.mxu0
    %v2840 = vadd.f32 0.0, %v2839
    %v2841 = vpop.f32.mrf.mxu0
    %v2842 = vadd.f32 0.0, %v2841
    %2843 = vmatmul.bf16.gmra.mxu0 %v2056
    %v2844 = vpop.f32.mrf.mxu0
    %v2845 = vadd.f32 0.0, %v2844
    %v2846 = vpop.f32.mrf.mxu0
    %v2847 = vadd.f32 0.0, %v2846
    %2848 = vmatmul.bf16.gmra.mxu0 %v2058
    %v2849 = vpop.f32.mrf.mxu0
    %v2850 = vadd.f32 0.0, %v2849
    %v2851 = vpop.f32.mrf.mxu0
    %v2852 = vadd.f32 0.0, %v2851
    %2853 = vmatmul.bf16.gmra.mxu0 %v2060
    %v2854 = vpop.f32.mrf.mxu0
    %v2855 = vadd.f32 0.0, %v2854
    %v2856 = vpop.f32.mrf.mxu0
    %v2857 = vadd.f32 0.0, %v2856
    %2858 = vdwg.mxu0
    %2859 = vmatpush.bf16.msra.mxu0 %v2348
    %2860 = vmatpush.bf16.msra.mxu0 %v2344
    %2861 = vmatpush.bf16.msra.mxu0 %v2340
    %2862 = vmatpush.bf16.msra.mxu0 %v2336
    %2863 = vmatpush.bf16.msra.mxu0 %v2332
    %2864 = vmatpush.bf16.msra.mxu0 %v2328
    %2865 = vmatpush.bf16.msra.mxu0 %v2324
    %2866 = vmatpush.bf16.msra.mxu0 %v2320
    %2867 = vmatmul.bf16.gmra.mxu0 %v2031
    %v2868 = vpop.f32.mrf.mxu0
    %v2869 = vadd.f32 %v2780, %v2868
    %v2870 = vpop.f32.mrf.mxu0
    %v2871 = vadd.f32 %v2782, %v2870
    %2872 = vmatmul.bf16.gmra.mxu0 %v2033
    %v2873 = vpop.f32.mrf.mxu0
    %v2874 = vadd.f32 %v2785, %v2873
    %v2875 = vpop.f32.mrf.mxu0
    %v2876 = vadd.f32 %v2787, %v2875
    %2877 = vmatmul.bf16.gmra.mxu0 %v2035
    %v2878 = vpop.f32.mrf.mxu0
    %v2879 = vadd.f32 %v2790, %v2878
    %v2880 = vpop.f32.mrf.mxu0
    %v2881 = vadd.f32 %v2792, %v2880
    %2882 = vmatmul.bf16.gmra.mxu0 %v2037
    %v2883 = vpop.f32.mrf.mxu0
    %v2884 = vadd.f32 %v2795, %v2883
    %v2885 = vpop.f32.mrf.mxu0
    %v2886 = vadd.f32 %v2797, %v2885
    %2887 = vmatmul.bf16.gmra.mxu0 %v2039
    %v2888 = vpop.f32.mrf.mxu0
    %v2889 = vadd.f32 %v2800, %v2888
    %v2890 = vpop.f32.mrf.mxu0
    %v2891 = vadd.f32 %v2802, %v2890
    %2892 = vmatmul.bf16.gmra.mxu0 %v2041
    %v2893 = vpop.f32.mrf.mxu0
    %v2894 = vadd.f32 %v2805, %v2893
    %v2895 = vpop.f32.mrf.mxu0
    %v2896 = vadd.f32 %v2807, %v2895
    %2897 = vmatmul.bf16.gmra.mxu0 %v2043
    %v2898 = vpop.f32.mrf.mxu0
    %v2899 = vadd.f32 %v2810, %v2898
    %v2900 = vpop.f32.mrf.mxu0
    %v2901 = vadd.f32 %v2812, %v2900
    %2902 = vmatmul.bf16.gmra.mxu0 %v2045
    %v2903 = vpop.f32.mrf.mxu0
    %v2904 = vadd.f32 %v2815, %v2903
    %v2905 = vpop.f32.mrf.mxu0
    %v2906 = vadd.f32 %v2817, %v2905
    %2907 = vmatmul.bf16.gmra.mxu0 %v2047
    %v2908 = vpop.f32.mrf.mxu0
    %v2909 = vadd.f32 %v2820, %v2908
    %v2910 = vpop.f32.mrf.mxu0
    %v2911 = vadd.f32 %v2822, %v2910
    %2912 = vmatmul.bf16.gmra.mxu0 %v2049
    %v2913 = vpop.f32.mrf.mxu0
    %v2914 = vadd.f32 %v2825, %v2913
    %v2915 = vpop.f32.mrf.mxu0
    %v2916 = vadd.f32 %v2827, %v2915
    %2917 = vmatmul.bf16.gmra.mxu0 %v2051
    %v2918 = vpop.f32.mrf.mxu0
    %v2919 = vadd.f32 %v2830, %v2918
    %v2920 = vpop.f32.mrf.mxu0
    %v2921 = vadd.f32 %v2832, %v2920
    %2922 = vmatmul.bf16.gmra.mxu0 %v2053
    %v2923 = vpop.f32.mrf.mxu0
    %v2924 = vadd.f32 %v2835, %v2923
    %v2925 = vpop.f32.mrf.mxu0
    %v2926 = vadd.f32 %v2837, %v2925
    %2927 = vmatmul.bf16.gmra.mxu0 %v2055
    %v2928 = vpop.f32.mrf.mxu0
    %v2929 = vadd.f32 %v2840, %v2928
    %v2930 = vpop.f32.mrf.mxu0
    %v2931 = vadd.f32 %v2842, %v2930
    %2932 = vmatmul.bf16.gmra.mxu0 %v2057
    %v2933 = vpop.f32.mrf.mxu0
    %v2934 = vadd.f32 %v2845, %v2933
    %v2935 = vpop.f32.mrf.mxu0
    %v2936 = vadd.f32 %v2847, %v2935
    %2937 = vmatmul.bf16.gmra.mxu0 %v2059
    %v2938 = vpop.f32.mrf.mxu0
    %v2939 = vadd.f32 %v2850, %v2938
    %v2940 = vpop.f32.mrf.mxu0
    %v2941 = vadd.f32 %v2852, %v2940
    %2942 = vmatmul.bf16.gmra.mxu0 %v2061
    %v2943 = vpop.f32.mrf.mxu0
    %v2944 = vadd.f32 %v2855, %v2943
    %v2945 = vpop.f32.mrf.mxu0
    %v2946 = vadd.f32 %v2857, %v2945
    %2947 = vdwg.mxu0
    %2948 = vmatpush.bf16.msra.mxu0 %v2317
    %2949 = vmatpush.bf16.msra.mxu0 %v2313
    %2950 = vmatpush.bf16.msra.mxu0 %v2309
    %2951 = vmatpush.bf16.msra.mxu0 %v2305
    %2952 = vmatpush.bf16.msra.mxu0 %v2301
    %2953 = vmatpush.bf16.msra.mxu0 %v2297
    %2954 = vmatpush.bf16.msra.mxu0 %v2293
    %2955 = vmatpush.bf16.msra.mxu0 %v2289
    %2956 = vmatmul.bf16.gmra.mxu0 %v2030
    %v2957 = vpop.f32.mrf.mxu0
    %v2958 = vadd.f32 0.0, %v2957
    %v2959 = vpop.f32.mrf.mxu0
    %v2960 = vadd.f32 0.0, %v2959
    %2961 = vmatmul.bf16.gmra.mxu0 %v2032
    %v2962 = vpop.f32.mrf.mxu0
    %v2963 = vadd.f32 0.0, %v2962
    %v2964 = vpop.f32.mrf.mxu0
    %v2965 = vadd.f32 0.0, %v2964
    %2966 = vmatmul.bf16.gmra.mxu0 %v2034
    %v2967 = vpop.f32.mrf.mxu0
    %v2968 = vadd.f32 0.0, %v2967
    %v2969 = vpop.f32.mrf.mxu0
    %v2970 = vadd.f32 0.0, %v2969
    %2971 = vmatmul.bf16.gmra.mxu0 %v2036
    %v2972 = vpop.f32.mrf.mxu0
    %v2973 = vadd.f32 0.0, %v2972
    %v2974 = vpop.f32.mrf.mxu0
    %v2975 = vadd.f32 0.0, %v2974
    %2976 = vmatmul.bf16.gmra.mxu0 %v2038
    %v2977 = vpop.f32.mrf.mxu0
    %v2978 = vadd.f32 0.0, %v2977
    %v2979 = vpop.f32.mrf.mxu0
    %v2980 = vadd.f32 0.0, %v2979
    %2981 = vmatmul.bf16.gmra.mxu0 %v2040
    %v2982 = vpop.f32.mrf.mxu0
    %v2983 = vadd.f32 0.0, %v2982
    %v2984 = vpop.f32.mrf.mxu0
    %v2985 = vadd.f32 0.0, %v2984
    %2986 = vmatmul.bf16.gmra.mxu0 %v2042
    %v2987 = vpop.f32.mrf.mxu0
    %v2988 = vadd.f32 0.0, %v2987
    %v2989 = vpop.f32.mrf.mxu0
    %v2990 = vadd.f32 0.0, %v2989
    %2991 = vmatmul.bf16.gmra.mxu0 %v2044
    %v2992 = vpop.f32.mrf.mxu0
    %v2993 = vadd.f32 0.0, %v2992
    %v2994 = vpop.f32.mrf.mxu0
    %v2995 = vadd.f32 0.0, %v2994
    %2996 = vmatmul.bf16.gmra.mxu0 %v2046
    %v2997 = vpop.f32.mrf.mxu0
    %v2998 = vadd.f32 0.0, %v2997
    %v2999 = vpop.f32.mrf.mxu0
    %v3000 = vadd.f32 0.0, %v2999
    %3001 = vmatmul.bf16.gmra.mxu0 %v2048
    %v3002 = vpop.f32.mrf.mxu0
    %v3003 = vadd.f32 0.0, %v3002
    %v3004 = vpop.f32.mrf.mxu0
    %v3005 = vadd.f32 0.0, %v3004
    %3006 = vmatmul.bf16.gmra.mxu0 %v2050
    %v3007 = vpop.f32.mrf.mxu0
    %v3008 = vadd.f32 0.0, %v3007
    %v3009 = vpop.f32.mrf.mxu0
    %v3010 = vadd.f32 0.0, %v3009
    %3011 = vmatmul.bf16.gmra.mxu0 %v2052
    %v3012 = vpop.f32.mrf.mxu0
    %v3013 = vadd.f32 0.0, %v3012
    %v3014 = vpop.f32.mrf.mxu0
    %v3015 = vadd.f32 0.0, %v3014
    %3016 = vmatmul.bf16.gmra.mxu0 %v2054
    %v3017 = vpop.f32.mrf.mxu0
    %v3018 = vadd.f32 0.0, %v3017
    %v3019 = vpop.f32.mrf.mxu0
    %v3020 = vadd.f32 0.0, %v3019
    %3021 = vmatmul.bf16.gmra.mxu0 %v2056
    %v3022 = vpop.f32.mrf.mxu0
    %v3023 = vadd.f32 0.0, %v3022
    %v3024 = vpop.f32.mrf.mxu0
    %v3025 = vadd.f32 0.0, %v3024
    %3026 = vmatmul.bf16.gmra.mxu0 %v2058
    %v3027 = vpop.f32.mrf.mxu0
    %v3028 = vadd.f32 0.0, %v3027
    %v3029 = vpop.f32.mrf.mxu0
    %v3030 = vadd.f32 0.0, %v3029
    %3031 = vmatmul.bf16.gmra.mxu0 %v2060
    %v3032 = vpop.f32.mrf.mxu0
    %v3033 = vadd.f32 0.0, %v3032
    %v3034 = vpop.f32.mrf.mxu0
    %v3035 = vadd.f32 0.0, %v3034
    %3036 = vdwg.mxu0
    %3037 = vmatpush.bf16.msra.mxu0 %v2349
    %3038 = vmatpush.bf16.msra.mxu0 %v2345
    %3039 = vmatpush.bf16.msra.mxu0 %v2341
    %3040 = vmatpush.bf16.msra.mxu0 %v2337
    %3041 = vmatpush.bf16.msra.mxu0 %v2333
    %3042 = vmatpush.bf16.msra.mxu0 %v2329
    %3043 = vmatpush.bf16.msra.mxu0 %v2325
    %3044 = vmatpush.bf16.msra.mxu0 %v2321
    %3045 = vmatmul.bf16.gmra.mxu0 %v2031
    %v3046 = vpop.f32.mrf.mxu0
    %v3047 = vadd.f32 %v2958, %v3046
    %v3048 = vpop.f32.mrf.mxu0
    %v3049 = vadd.f32 %v2960, %v3048
    %3050 = vmatmul.bf16.gmra.mxu0 %v2033
    %v3051 = vpop.f32.mrf.mxu0
    %v3052 = vadd.f32 %v2963, %v3051
    %v3053 = vpop.f32.mrf.mxu0
    %v3054 = vadd.f32 %v2965, %v3053
    %3055 = vmatmul.bf16.gmra.mxu0 %v2035
    %v3056 = vpop.f32.mrf.mxu0
    %v3057 = vadd.f32 %v2968, %v3056
    %v3058 = vpop.f32.mrf.mxu0
    %v3059 = vadd.f32 %v2970, %v3058
    %3060 = vmatmul.bf16.gmra.mxu0 %v2037
    %v3061 = vpop.f32.mrf.mxu0
    %v3062 = vadd.f32 %v2973, %v3061
    %v3063 = vpop.f32.mrf.mxu0
    %v3064 = vadd.f32 %v2975, %v3063
    %3065 = vmatmul.bf16.gmra.mxu0 %v2039
    %v3066 = vpop.f32.mrf.mxu0
    %v3067 = vadd.f32 %v2978, %v3066
    %v3068 = vpop.f32.mrf.mxu0
    %v3069 = vadd.f32 %v2980, %v3068
    %3070 = vmatmul.bf16.gmra.mxu0 %v2041
    %v3071 = vpop.f32.mrf.mxu0
    %v3072 = vadd.f32 %v2983, %v3071
    %v3073 = vpop.f32.mrf.mxu0
    %v3074 = vadd.f32 %v2985, %v3073
    %3075 = vmatmul.bf16.gmra.mxu0 %v2043
    %v3076 = vpop.f32.mrf.mxu0
    %v3077 = vadd.f32 %v2988, %v3076
    %v3078 = vpop.f32.mrf.mxu0
    %v3079 = vadd.f32 %v2990, %v3078
    %3080 = vmatmul.bf16.gmra.mxu0 %v2045
    %v3081 = vpop.f32.mrf.mxu0
    %v3082 = vadd.f32 %v2993, %v3081
    %v3083 = vpop.f32.mrf.mxu0
    %v3084 = vadd.f32 %v2995, %v3083
    %3085 = vmatmul.bf16.gmra.mxu0 %v2047
    %v3086 = vpop.f32.mrf.mxu0
    %v3087 = vadd.f32 %v2998, %v3086
    %v3088 = vpop.f32.mrf.mxu0
    %v3089 = vadd.f32 %v3000, %v3088
    %3090 = vmatmul.bf16.gmra.mxu0 %v2049
    %v3091 = vpop.f32.mrf.mxu0
    %v3092 = vadd.f32 %v3003, %v3091
    %v3093 = vpop.f32.mrf.mxu0
    %v3094 = vadd.f32 %v3005, %v3093
    %3095 = vmatmul.bf16.gmra.mxu0 %v2051
    %v3096 = vpop.f32.mrf.mxu0
    %v3097 = vadd.f32 %v3008, %v3096
    %v3098 = vpop.f32.mrf.mxu0
    %v3099 = vadd.f32 %v3010, %v3098
    %3100 = vmatmul.bf16.gmra.mxu0 %v2053
    %v3101 = vpop.f32.mrf.mxu0
    %v3102 = vadd.f32 %v3013, %v3101
    %v3103 = vpop.f32.mrf.mxu0
    %v3104 = vadd.f32 %v3015, %v3103
    %3105 = vmatmul.bf16.gmra.mxu0 %v2055
    %v3106 = vpop.f32.mrf.mxu0
    %v3107 = vadd.f32 %v3018, %v3106
    %v3108 = vpop.f32.mrf.mxu0
    %v3109 = vadd.f32 %v3020, %v3108
    %3110 = vmatmul.bf16.gmra.mxu0 %v2057
    %v3111 = vpop.f32.mrf.mxu0
    %v3112 = vadd.f32 %v3023, %v3111
    %v3113 = vpop.f32.mrf.mxu0
    %v3114 = vadd.f32 %v3025, %v3113
    %3115 = vmatmul.bf16.gmra.mxu0 %v2059
    %v3116 = vpop.f32.mrf.mxu0
    %v3117 = vadd.f32 %v3028, %v3116
    %v3118 = vpop.f32.mrf.mxu0
    %v3119 = vadd.f32 %v3030, %v3118
    %3120 = vmatmul.bf16.gmra.mxu0 %v2061
    %v3121 = vpop.f32.mrf.mxu0
    %v3122 = vadd.f32 %v3033, %v3121
    %v3123 = vpop.f32.mrf.mxu0
    %v3124 = vadd.f32 %v3035, %v3123
    %3125 = vdwg.mxu0
    %v3130 = vrot.slane %v1815, 7
    %v3131 = vrot.slane %v1841, 6
    %v3132 = vrot.slane %v1867, 5
    %vm3133 = vcmask 1040384
    %v3134 = vsel %vm3133, %v1789, %v3130
    %v3135 = vsel %vm1423, %v3131, %v3132
    %vm3136 = vcmask 1041408
    %v3137 = vsel %vm3136, %v3134, %v3135
    %v3138 = vsel %vm1421, %v1789, %v3130
    %v3139 = vsel %vm1425, %v3131, %v3132
    %vm3140 = vcmask 1042433
    %v3141 = vsel %vm3140, %v3138, %v3139
    %v3142 = vrot.slane %v3141, 1
    %v3143 = vsel %vm1423, %v1789, %v3130
    %v3144 = vsel %vm1427, %v3131, %v3132
    %vm3145 = vcmask 1043458
    %v3146 = vsel %vm3145, %v3143, %v3144
    %v3147 = vrot.slane %v3146, 2
    %v3148 = vsel %vm1425, %v1789, %v3130
    %v3149 = vsel %vm1429, %v3131, %v3132
    %vm3150 = vcmask 1044483
    %v3151 = vsel %vm3150, %v3148, %v3149
    %v3152 = vrot.slane %v3151, 3
    %v3153 = vsel %vm1427, %v1789, %v3130
    %v3154 = vsel %vm1431, %v3131, %v3132
    %vm3155 = vcmask 1045508
    %v3156 = vsel %vm3155, %v3153, %v3154
    %v3157 = vrot.slane %v3156, 4
    %v3158 = vsel %vm1429, %v1789, %v3130
    %vm3159 = vcmask 1046528
    %v3160 = vsel %vm3159, %v3132, %v3131
    %vm3161 = vcmask 1046533
    %v3162 = vsel %vm3161, %v3158, %v3160
    %v3163 = vrot.slane %v3162, 5
    %v3164 = vsel %vm1431, %v1789, %v3130
    %v3165 = vsel %vm3133, %v3131, %v3132
    %vm3166 = vcmask 1045504
    %v3167 = vsel %vm3166, %v3165, %v3164
    %v3168 = vrot.slane %v3167, 6
    %v3169 = vsel %vm3159, %v3130, %v1789
    %v3170 = vsel %vm1421, %v3131, %v3132
    %vm3171 = vcmask 1046529
    %v3172 = vsel %vm3171, %v3170, %v3169
    %v3173 = vrot.slane %v3172, 7
    %v3174 = vperm.slane %v3137, 0
    %v3175 = vperm.slane %v3137, 1
    %v3176 = vperm.slane %v3137, 2
    %v3177 = vperm.slane %v3137, 3
    %v3178 = vperm.slane %v3142, 0
    %v3179 = vperm.slane %v3142, 1
    %v3180 = vperm.slane %v3142, 2
    %v3181 = vperm.slane %v3142, 3
    %v3182 = vperm.slane %v3147, 0
    %v3183 = vperm.slane %v3147, 1
    %v3184 = vperm.slane %v3147, 2
    %v3185 = vperm.slane %v3147, 3
    %v3186 = vperm.slane %v3152, 0
    %v3187 = vperm.slane %v3152, 1
    %v3188 = vperm.slane %v3152, 2
    %v3189 = vperm.slane %v3152, 3
    %v3190 = vperm.slane %v3157, 0
    %v3191 = vperm.slane %v3157, 1
    %v3192 = vperm.slane %v3157, 2
    %v3193 = vperm.slane %v3157, 3
    %v3194 = vperm.slane %v3163, 0
    %v3195 = vperm.slane %v3163, 1
    %v3196 = vperm.slane %v3163, 2
    %v3197 = vperm.slane %v3163, 3
    %v3198 = vperm.slane %v3168, 0
    %v3199 = vperm.slane %v3168, 1
    %v3200 = vperm.slane %v3168, 2
    %v3201 = vperm.slane %v3168, 3
    %v3202 = vperm.slane %v3173, 0
    %v3203 = vperm.slane %v3173, 1
    %v3204 = vperm.slane %v3173, 2
    %v3205 = vperm.slane %v3173, 3
    %v3238 = vadd.f32 %v2513, %v3174
    %v3239 = vadd.f32 %v2691, %v3175
    %v3240 = vadd.f32 %v2869, %v3176
    %v3241 = vadd.f32 %v3047, %v3177
    %v3242 = vadd.f32 %v2515, %v3174
    %v3243 = vadd.f32 %v2693, %v3175
    %v3244 = vadd.f32 %v2871, %v3176
    %v3245 = vadd.f32 %v3049, %v3177
    %v3246 = vadd.f32 %v2518, %v3174
    %v3247 = vadd.f32 %v2696, %v3175
    %v3248 = vadd.f32 %v2874, %v3176
    %v3249 = vadd.f32 %v3052, %v3177
    %v3250 = vadd.f32 %v2520, %v3174
    %v3251 = vadd.f32 %v2698, %v3175
    %v3252 = vadd.f32 %v2876, %v3176
    %v3253 = vadd.f32 %v3054, %v3177
    %v3254 = vadd.f32 %v2523, %v3178
    %v3255 = vadd.f32 %v2701, %v3179
    %v3256 = vadd.f32 %v2879, %v3180
    %v3257 = vadd.f32 %v3057, %v3181
    %v3258 = vadd.f32 %v2525, %v3178
    %v3259 = vadd.f32 %v2703, %v3179
    %v3260 = vadd.f32 %v2881, %v3180
    %v3261 = vadd.f32 %v3059, %v3181
    %v3262 = vadd.f32 %v2528, %v3178
    %v3263 = vadd.f32 %v2706, %v3179
    %v3264 = vadd.f32 %v2884, %v3180
    %v3265 = vadd.f32 %v3062, %v3181
    %v3266 = vadd.f32 %v2530, %v3178
    %v3267 = vadd.f32 %v2708, %v3179
    %v3268 = vadd.f32 %v2886, %v3180
    %v3269 = vadd.f32 %v3064, %v3181
    %v3270 = vadd.f32 %v2533, %v3182
    %v3271 = vadd.f32 %v2711, %v3183
    %v3272 = vadd.f32 %v2889, %v3184
    %v3273 = vadd.f32 %v3067, %v3185
    %v3274 = vadd.f32 %v2535, %v3182
    %v3275 = vadd.f32 %v2713, %v3183
    %v3276 = vadd.f32 %v2891, %v3184
    %v3277 = vadd.f32 %v3069, %v3185
    %v3278 = vadd.f32 %v2538, %v3182
    %v3279 = vadd.f32 %v2716, %v3183
    %v3280 = vadd.f32 %v2894, %v3184
    %v3281 = vadd.f32 %v3072, %v3185
    %v3282 = vadd.f32 %v2540, %v3182
    %v3283 = vadd.f32 %v2718, %v3183
    %v3284 = vadd.f32 %v2896, %v3184
    %v3285 = vadd.f32 %v3074, %v3185
    %v3286 = vadd.f32 %v2543, %v3186
    %v3287 = vadd.f32 %v2721, %v3187
    %v3288 = vadd.f32 %v2899, %v3188
    %v3289 = vadd.f32 %v3077, %v3189
    %v3290 = vadd.f32 %v2545, %v3186
    %v3291 = vadd.f32 %v2723, %v3187
    %v3292 = vadd.f32 %v2901, %v3188
    %v3293 = vadd.f32 %v3079, %v3189
    %v3294 = vadd.f32 %v2548, %v3186
    %v3295 = vadd.f32 %v2726, %v3187
    %v3296 = vadd.f32 %v2904, %v3188
    %v3297 = vadd.f32 %v3082, %v3189
    %v3298 = vadd.f32 %v2550, %v3186
    %v3299 = vadd.f32 %v2728, %v3187
    %v3300 = vadd.f32 %v2906, %v3188
    %v3301 = vadd.f32 %v3084, %v3189
    %v3302 = vadd.f32 %v2553, %v3190
    %v3303 = vadd.f32 %v2731, %v3191
    %v3304 = vadd.f32 %v2909, %v3192
    %v3305 = vadd.f32 %v3087, %v3193
    %v3306 = vadd.f32 %v2555, %v3190
    %v3307 = vadd.f32 %v2733, %v3191
    %v3308 = vadd.f32 %v2911, %v3192
    %v3309 = vadd.f32 %v3089, %v3193
    %v3310 = vadd.f32 %v2558, %v3190
    %v3311 = vadd.f32 %v2736, %v3191
    %v3312 = vadd.f32 %v2914, %v3192
    %v3313 = vadd.f32 %v3092, %v3193
    %v3314 = vadd.f32 %v2560, %v3190
    %v3315 = vadd.f32 %v2738, %v3191
    %v3316 = vadd.f32 %v2916, %v3192
    %v3317 = vadd.f32 %v3094, %v3193
    %v3318 = vadd.f32 %v2563, %v3194
    %v3319 = vadd.f32 %v2741, %v3195
    %v3320 = vadd.f32 %v2919, %v3196
    %v3321 = vadd.f32 %v3097, %v3197
    %v3322 = vadd.f32 %v2565, %v3194
    %v3323 = vadd.f32 %v2743, %v3195
    %v3324 = vadd.f32 %v2921, %v3196
    %v3325 = vadd.f32 %v3099, %v3197
    %v3326 = vadd.f32 %v2568, %v3194
    %v3327 = vadd.f32 %v2746, %v3195
    %v3328 = vadd.f32 %v2924, %v3196
    %v3329 = vadd.f32 %v3102, %v3197
    %v3330 = vadd.f32 %v2570, %v3194
    %v3331 = vadd.f32 %v2748, %v3195
    %v3332 = vadd.f32 %v2926, %v3196
    %v3333 = vadd.f32 %v3104, %v3197
    %v3334 = vadd.f32 %v2573, %v3198
    %v3335 = vadd.f32 %v2751, %v3199
    %v3336 = vadd.f32 %v2929, %v3200
    %v3337 = vadd.f32 %v3107, %v3201
    %v3338 = vadd.f32 %v2575, %v3198
    %v3339 = vadd.f32 %v2753, %v3199
    %v3340 = vadd.f32 %v2931, %v3200
    %v3341 = vadd.f32 %v3109, %v3201
    %v3342 = vadd.f32 %v2578, %v3198
    %v3343 = vadd.f32 %v2756, %v3199
    %v3344 = vadd.f32 %v2934, %v3200
    %v3345 = vadd.f32 %v3112, %v3201
    %v3346 = vadd.f32 %v2580, %v3198
    %v3347 = vadd.f32 %v2758, %v3199
    %v3348 = vadd.f32 %v2936, %v3200
    %v3349 = vadd.f32 %v3114, %v3201
    %v3350 = vadd.f32 %v2583, %v3202
    %v3351 = vadd.f32 %v2761, %v3203
    %v3352 = vadd.f32 %v2939, %v3204
    %v3353 = vadd.f32 %v3117, %v3205
    %v3354 = vadd.f32 %v2585, %v3202
    %v3355 = vadd.f32 %v2763, %v3203
    %v3356 = vadd.f32 %v2941, %v3204
    %v3357 = vadd.f32 %v3119, %v3205
    %v3358 = vadd.f32 %v2588, %v3202
    %v3359 = vadd.f32 %v2766, %v3203
    %v3360 = vadd.f32 %v2944, %v3204
    %v3361 = vadd.f32 %v3122, %v3205
    %v3362 = vadd.f32 %v2590, %v3202
    %v3363 = vadd.f32 %v2768, %v3203
    %v3364 = vadd.f32 %v2946, %v3204
    %v3365 = vadd.f32 %v3124, %v3205
    %v3366 = vmax.f32 %v3238, 0.0
    %v3367 = vmax.f32 %v3239, 0.0
    %v3368 = vmax.f32 %v3240, 0.0
    %v3369 = vmax.f32 %v3241, 0.0
    %v3370 = vmax.f32 %v3242, 0.0
    %v3371 = vmax.f32 %v3243, 0.0
    %v3372 = vmax.f32 %v3244, 0.0
    %v3373 = vmax.f32 %v3245, 0.0
    %v3374 = vmax.f32 %v3246, 0.0
    %v3375 = vmax.f32 %v3247, 0.0
    %v3376 = vmax.f32 %v3248, 0.0
    %v3377 = vmax.f32 %v3249, 0.0
    %v3378 = vmax.f32 %v3250, 0.0
    %v3379 = vmax.f32 %v3251, 0.0
    %v3380 = vmax.f32 %v3252, 0.0
    %v3381 = vmax.f32 %v3253, 0.0
    %v3382 = vmax.f32 %v3254, 0.0
    %v3383 = vmax.f32 %v3255, 0.0
    %v3384 = vmax.f32 %v3256, 0.0
    %v3385 = vmax.f32 %v3257, 0.0
    %v3386 = vmax.f32 %v3258, 0.0
    %v3387 = vmax.f32 %v3259, 0.0
    %v3388 = vmax.f32 %v3260, 0.0
    %v3389 = vmax.f32 %v3261, 0.0
    %v3390 = vmax.f32 %v3262, 0.0
    %v3391 = vmax.f32 %v3263, 0.0
    %v3392 = vmax.f32 %v3264, 0.0
    %v3393 = vmax.f32 %v3265, 0.0
    %v3394 = vmax.f32 %v3266, 0.0
    %v3395 = vmax.f32 %v3267, 0.0
    %v3396 = vmax.f32 %v3268, 0.0
    %v3397 = vmax.f32 %v3269, 0.0
    %v3398 = vmax.f32 %v3270, 0.0
    %v3399 = vmax.f32 %v3271, 0.0
    %v3400 = vmax.f32 %v3272, 0.0
    %v3401 = vmax.f32 %v3273, 0.0
    %v3402 = vmax.f32 %v3274, 0.0
    %v3403 = vmax.f32 %v3275, 0.0
    %v3404 = vmax.f32 %v3276, 0.0
    %v3405 = vmax.f32 %v3277, 0.0
    %v3406 = vmax.f32 %v3278, 0.0
    %v3407 = vmax.f32 %v3279, 0.0
    %v3408 = vmax.f32 %v3280, 0.0
    %v3409 = vmax.f32 %v3281, 0.0
    %v3410 = vmax.f32 %v3282, 0.0
    %v3411 = vmax.f32 %v3283, 0.0
    %v3412 = vmax.f32 %v3284, 0.0
    %v3413 = vmax.f32 %v3285, 0.0
    %v3414 = vmax.f32 %v3286, 0.0
    %v3415 = vmax.f32 %v3287, 0.0
    %v3416 = vmax.f32 %v3288, 0.0
    %v3417 = vmax.f32 %v3289, 0.0
    %v3418 = vmax.f32 %v3290, 0.0
    %v3419 = vmax.f32 %v3291, 0.0
    %v3420 = vmax.f32 %v3292, 0.0
    %v3421 = vmax.f32 %v3293, 0.0
    %v3422 = vmax.f32 %v3294, 0.0
    %v3423 = vmax.f32 %v3295, 0.0
    %v3424 = vmax.f32 %v3296, 0.0
    %v3425 = vmax.f32 %v3297, 0.0
    %v3426 = vmax.f32 %v3298, 0.0
    %v3427 = vmax.f32 %v3299, 0.0
    %v3428 = vmax.f32 %v3300, 0.0
    %v3429 = vmax.f32 %v3301, 0.0
    %v3430 = vmax.f32 %v3302, 0.0
    %v3431 = vmax.f32 %v3303, 0.0
    %v3432 = vmax.f32 %v3304, 0.0
    %v3433 = vmax.f32 %v3305, 0.0
    %v3434 = vmax.f32 %v3306, 0.0
    %v3435 = vmax.f32 %v3307, 0.0
    %v3436 = vmax.f32 %v3308, 0.0
    %v3437 = vmax.f32 %v3309, 0.0
    %v3438 = vmax.f32 %v3310, 0.0
    %v3439 = vmax.f32 %v3311, 0.0
    %v3440 = vmax.f32 %v3312, 0.0
    %v3441 = vmax.f32 %v3313, 0.0
    %v3442 = vmax.f32 %v3314, 0.0
    %v3443 = vmax.f32 %v3315, 0.0
    %v3444 = vmax.f32 %v3316, 0.0
    %v3445 = vmax.f32 %v3317, 0.0
    %v3446 = vmax.f32 %v3318, 0.0
    %v3447 = vmax.f32 %v3319, 0.0
    %v3448 = vmax.f32 %v3320, 0.0
    %v3449 = vmax.f32 %v3321, 0.0
    %v3450 = vmax.f32 %v3322, 0.0
    %v3451 = vmax.f32 %v3323, 0.0
    %v3452 = vmax.f32 %v3324, 0.0
    %v3453 = vmax.f32 %v3325, 0.0
    %v3454 = vmax.f32 %v3326, 0.0
    %v3455 = vmax.f32 %v3327, 0.0
    %v3456 = vmax.f32 %v3328, 0.0
    %v3457 = vmax.f32 %v3329, 0.0
    %v3458 = vmax.f32 %v3330, 0.0
    %v3459 = vmax.f32 %v3331, 0.0
    %v3460 = vmax.f32 %v3332, 0.0
    %v3461 = vmax.f32 %v3333, 0.0
    %v3462 = vmax.f32 %v3334, 0.0
    %v3463 = vmax.f32 %v3335, 0.0
    %v3464 = vmax.f32 %v3336, 0.0
    %v3465 = vmax.f32 %v3337, 0.0
    %v3466 = vmax.f32 %v3338, 0.0
    %v3467 = vmax.f32 %v3339, 0.0
    %v3468 = vmax.f32 %v3340, 0.0
    %v3469 = vmax.f32 %v3341, 0.0
    %v3470 = vmax.f32 %v3342, 0.0
    %v3471 = vmax.f32 %v3343, 0.0
    %v3472 = vmax.f32 %v3344, 0.0
    %v3473 = vmax.f32 %v3345, 0.0
    %v3474 = vmax.f32 %v3346, 0.0
    %v3475 = vmax.f32 %v3347, 0.0
    %v3476 = vmax.f32 %v3348, 0.0
    %v3477 = vmax.f32 %v3349, 0.0
    %v3478 = vmax.f32 %v3350, 0.0
    %v3479 = vmax.f32 %v3351, 0.0
    %v3480 = vmax.f32 %v3352, 0.0
    %v3481 = vmax.f32 %v3353, 0.0
    %v3482 = vmax.f32 %v3354, 0.0
    %v3483 = vmax.f32 %v3355, 0.0
    %v3484 = vmax.f32 %v3356, 0.0
    %v3485 = vmax.f32 %v3357, 0.0
    %v3486 = vmax.f32 %v3358, 0.0
    %v3487 = vmax.f32 %v3359, 0.0
    %v3488 = vmax.f32 %v3360, 0.0
    %v3489 = vmax.f32 %v3361, 0.0
    %v3490 = vmax.f32 %v3362, 0.0
    %v3491 = vmax.f32 %v3363, 0.0
    %v3492 = vmax.f32 %v3364, 0.0
    %v3493 = vmax.f32 %v3365, 0.0
    %v3494 = vpack.c.bf16 %v3370, %v3366
    %v3495 = vpack.c.bf16 %v3371, %v3367
    %v3496 = vpack.c.bf16 %v3372, %v3368
    %v3497 = vpack.c.bf16 %v3373, %v3369
    %v3498 = vpack.c.bf16 %v3378, %v3374
    %v3499 = vpack.c.bf16 %v3379, %v3375
    %v3500 = vpack.c.bf16 %v3380, %v3376
    %v3501 = vpack.c.bf16 %v3381, %v3377
    %v3502 = vpack.c.bf16 %v3386, %v3382
    %v3503 = vpack.c.bf16 %v3387, %v3383
    %v3504 = vpack.c.bf16 %v3388, %v3384
    %v3505 = vpack.c.bf16 %v3389, %v3385
    %v3506 = vpack.c.bf16 %v3394, %v3390
    %v3507 = vpack.c.bf16 %v3395, %v3391
    %v3508 = vpack.c.bf16 %v3396, %v3392
    %v3509 = vpack.c.bf16 %v3397, %v3393
    %v3510 = vpack.c.bf16 %v3402, %v3398
    %v3511 = vpack.c.bf16 %v3403, %v3399
    %v3512 = vpack.c.bf16 %v3404, %v3400
    %v3513 = vpack.c.bf16 %v3405, %v3401
    %v3514 = vpack.c.bf16 %v3410, %v3406
    %v3515 = vpack.c.bf16 %v3411, %v3407
    %v3516 = vpack.c.bf16 %v3412, %v3408
    %v3517 = vpack.c.bf16 %v3413, %v3409
    %v3518 = vpack.c.bf16 %v3418, %v3414
    %v3519 = vpack.c.bf16 %v3419, %v3415
    %v3520 = vpack.c.bf16 %v3420, %v3416
    %v3521 = vpack.c.bf16 %v3421, %v3417
    %v3522 = vpack.c.bf16 %v3426, %v3422
    %v3523 = vpack.c.bf16 %v3427, %v3423
    %v3524 = vpack.c.bf16 %v3428, %v3424
    %v3525 = vpack.c.bf16 %v3429, %v3425
    %v3526 = vpack.c.bf16 %v3434, %v3430
    %v3527 = vpack.c.bf16 %v3435, %v3431
    %v3528 = vpack.c.bf16 %v3436, %v3432
    %v3529 = vpack.c.bf16 %v3437, %v3433
    %v3530 = vpack.c.bf16 %v3442, %v3438
    %v3531 = vpack.c.bf16 %v3443, %v3439
    %v3532 = vpack.c.bf16 %v3444, %v3440
    %v3533 = vpack.c.bf16 %v3445, %v3441
    %v3534 = vpack.c.bf16 %v3450, %v3446
    %v3535 = vpack.c.bf16 %v3451, %v3447
    %v3536 = vpack.c.bf16 %v3452, %v3448
    %v3537 = vpack.c.bf16 %v3453, %v3449
    %v3538 = vpack.c.bf16 %v3458, %v3454
    %v3539 = vpack.c.bf16 %v3459, %v3455
    %v3540 = vpack.c.bf16 %v3460, %v3456
    %v3541 = vpack.c.bf16 %v3461, %v3457
    %v3542 = vpack.c.bf16 %v3466, %v3462
    %v3543 = vpack.c.bf16 %v3467, %v3463
    %v3544 = vpack.c.bf16 %v3468, %v3464
    %v3545 = vpack.c.bf16 %v3469, %v3465
    %v3546 = vpack.c.bf16 %v3474, %v3470
    %v3547 = vpack.c.bf16 %v3475, %v3471
    %v3548 = vpack.c.bf16 %v3476, %v3472
    %v3549 = vpack.c.bf16 %v3477, %v3473
    %v3550 = vpack.c.bf16 %v3482, %v3478
    %v3551 = vpack.c.bf16 %v3483, %v3479
    %v3552 = vpack.c.bf16 %v3484, %v3480
    %v3553 = vpack.c.bf16 %v3485, %v3481
    %v3554 = vpack.c.bf16 %v3490, %v3486
    %v3555 = vpack.c.bf16 %v3491, %v3487
    %v3556 = vpack.c.bf16 %v3492, %v3488
    %v3557 = vpack.c.bf16 %v3493, %v3489
    %v3558 = vld [vmem:[#allocation7] sm:$0xff]
    %v3559 = vld [vmem:[#allocation7 + $0x8] sm:$0xff]
    %v3560 = vld [vmem:[#allocation7 + $0x10] sm:$0xff]
    %v3561 = vld [vmem:[#allocation7 + $0x18] sm:$0xff]
    %v3562 = vld [vmem:[#allocation7 + $0x20] sm:$0xff]
    %v3563 = vld [vmem:[#allocation7 + $0x28] sm:$0xff]
    %v3564 = vld [vmem:[#allocation7 + $0x30] sm:$0xff]
    %v3565 = vld [vmem:[#allocation7 + $0x38] sm:$0xff]
    %v3566 = vld [vmem:[#allocation7 + $0x40] sm:$0xff]
    %v3567 = vld [vmem:[#allocation7 + $0x48] sm:$0xff]
    %v3568 = vld [vmem:[#allocation7 + $0x50] sm:$0xff]
    %v3569 = vld [vmem:[#allocation7 + $0x58] sm:$0xff]
    %v3570 = vld [vmem:[#allocation7 + $0x60] sm:$0xff]
    %v3571 = vld [vmem:[#allocation7 + $0x68] sm:$0xff]
    %v3572 = vld [vmem:[#allocation7 + $0x70] sm:$0xff]
    %v3573 = vld [vmem:[#allocation7 + $0x78] sm:$0xff]
    %v3574 = vld [vmem:[#allocation7 + $0x80] sm:$0xff]
    %v3575 = vld [vmem:[#allocation7 + $0x88] sm:$0xff]
    %v3576 = vld [vmem:[#allocation7 + $0x90] sm:$0xff]
    %v3577 = vld [vmem:[#allocation7 + $0x98] sm:$0xff]
    %v3578 = vld [vmem:[#allocation7 + $0xa0] sm:$0xff]
    %v3579 = vld [vmem:[#allocation7 + $0xa8] sm:$0xff]
    %v3580 = vld [vmem:[#allocation7 + $0xb0] sm:$0xff]
    %v3581 = vld [vmem:[#allocation7 + $0xb8] sm:$0xff]
    %v3582 = vld [vmem:[#allocation7 + $0xc0] sm:$0xff]
    %v3583 = vld [vmem:[#allocation7 + $0xc8] sm:$0xff]
    %v3584 = vld [vmem:[#allocation7 + $0xd0] sm:$0xff]
    %v3585 = vld [vmem:[#allocation7 + $0xd8] sm:$0xff]
    %v3586 = vld [vmem:[#allocation7 + $0xe0] sm:$0xff]
    %v3587 = vld [vmem:[#allocation7 + $0xe8] sm:$0xff]
    %v3588 = vld [vmem:[#allocation7 + $0xf0] sm:$0xff]
    %v3589 = vld [vmem:[#allocation7 + $0xf8] sm:$0xff]
    %v3590 = vld [vmem:[#allocation7 + $0x100] sm:$0xff]
    %v3591 = vld [vmem:[#allocation7 + $0x108] sm:$0xff]
    %v3592 = vld [vmem:[#allocation7 + $0x110] sm:$0xff]
    %v3593 = vld [vmem:[#allocation7 + $0x118] sm:$0xff]
    %v3594 = vld [vmem:[#allocation7 + $0x120] sm:$0xff]
    %v3595 = vld [vmem:[#allocation7 + $0x128] sm:$0xff]
    %v3596 = vld [vmem:[#allocation7 + $0x130] sm:$0xff]
    %v3597 = vld [vmem:[#allocation7 + $0x138] sm:$0xff]
    %v3598 = vld [vmem:[#allocation7 + $0x140] sm:$0xff]
    %v3599 = vld [vmem:[#allocation7 + $0x148] sm:$0xff]
    %v3600 = vld [vmem:[#allocation7 + $0x150] sm:$0xff]
    %v3601 = vld [vmem:[#allocation7 + $0x158] sm:$0xff]
    %v3602 = vld [vmem:[#allocation7 + $0x160] sm:$0xff]
    %v3603 = vld [vmem:[#allocation7 + $0x168] sm:$0xff]
    %v3604 = vld [vmem:[#allocation7 + $0x170] sm:$0xff]
    %v3605 = vld [vmem:[#allocation7 + $0x178] sm:$0xff]
    %v3606 = vld [vmem:[#allocation7 + $0x180] sm:$0xff]
    %v3607 = vld [vmem:[#allocation7 + $0x188] sm:$0xff]
    %v3608 = vld [vmem:[#allocation7 + $0x190] sm:$0xff]
    %v3609 = vld [vmem:[#allocation7 + $0x198] sm:$0xff]
    %v3610 = vld [vmem:[#allocation7 + $0x1a0] sm:$0xff]
    %v3611 = vld [vmem:[#allocation7 + $0x1a8] sm:$0xff]
    %v3612 = vld [vmem:[#allocation7 + $0x1b0] sm:$0xff]
    %v3613 = vld [vmem:[#allocation7 + $0x1b8] sm:$0xff]
    %v3614 = vld [vmem:[#allocation7 + $0x1c0] sm:$0xff]
    %v3615 = vld [vmem:[#allocation7 + $0x1c8] sm:$0xff]
    %v3616 = vld [vmem:[#allocation7 + $0x1d0] sm:$0xff]
    %v3617 = vld [vmem:[#allocation7 + $0x1d8] sm:$0xff]
    %v3618 = vld [vmem:[#allocation7 + $0x1e0] sm:$0xff]
    %v3619 = vld [vmem:[#allocation7 + $0x1e8] sm:$0xff]
    %v3620 = vld [vmem:[#allocation7 + $0x1f0] sm:$0xff]
    %v3621 = vld [vmem:[#allocation7 + $0x1f8] sm:$0xff]
    %v3622 = vld [vmem:[%s9] sm:$0x3]
    %v3624 = vperm.slane %v3622, 0
    %v3625 = vperm.slane %v3622, 1
    %v3692 = vunpack.c.l.b16 %v3558
    %v3693 = vunpack.c.h.b16 %v3558
    %v3694 = vunpack.c.l.b16 %v3559
    %v3695 = vunpack.c.h.b16 %v3559
    %v3696 = vunpack.c.l.b16 %v3560
    %v3697 = vunpack.c.h.b16 %v3560
    %v3698 = vunpack.c.l.b16 %v3561
    %v3699 = vunpack.c.h.b16 %v3561
    %v3700 = vunpack.c.l.b16 %v3562
    %v3701 = vunpack.c.h.b16 %v3562
    %v3702 = vunpack.c.l.b16 %v3563
    %v3703 = vunpack.c.h.b16 %v3563
    %v3704 = vunpack.c.l.b16 %v3564
    %v3705 = vunpack.c.h.b16 %v3564
    %v3706 = vunpack.c.l.b16 %v3565
    %v3707 = vunpack.c.h.b16 %v3565
    %v3708 = vunpack.c.l.b16 %v3566
    %v3709 = vunpack.c.h.b16 %v3566
    %v3710 = vunpack.c.l.b16 %v3567
    %v3711 = vunpack.c.h.b16 %v3567
    %v3712 = vunpack.c.l.b16 %v3568
    %v3713 = vunpack.c.h.b16 %v3568
    %v3714 = vunpack.c.l.b16 %v3569
    %v3715 = vunpack.c.h.b16 %v3569
    %v3716 = vunpack.c.l.b16 %v3570
    %v3717 = vunpack.c.h.b16 %v3570
    %v3718 = vunpack.c.l.b16 %v3571
    %v3719 = vunpack.c.h.b16 %v3571
    %v3720 = vunpack.c.l.b16 %v3572
    %v3721 = vunpack.c.h.b16 %v3572
    %v3722 = vunpack.c.l.b16 %v3573
    %v3723 = vunpack.c.h.b16 %v3573
    %v3724 = vunpack.c.l.b16 %v3574
    %v3725 = vunpack.c.h.b16 %v3574
    %v3726 = vunpack.c.l.b16 %v3575
    %v3727 = vunpack.c.h.b16 %v3575
    %v3728 = vunpack.c.l.b16 %v3576
    %v3729 = vunpack.c.h.b16 %v3576
    %v3730 = vunpack.c.l.b16 %v3577
    %v3731 = vunpack.c.h.b16 %v3577
    %v3732 = vunpack.c.l.b16 %v3578
    %v3733 = vunpack.c.h.b16 %v3578
    %v3734 = vunpack.c.l.b16 %v3579
    %v3735 = vunpack.c.h.b16 %v3579
    %v3736 = vunpack.c.l.b16 %v3580
    %v3737 = vunpack.c.h.b16 %v3580
    %v3738 = vunpack.c.l.b16 %v3581
    %v3739 = vunpack.c.h.b16 %v3581
    %v3740 = vunpack.c.l.b16 %v3582
    %v3741 = vunpack.c.h.b16 %v3582
    %v3742 = vunpack.c.l.b16 %v3583
    %v3743 = vunpack.c.h.b16 %v3583
    %v3744 = vunpack.c.l.b16 %v3584
    %v3745 = vunpack.c.h.b16 %v3584
    %v3746 = vunpack.c.l.b16 %v3585
    %v3747 = vunpack.c.h.b16 %v3585
    %v3748 = vunpack.c.l.b16 %v3586
    %v3749 = vunpack.c.h.b16 %v3586
    %v3750 = vunpack.c.l.b16 %v3587
    %v3751 = vunpack.c.h.b16 %v3587
    %v3752 = vunpack.c.l.b16 %v3588
    %v3753 = vunpack.c.h.b16 %v3588
    %v3754 = vunpack.c.l.b16 %v3589
    %v3755 = vunpack.c.h.b16 %v3589
    %v3756 = vunpack.c.l.b16 %v3590
    %v3757 = vunpack.c.h.b16 %v3590
    %v3758 = vunpack.c.l.b16 %v3591
    %v3759 = vunpack.c.h.b16 %v3591
    %v3760 = vunpack.c.l.b16 %v3592
    %v3761 = vunpack.c.h.b16 %v3592
    %v3762 = vunpack.c.l.b16 %v3593
    %v3763 = vunpack.c.h.b16 %v3593
    %v3764 = vunpack.c.l.b16 %v3594
    %v3765 = vunpack.c.h.b16 %v3594
    %v3766 = vunpack.c.l.b16 %v3595
    %v3767 = vunpack.c.h.b16 %v3595
    %v3768 = vunpack.c.l.b16 %v3596
    %v3769 = vunpack.c.h.b16 %v3596
    %v3770 = vunpack.c.l.b16 %v3597
    %v3771 = vunpack.c.h.b16 %v3597
    %v3772 = vunpack.c.l.b16 %v3598
    %v3773 = vunpack.c.h.b16 %v3598
    %v3774 = vunpack.c.l.b16 %v3599
    %v3775 = vunpack.c.h.b16 %v3599
    %v3776 = vunpack.c.l.b16 %v3600
    %v3777 = vunpack.c.h.b16 %v3600
    %v3778 = vunpack.c.l.b16 %v3601
    %v3779 = vunpack.c.h.b16 %v3601
    %v3780 = vunpack.c.l.b16 %v3602
    %v3781 = vunpack.c.h.b16 %v3602
    %v3782 = vunpack.c.l.b16 %v3603
    %v3783 = vunpack.c.h.b16 %v3603
    %v3784 = vunpack.c.l.b16 %v3604
    %v3785 = vunpack.c.h.b16 %v3604
    %v3786 = vunpack.c.l.b16 %v3605
    %v3787 = vunpack.c.h.b16 %v3605
    %v3788 = vunpack.c.l.b16 %v3606
    %v3789 = vunpack.c.h.b16 %v3606
    %v3790 = vunpack.c.l.b16 %v3607
    %v3791 = vunpack.c.h.b16 %v3607
    %v3792 = vunpack.c.l.b16 %v3608
    %v3793 = vunpack.c.h.b16 %v3608
    %v3794 = vunpack.c.l.b16 %v3609
    %v3795 = vunpack.c.h.b16 %v3609
    %v3796 = vunpack.c.l.b16 %v3610
    %v3797 = vunpack.c.h.b16 %v3610
    %v3798 = vunpack.c.l.b16 %v3611
    %v3799 = vunpack.c.h.b16 %v3611
    %v3800 = vunpack.c.l.b16 %v3612
    %v3801 = vunpack.c.h.b16 %v3612
    %v3802 = vunpack.c.l.b16 %v3613
    %v3803 = vunpack.c.h.b16 %v3613
    %v3804 = vunpack.c.l.b16 %v3614
    %v3805 = vunpack.c.h.b16 %v3614
    %v3806 = vunpack.c.l.b16 %v3615
    %v3807 = vunpack.c.h.b16 %v3615
    %v3808 = vunpack.c.l.b16 %v3616
    %v3809 = vunpack.c.h.b16 %v3616
    %v3810 = vunpack.c.l.b16 %v3617
    %v3811 = vunpack.c.h.b16 %v3617
    %v3812 = vunpack.c.l.b16 %v3618
    %v3813 = vunpack.c.h.b16 %v3618
    %v3814 = vunpack.c.l.b16 %v3619
    %v3815 = vunpack.c.h.b16 %v3619
    %v3816 = vunpack.c.l.b16 %v3620
    %v3817 = vunpack.c.h.b16 %v3620
    %v3818 = vunpack.c.l.b16 %v3621
    %v3819 = vunpack.c.h.b16 %v3621
    %v3820 = vpack.c.b16 %v3694, %v3692
    %v3821 = vpack.c.b16 %v3695, %v3693
    %v3822 = vpack.c.b16 %v3698, %v3696
    %v3823 = vpack.c.b16 %v3699, %v3697
    %v3824 = vpack.c.b16 %v3702, %v3700
    %v3825 = vpack.c.b16 %v3703, %v3701
    %v3826 = vpack.c.b16 %v3706, %v3704
    %v3827 = vpack.c.b16 %v3707, %v3705
    %v3828 = vpack.c.b16 %v3710, %v3708
    %v3829 = vpack.c.b16 %v3711, %v3709
    %v3830 = vpack.c.b16 %v3714, %v3712
    %v3831 = vpack.c.b16 %v3715, %v3713
    %v3832 = vpack.c.b16 %v3718, %v3716
    %v3833 = vpack.c.b16 %v3719, %v3717
    %v3834 = vpack.c.b16 %v3722, %v3720
    %v3835 = vpack.c.b16 %v3723, %v3721
    %v3836 = vpack.c.b16 %v3726, %v3724
    %v3837 = vpack.c.b16 %v3727, %v3725
    %v3838 = vpack.c.b16 %v3730, %v3728
    %v3839 = vpack.c.b16 %v3731, %v3729
    %v3840 = vpack.c.b16 %v3734, %v3732
    %v3841 = vpack.c.b16 %v3735, %v3733
    %v3842 = vpack.c.b16 %v3738, %v3736
    %v3843 = vpack.c.b16 %v3739, %v3737
    %v3844 = vpack.c.b16 %v3742, %v3740
    %v3845 = vpack.c.b16 %v3743, %v3741
    %v3846 = vpack.c.b16 %v3746, %v3744
    %v3847 = vpack.c.b16 %v3747, %v3745
    %v3848 = vpack.c.b16 %v3750, %v3748
    %v3849 = vpack.c.b16 %v3751, %v3749
    %v3850 = vpack.c.b16 %v3754, %v3752
    %v3851 = vpack.c.b16 %v3755, %v3753
    %v3852 = vpack.c.b16 %v3758, %v3756
    %v3853 = vpack.c.b16 %v3759, %v3757
    %v3854 = vpack.c.b16 %v3762, %v3760
    %v3855 = vpack.c.b16 %v3763, %v3761
    %v3856 = vpack.c.b16 %v3766, %v3764
    %v3857 = vpack.c.b16 %v3767, %v3765
    %v3858 = vpack.c.b16 %v3770, %v3768
    %v3859 = vpack.c.b16 %v3771, %v3769
    %v3860 = vpack.c.b16 %v3774, %v3772
    %v3861 = vpack.c.b16 %v3775, %v3773
    %v3862 = vpack.c.b16 %v3778, %v3776
    %v3863 = vpack.c.b16 %v3779, %v3777
    %v3864 = vpack.c.b16 %v3782, %v3780
    %v3865 = vpack.c.b16 %v3783, %v3781
    %v3866 = vpack.c.b16 %v3786, %v3784
    %v3867 = vpack.c.b16 %v3787, %v3785
    %v3868 = vpack.c.b16 %v3790, %v3788
    %v3869 = vpack.c.b16 %v3791, %v3789
    %v3870 = vpack.c.b16 %v3794, %v3792
    %v3871 = vpack.c.b16 %v3795, %v3793
    %v3872 = vpack.c.b16 %v3798, %v3796
    %v3873 = vpack.c.b16 %v3799, %v3797
    %v3874 = vpack.c.b16 %v3802, %v3800
    %v3875 = vpack.c.b16 %v3803, %v3801
    %v3876 = vpack.c.b16 %v3806, %v3804
    %v3877 = vpack.c.b16 %v3807, %v3805
    %v3878 = vpack.c.b16 %v3810, %v3808
    %v3879 = vpack.c.b16 %v3811, %v3809
    %v3880 = vpack.c.b16 %v3814, %v3812
    %v3881 = vpack.c.b16 %v3815, %v3813
    %v3882 = vpack.c.b16 %v3818, %v3816
    %v3883 = vpack.c.b16 %v3819, %v3817
    %3948 = vmatpush.bf16.msra.mxu0 %v3834
    %3949 = vmatpush.bf16.msra.mxu0 %v3832
    %3950 = vmatpush.bf16.msra.mxu0 %v3830
    %3951 = vmatpush.bf16.msra.mxu0 %v3828
    %3952 = vmatpush.bf16.msra.mxu0 %v3826
    %3953 = vmatpush.bf16.msra.mxu0 %v3824
    %3954 = vmatpush.bf16.msra.mxu0 %v3822
    %3955 = vmatpush.bf16.msra.mxu0 %v3820
    %3956 = vmatmul.bf16.gmra.mxu0 %v3494
    %v3957 = vpop.f32.mrf.mxu0
    %v3958 = vadd.f32 %v3624, %v3957
    %v3959 = vpop.f32.mrf.mxu0
    %v3960 = vadd.f32 %v3624, %v3959
    %3961 = vmatmul.bf16.gmra.mxu0 %v3498
    %v3962 = vpop.f32.mrf.mxu0
    %v3963 = vadd.f32 %v3624, %v3962
    %v3964 = vpop.f32.mrf.mxu0
    %v3965 = vadd.f32 %v3624, %v3964
    %3966 = vmatmul.bf16.gmra.mxu0 %v3502
    %v3967 = vpop.f32.mrf.mxu0
    %v3968 = vadd.f32 %v3624, %v3967
    %v3969 = vpop.f32.mrf.mxu0
    %v3970 = vadd.f32 %v3624, %v3969
    %3971 = vmatmul.bf16.gmra.mxu0 %v3506
    %v3972 = vpop.f32.mrf.mxu0
    %v3973 = vadd.f32 %v3624, %v3972
    %v3974 = vpop.f32.mrf.mxu0
    %v3975 = vadd.f32 %v3624, %v3974
    %3976 = vmatmul.bf16.gmra.mxu0 %v3510
    %v3977 = vpop.f32.mrf.mxu0
    %v3978 = vadd.f32 %v3624, %v3977
    %v3979 = vpop.f32.mrf.mxu0
    %v3980 = vadd.f32 %v3624, %v3979
    %3981 = vmatmul.bf16.gmra.mxu0 %v3514
    %v3982 = vpop.f32.mrf.mxu0
    %v3983 = vadd.f32 %v3624, %v3982
    %v3984 = vpop.f32.mrf.mxu0
    %v3985 = vadd.f32 %v3624, %v3984
    %3986 = vmatmul.bf16.gmra.mxu0 %v3518
    %v3987 = vpop.f32.mrf.mxu0
    %v3988 = vadd.f32 %v3624, %v3987
    %v3989 = vpop.f32.mrf.mxu0
    %v3990 = vadd.f32 %v3624, %v3989
    %3991 = vmatmul.bf16.gmra.mxu0 %v3522
    %v3992 = vpop.f32.mrf.mxu0
    %v3993 = vadd.f32 %v3624, %v3992
    %v3994 = vpop.f32.mrf.mxu0
    %v3995 = vadd.f32 %v3624, %v3994
    %3996 = vmatmul.bf16.gmra.mxu0 %v3526
    %v3997 = vpop.f32.mrf.mxu0
    %v3998 = vadd.f32 %v3624, %v3997
    %v3999 = vpop.f32.mrf.mxu0
    %v4000 = vadd.f32 %v3624, %v3999
    %4001 = vmatmul.bf16.gmra.mxu0 %v3530
    %v4002 = vpop.f32.mrf.mxu0
    %v4003 = vadd.f32 %v3624, %v4002
    %v4004 = vpop.f32.mrf.mxu0
    %v4005 = vadd.f32 %v3624, %v4004
    %4006 = vmatmul.bf16.gmra.mxu0 %v3534
    %v4007 = vpop.f32.mrf.mxu0
    %v4008 = vadd.f32 %v3624, %v4007
    %v4009 = vpop.f32.mrf.mxu0
    %v4010 = vadd.f32 %v3624, %v4009
    %4011 = vmatmul.bf16.gmra.mxu0 %v3538
    %v4012 = vpop.f32.mrf.mxu0
    %v4013 = vadd.f32 %v3624, %v4012
    %v4014 = vpop.f32.mrf.mxu0
    %v4015 = vadd.f32 %v3624, %v4014
    %4016 = vmatmul.bf16.gmra.mxu0 %v3542
    %v4017 = vpop.f32.mrf.mxu0
    %v4018 = vadd.f32 %v3624, %v4017
    %v4019 = vpop.f32.mrf.mxu0
    %v4020 = vadd.f32 %v3624, %v4019
    %4021 = vmatmul.bf16.gmra.mxu0 %v3546
    %v4022 = vpop.f32.mrf.mxu0
    %v4023 = vadd.f32 %v3624, %v4022
    %v4024 = vpop.f32.mrf.mxu0
    %v4025 = vadd.f32 %v3624, %v4024
    %4026 = vmatmul.bf16.gmra.mxu0 %v3550
    %v4027 = vpop.f32.mrf.mxu0
    %v4028 = vadd.f32 %v3624, %v4027
    %v4029 = vpop.f32.mrf.mxu0
    %v4030 = vadd.f32 %v3624, %v4029
    %4031 = vmatmul.bf16.gmra.mxu0 %v3554
    %v4032 = vpop.f32.mrf.mxu0
    %v4033 = vadd.f32 %v3624, %v4032
    %v4034 = vpop.f32.mrf.mxu0
    %v4035 = vadd.f32 %v3624, %v4034
    %4036 = vdwg.mxu0
    %4037 = vmatpush.bf16.msra.mxu0 %v3850
    %4038 = vmatpush.bf16.msra.mxu0 %v3848
    %4039 = vmatpush.bf16.msra.mxu0 %v3846
    %4040 = vmatpush.bf16.msra.mxu0 %v3844
    %4041 = vmatpush.bf16.msra.mxu0 %v3842
    %4042 = vmatpush.bf16.msra.mxu0 %v3840
    %4043 = vmatpush.bf16.msra.mxu0 %v3838
    %4044 = vmatpush.bf16.msra.mxu0 %v3836
    %4045 = vmatmul.bf16.gmra.mxu0 %v3495
    %v4046 = vpop.f32.mrf.mxu0
    %v4047 = vadd.f32 %v3958, %v4046
    %v4048 = vpop.f32.mrf.mxu0
    %v4049 = vadd.f32 %v3960, %v4048
    %4050 = vmatmul.bf16.gmra.mxu0 %v3499
    %v4051 = vpop.f32.mrf.mxu0
    %v4052 = vadd.f32 %v3963, %v4051
    %v4053 = vpop.f32.mrf.mxu0
    %v4054 = vadd.f32 %v3965, %v4053
    %4055 = vmatmul.bf16.gmra.mxu0 %v3503
    %v4056 = vpop.f32.mrf.mxu0
    %v4057 = vadd.f32 %v3968, %v4056
    %v4058 = vpop.f32.mrf.mxu0
    %v4059 = vadd.f32 %v3970, %v4058
    %4060 = vmatmul.bf16.gmra.mxu0 %v3507
    %v4061 = vpop.f32.mrf.mxu0
    %v4062 = vadd.f32 %v3973, %v4061
    %v4063 = vpop.f32.mrf.mxu0
    %v4064 = vadd.f32 %v3975, %v4063
    %4065 = vmatmul.bf16.gmra.mxu0 %v3511
    %v4066 = vpop.f32.mrf.mxu0
    %v4067 = vadd.f32 %v3978, %v4066
    %v4068 = vpop.f32.mrf.mxu0
    %v4069 = vadd.f32 %v3980, %v4068
    %4070 = vmatmul.bf16.gmra.mxu0 %v3515
    %v4071 = vpop.f32.mrf.mxu0
    %v4072 = vadd.f32 %v3983, %v4071
    %v4073 = vpop.f32.mrf.mxu0
    %v4074 = vadd.f32 %v3985, %v4073
    %4075 = vmatmul.bf16.gmra.mxu0 %v3519
    %v4076 = vpop.f32.mrf.mxu0
    %v4077 = vadd.f32 %v3988, %v4076
    %v4078 = vpop.f32.mrf.mxu0
    %v4079 = vadd.f32 %v3990, %v4078
    %4080 = vmatmul.bf16.gmra.mxu0 %v3523
    %v4081 = vpop.f32.mrf.mxu0
    %v4082 = vadd.f32 %v3993, %v4081
    %v4083 = vpop.f32.mrf.mxu0
    %v4084 = vadd.f32 %v3995, %v4083
    %4085 = vmatmul.bf16.gmra.mxu0 %v3527
    %v4086 = vpop.f32.mrf.mxu0
    %v4087 = vadd.f32 %v3998, %v4086
    %v4088 = vpop.f32.mrf.mxu0
    %v4089 = vadd.f32 %v4000, %v4088
    %4090 = vmatmul.bf16.gmra.mxu0 %v3531
    %v4091 = vpop.f32.mrf.mxu0
    %v4092 = vadd.f32 %v4003, %v4091
    %v4093 = vpop.f32.mrf.mxu0
    %v4094 = vadd.f32 %v4005, %v4093
    %4095 = vmatmul.bf16.gmra.mxu0 %v3535
    %v4096 = vpop.f32.mrf.mxu0
    %v4097 = vadd.f32 %v4008, %v4096
    %v4098 = vpop.f32.mrf.mxu0
    %v4099 = vadd.f32 %v4010, %v4098
    %4100 = vmatmul.bf16.gmra.mxu0 %v3539
    %v4101 = vpop.f32.mrf.mxu0
    %v4102 = vadd.f32 %v4013, %v4101
    %v4103 = vpop.f32.mrf.mxu0
    %v4104 = vadd.f32 %v4015, %v4103
    %4105 = vmatmul.bf16.gmra.mxu0 %v3543
    %v4106 = vpop.f32.mrf.mxu0
    %v4107 = vadd.f32 %v4018, %v4106
    %v4108 = vpop.f32.mrf.mxu0
    %v4109 = vadd.f32 %v4020, %v4108
    %4110 = vmatmul.bf16.gmra.mxu0 %v3547
    %v4111 = vpop.f32.mrf.mxu0
    %v4112 = vadd.f32 %v4023, %v4111
    %v4113 = vpop.f32.mrf.mxu0
    %v4114 = vadd.f32 %v4025, %v4113
    %4115 = vmatmul.bf16.gmra.mxu0 %v3551
    %v4116 = vpop.f32.mrf.mxu0
    %v4117 = vadd.f32 %v4028, %v4116
    %v4118 = vpop.f32.mrf.mxu0
    %v4119 = vadd.f32 %v4030, %v4118
    %4120 = vmatmul.bf16.gmra.mxu0 %v3555
    %v4121 = vpop.f32.mrf.mxu0
    %v4122 = vadd.f32 %v4033, %v4121
    %v4123 = vpop.f32.mrf.mxu0
    %v4124 = vadd.f32 %v4035, %v4123
    %4125 = vdwg.mxu0
    %4126 = vmatpush.bf16.msra.mxu0 %v3866
    %4127 = vmatpush.bf16.msra.mxu0 %v3864
    %4128 = vmatpush.bf16.msra.mxu0 %v3862
    %4129 = vmatpush.bf16.msra.mxu0 %v3860
    %4130 = vmatpush.bf16.msra.mxu0 %v3858
    %4131 = vmatpush.bf16.msra.mxu0 %v3856
    %4132 = vmatpush.bf16.msra.mxu0 %v3854
    %4133 = vmatpush.bf16.msra.mxu0 %v3852
    %4134 = vmatmul.bf16.gmra.mxu0 %v3496
    %v4135 = vpop.f32.mrf.mxu0
    %v4136 = vadd.f32 %v4047, %v4135
    %v4137 = vpop.f32.mrf.mxu0
    %v4138 = vadd.f32 %v4049, %v4137
    %4139 = vmatmul.bf16.gmra.mxu0 %v3500
    %v4140 = vpop.f32.mrf.mxu0
    %v4141 = vadd.f32 %v4052, %v4140
    %v4142 = vpop.f32.mrf.mxu0
    %v4143 = vadd.f32 %v4054, %v4142
    %4144 = vmatmul.bf16.gmra.mxu0 %v3504
    %v4145 = vpop.f32.mrf.mxu0
    %v4146 = vadd.f32 %v4057, %v4145
    %v4147 = vpop.f32.mrf.mxu0
    %v4148 = vadd.f32 %v4059, %v4147
    %4149 = vmatmul.bf16.gmra.mxu0 %v3508
    %v4150 = vpop.f32.mrf.mxu0
    %v4151 = vadd.f32 %v4062, %v4150
    %v4152 = vpop.f32.mrf.mxu0
    %v4153 = vadd.f32 %v4064, %v4152
    %4154 = vmatmul.bf16.gmra.mxu0 %v3512
    %v4155 = vpop.f32.mrf.mxu0
    %v4156 = vadd.f32 %v4067, %v4155
    %v4157 = vpop.f32.mrf.mxu0
    %v4158 = vadd.f32 %v4069, %v4157
    %4159 = vmatmul.bf16.gmra.mxu0 %v3516
    %v4160 = vpop.f32.mrf.mxu0
    %v4161 = vadd.f32 %v4072, %v4160
    %v4162 = vpop.f32.mrf.mxu0
    %v4163 = vadd.f32 %v4074, %v4162
    %4164 = vmatmul.bf16.gmra.mxu0 %v3520
    %v4165 = vpop.f32.mrf.mxu0
    %v4166 = vadd.f32 %v4077, %v4165
    %v4167 = vpop.f32.mrf.mxu0
    %v4168 = vadd.f32 %v4079, %v4167
    %4169 = vmatmul.bf16.gmra.mxu0 %v3524
    %v4170 = vpop.f32.mrf.mxu0
    %v4171 = vadd.f32 %v4082, %v4170
    %v4172 = vpop.f32.mrf.mxu0
    %v4173 = vadd.f32 %v4084, %v4172
    %4174 = vmatmul.bf16.gmra.mxu0 %v3528
    %v4175 = vpop.f32.mrf.mxu0
    %v4176 = vadd.f32 %v4087, %v4175
    %v4177 = vpop.f32.mrf.mxu0
    %v4178 = vadd.f32 %v4089, %v4177
    %4179 = vmatmul.bf16.gmra.mxu0 %v3532
    %v4180 = vpop.f32.mrf.mxu0
    %v4181 = vadd.f32 %v4092, %v4180
    %v4182 = vpop.f32.mrf.mxu0
    %v4183 = vadd.f32 %v4094, %v4182
    %4184 = vmatmul.bf16.gmra.mxu0 %v3536
    %v4185 = vpop.f32.mrf.mxu0
    %v4186 = vadd.f32 %v4097, %v4185
    %v4187 = vpop.f32.mrf.mxu0
    %v4188 = vadd.f32 %v4099, %v4187
    %4189 = vmatmul.bf16.gmra.mxu0 %v3540
    %v4190 = vpop.f32.mrf.mxu0
    %v4191 = vadd.f32 %v4102, %v4190
    %v4192 = vpop.f32.mrf.mxu0
    %v4193 = vadd.f32 %v4104, %v4192
    %4194 = vmatmul.bf16.gmra.mxu0 %v3544
    %v4195 = vpop.f32.mrf.mxu0
    %v4196 = vadd.f32 %v4107, %v4195
    %v4197 = vpop.f32.mrf.mxu0
    %v4198 = vadd.f32 %v4109, %v4197
    %4199 = vmatmul.bf16.gmra.mxu0 %v3548
    %v4200 = vpop.f32.mrf.mxu0
    %v4201 = vadd.f32 %v4112, %v4200
    %v4202 = vpop.f32.mrf.mxu0
    %v4203 = vadd.f32 %v4114, %v4202
    %4204 = vmatmul.bf16.gmra.mxu0 %v3552
    %v4205 = vpop.f32.mrf.mxu0
    %v4206 = vadd.f32 %v4117, %v4205
    %v4207 = vpop.f32.mrf.mxu0
    %v4208 = vadd.f32 %v4119, %v4207
    %4209 = vmatmul.bf16.gmra.mxu0 %v3556
    %v4210 = vpop.f32.mrf.mxu0
    %v4211 = vadd.f32 %v4122, %v4210
    %v4212 = vpop.f32.mrf.mxu0
    %v4213 = vadd.f32 %v4124, %v4212
    %4214 = vdwg.mxu0
    %4215 = vmatpush.bf16.msra.mxu0 %v3882
    %4216 = vmatpush.bf16.msra.mxu0 %v3880
    %4217 = vmatpush.bf16.msra.mxu0 %v3878
    %4218 = vmatpush.bf16.msra.mxu0 %v3876
    %4219 = vmatpush.bf16.msra.mxu0 %v3874
    %4220 = vmatpush.bf16.msra.mxu0 %v3872
    %4221 = vmatpush.bf16.msra.mxu0 %v3870
    %4222 = vmatpush.bf16.msra.mxu0 %v3868
    %4223 = vmatmul.bf16.gmra.mxu0 %v3497
    %v4224 = vpop.f32.mrf.mxu0
    %v4225 = vadd.f32 %v4136, %v4224
    %v4226 = vpop.f32.mrf.mxu0
    %v4227 = vadd.f32 %v4138, %v4226
    %4228 = vmatmul.bf16.gmra.mxu0 %v3501
    %v4229 = vpop.f32.mrf.mxu0
    %v4230 = vadd.f32 %v4141, %v4229
    %v4231 = vpop.f32.mrf.mxu0
    %v4232 = vadd.f32 %v4143, %v4231
    %4233 = vmatmul.bf16.gmra.mxu0 %v3505
    %v4234 = vpop.f32.mrf.mxu0
    %v4235 = vadd.f32 %v4146, %v4234
    %v4236 = vpop.f32.mrf.mxu0
    %v4237 = vadd.f32 %v4148, %v4236
    %4238 = vmatmul.bf16.gmra.mxu0 %v3509
    %v4239 = vpop.f32.mrf.mxu0
    %v4240 = vadd.f32 %v4151, %v4239
    %v4241 = vpop.f32.mrf.mxu0
    %v4242 = vadd.f32 %v4153, %v4241
    %4243 = vmatmul.bf16.gmra.mxu0 %v3513
    %v4244 = vpop.f32.mrf.mxu0
    %v4245 = vadd.f32 %v4156, %v4244
    %v4246 = vpop.f32.mrf.mxu0
    %v4247 = vadd.f32 %v4158, %v4246
    %4248 = vmatmul.bf16.gmra.mxu0 %v3517
    %v4249 = vpop.f32.mrf.mxu0
    %v4250 = vadd.f32 %v4161, %v4249
    %v4251 = vpop.f32.mrf.mxu0
    %v4252 = vadd.f32 %v4163, %v4251
    %4253 = vmatmul.bf16.gmra.mxu0 %v3521
    %v4254 = vpop.f32.mrf.mxu0
    %v4255 = vadd.f32 %v4166, %v4254
    %v4256 = vpop.f32.mrf.mxu0
    %v4257 = vadd.f32 %v4168, %v4256
    %4258 = vmatmul.bf16.gmra.mxu0 %v3525
    %v4259 = vpop.f32.mrf.mxu0
    %v4260 = vadd.f32 %v4171, %v4259
    %v4261 = vpop.f32.mrf.mxu0
    %v4262 = vadd.f32 %v4173, %v4261
    %4263 = vmatmul.bf16.gmra.mxu0 %v3529
    %v4264 = vpop.f32.mrf.mxu0
    %v4265 = vadd.f32 %v4176, %v4264
    %v4266 = vpop.f32.mrf.mxu0
    %v4267 = vadd.f32 %v4178, %v4266
    %4268 = vmatmul.bf16.gmra.mxu0 %v3533
    %v4269 = vpop.f32.mrf.mxu0
    %v4270 = vadd.f32 %v4181, %v4269
    %v4271 = vpop.f32.mrf.mxu0
    %v4272 = vadd.f32 %v4183, %v4271
    %4273 = vmatmul.bf16.gmra.mxu0 %v3537
    %v4274 = vpop.f32.mrf.mxu0
    %v4275 = vadd.f32 %v4186, %v4274
    %v4276 = vpop.f32.mrf.mxu0
    %v4277 = vadd.f32 %v4188, %v4276
    %4278 = vmatmul.bf16.gmra.mxu0 %v3541
    %v4279 = vpop.f32.mrf.mxu0
    %v4280 = vadd.f32 %v4191, %v4279
    %v4281 = vpop.f32.mrf.mxu0
    %v4282 = vadd.f32 %v4193, %v4281
    %4283 = vmatmul.bf16.gmra.mxu0 %v3545
    %v4284 = vpop.f32.mrf.mxu0
    %v4285 = vadd.f32 %v4196, %v4284
    %v4286 = vpop.f32.mrf.mxu0
    %v4287 = vadd.f32 %v4198, %v4286
    %4288 = vmatmul.bf16.gmra.mxu0 %v3549
    %v4289 = vpop.f32.mrf.mxu0
    %v4290 = vadd.f32 %v4201, %v4289
    %v4291 = vpop.f32.mrf.mxu0
    %v4292 = vadd.f32 %v4203, %v4291
    %4293 = vmatmul.bf16.gmra.mxu0 %v3553
    %v4294 = vpop.f32.mrf.mxu0
    %v4295 = vadd.f32 %v4206, %v4294
    %v4296 = vpop.f32.mrf.mxu0
    %v4297 = vadd.f32 %v4208, %v4296
    %4298 = vmatmul.bf16.gmra.mxu0 %v3557
    %v4299 = vpop.f32.mrf.mxu0
    %v4300 = vadd.f32 %v4211, %v4299
    %v4301 = vpop.f32.mrf.mxu0
    %v4302 = vadd.f32 %v4213, %v4301
    %4303 = vdwg.mxu0
    %4304 = vmatpush.bf16.msra.mxu0 %v3835
    %4305 = vmatpush.bf16.msra.mxu0 %v3833
    %4306 = vmatpush.bf16.msra.mxu0 %v3831
    %4307 = vmatpush.bf16.msra.mxu0 %v3829
    %4308 = vmatpush.bf16.msra.mxu0 %v3827
    %4309 = vmatpush.bf16.msra.mxu0 %v3825
    %4310 = vmatpush.bf16.msra.mxu0 %v3823
    %4311 = vmatpush.bf16.msra.mxu0 %v3821
    %4312 = vmatmul.bf16.gmra.mxu0 %v3494
    %v4313 = vpop.f32.mrf.mxu0
    %v4314 = vadd.f32 %v3625, %v4313
    %v4315 = vpop.f32.mrf.mxu0
    %v4316 = vadd.f32 %v3625, %v4315
    %4317 = vmatmul.bf16.gmra.mxu0 %v3498
    %v4318 = vpop.f32.mrf.mxu0
    %v4319 = vadd.f32 %v3625, %v4318
    %v4320 = vpop.f32.mrf.mxu0
    %v4321 = vadd.f32 %v3625, %v4320
    %4322 = vmatmul.bf16.gmra.mxu0 %v3502
    %v4323 = vpop.f32.mrf.mxu0
    %v4324 = vadd.f32 %v3625, %v4323
    %v4325 = vpop.f32.mrf.mxu0
    %v4326 = vadd.f32 %v3625, %v4325
    %4327 = vmatmul.bf16.gmra.mxu0 %v3506
    %v4328 = vpop.f32.mrf.mxu0
    %v4329 = vadd.f32 %v3625, %v4328
    %v4330 = vpop.f32.mrf.mxu0
    %v4331 = vadd.f32 %v3625, %v4330
    %4332 = vmatmul.bf16.gmra.mxu0 %v3510
    %v4333 = vpop.f32.mrf.mxu0
    %v4334 = vadd.f32 %v3625, %v4333
    %v4335 = vpop.f32.mrf.mxu0
    %v4336 = vadd.f32 %v3625, %v4335
    %4337 = vmatmul.bf16.gmra.mxu0 %v3514
    %v4338 = vpop.f32.mrf.mxu0
    %v4339 = vadd.f32 %v3625, %v4338
    %v4340 = vpop.f32.mrf.mxu0
    %v4341 = vadd.f32 %v3625, %v4340
    %4342 = vmatmul.bf16.gmra.mxu0 %v3518
    %v4343 = vpop.f32.mrf.mxu0
    %v4344 = vadd.f32 %v3625, %v4343
    %v4345 = vpop.f32.mrf.mxu0
    %v4346 = vadd.f32 %v3625, %v4345
    %4347 = vmatmul.bf16.gmra.mxu0 %v3522
    %v4348 = vpop.f32.mrf.mxu0
    %v4349 = vadd.f32 %v3625, %v4348
    %v4350 = vpop.f32.mrf.mxu0
    %v4351 = vadd.f32 %v3625, %v4350
    %4352 = vmatmul.bf16.gmra.mxu0 %v3526
    %v4353 = vpop.f32.mrf.mxu0
    %v4354 = vadd.f32 %v3625, %v4353
    %v4355 = vpop.f32.mrf.mxu0
    %v4356 = vadd.f32 %v3625, %v4355
    %4357 = vmatmul.bf16.gmra.mxu0 %v3530
    %v4358 = vpop.f32.mrf.mxu0
    %v4359 = vadd.f32 %v3625, %v4358
    %v4360 = vpop.f32.mrf.mxu0
    %v4361 = vadd.f32 %v3625, %v4360
    %4362 = vmatmul.bf16.gmra.mxu0 %v3534
    %v4363 = vpop.f32.mrf.mxu0
    %v4364 = vadd.f32 %v3625, %v4363
    %v4365 = vpop.f32.mrf.mxu0
    %v4366 = vadd.f32 %v3625, %v4365
    %4367 = vmatmul.bf16.gmra.mxu0 %v3538
    %v4368 = vpop.f32.mrf.mxu0
    %v4369 = vadd.f32 %v3625, %v4368
    %v4370 = vpop.f32.mrf.mxu0
    %v4371 = vadd.f32 %v3625, %v4370
    %4372 = vmatmul.bf16.gmra.mxu0 %v3542
    %v4373 = vpop.f32.mrf.mxu0
    %v4374 = vadd.f32 %v3625, %v4373
    %v4375 = vpop.f32.mrf.mxu0
    %v4376 = vadd.f32 %v3625, %v4375
    %4377 = vmatmul.bf16.gmra.mxu0 %v3546
    %v4378 = vpop.f32.mrf.mxu0
    %v4379 = vadd.f32 %v3625, %v4378
    %v4380 = vpop.f32.mrf.mxu0
    %v4381 = vadd.f32 %v3625, %v4380
    %4382 = vmatmul.bf16.gmra.mxu0 %v3550
    %v4383 = vpop.f32.mrf.mxu0
    %v4384 = vadd.f32 %v3625, %v4383
    %v4385 = vpop.f32.mrf.mxu0
    %v4386 = vadd.f32 %v3625, %v4385
    %4387 = vmatmul.bf16.gmra.mxu0 %v3554
    %v4388 = vpop.f32.mrf.mxu0
    %v4389 = vadd.f32 %v3625, %v4388
    %v4390 = vpop.f32.mrf.mxu0
    %v4391 = vadd.f32 %v3625, %v4390
    %4392 = vdwg.mxu0
    %4393 = vmatpush.bf16.msra.mxu0 %v3851
    %4394 = vmatpush.bf16.msra.mxu0 %v3849
    %4395 = vmatpush.bf16.msra.mxu0 %v3847
    %4396 = vmatpush.bf16.msra.mxu0 %v3845
    %4397 = vmatpush.bf16.msra.mxu0 %v3843
    %4398 = vmatpush.bf16.msra.mxu0 %v3841
    %4399 = vmatpush.bf16.msra.mxu0 %v3839
    %4400 = vmatpush.bf16.msra.mxu0 %v3837
    %4401 = vmatmul.bf16.gmra.mxu0 %v3495
    %v4402 = vpop.f32.mrf.mxu0
    %v4403 = vadd.f32 %v4314, %v4402
    %v4404 = vpop.f32.mrf.mxu0
    %v4405 = vadd.f32 %v4316, %v4404
    %4406 = vmatmul.bf16.gmra.mxu0 %v3499
    %v4407 = vpop.f32.mrf.mxu0
    %v4408 = vadd.f32 %v4319, %v4407
    %v4409 = vpop.f32.mrf.mxu0
    %v4410 = vadd.f32 %v4321, %v4409
    %4411 = vmatmul.bf16.gmra.mxu0 %v3503
    %v4412 = vpop.f32.mrf.mxu0
    %v4413 = vadd.f32 %v4324, %v4412
    %v4414 = vpop.f32.mrf.mxu0
    %v4415 = vadd.f32 %v4326, %v4414
    %4416 = vmatmul.bf16.gmra.mxu0 %v3507
    %v4417 = vpop.f32.mrf.mxu0
    %v4418 = vadd.f32 %v4329, %v4417
    %v4419 = vpop.f32.mrf.mxu0
    %v4420 = vadd.f32 %v4331, %v4419
    %4421 = vmatmul.bf16.gmra.mxu0 %v3511
    %v4422 = vpop.f32.mrf.mxu0
    %v4423 = vadd.f32 %v4334, %v4422
    %v4424 = vpop.f32.mrf.mxu0
    %v4425 = vadd.f32 %v4336, %v4424
    %4426 = vmatmul.bf16.gmra.mxu0 %v3515
    %v4427 = vpop.f32.mrf.mxu0
    %v4428 = vadd.f32 %v4339, %v4427
    %v4429 = vpop.f32.mrf.mxu0
    %v4430 = vadd.f32 %v4341, %v4429
    %4431 = vmatmul.bf16.gmra.mxu0 %v3519
    %v4432 = vpop.f32.mrf.mxu0
    %v4433 = vadd.f32 %v4344, %v4432
    %v4434 = vpop.f32.mrf.mxu0
    %v4435 = vadd.f32 %v4346, %v4434
    %4436 = vmatmul.bf16.gmra.mxu0 %v3523
    %v4437 = vpop.f32.mrf.mxu0
    %v4438 = vadd.f32 %v4349, %v4437
    %v4439 = vpop.f32.mrf.mxu0
    %v4440 = vadd.f32 %v4351, %v4439
    %4441 = vmatmul.bf16.gmra.mxu0 %v3527
    %v4442 = vpop.f32.mrf.mxu0
    %v4443 = vadd.f32 %v4354, %v4442
    %v4444 = vpop.f32.mrf.mxu0
    %v4445 = vadd.f32 %v4356, %v4444
    %4446 = vmatmul.bf16.gmra.mxu0 %v3531
    %v4447 = vpop.f32.mrf.mxu0
    %v4448 = vadd.f32 %v4359, %v4447
    %v4449 = vpop.f32.mrf.mxu0
    %v4450 = vadd.f32 %v4361, %v4449
    %4451 = vmatmul.bf16.gmra.mxu0 %v3535
    %v4452 = vpop.f32.mrf.mxu0
    %v4453 = vadd.f32 %v4364, %v4452
    %v4454 = vpop.f32.mrf.mxu0
    %v4455 = vadd.f32 %v4366, %v4454
    %4456 = vmatmul.bf16.gmra.mxu0 %v3539
    %v4457 = vpop.f32.mrf.mxu0
    %v4458 = vadd.f32 %v4369, %v4457
    %v4459 = vpop.f32.mrf.mxu0
    %v4460 = vadd.f32 %v4371, %v4459
    %4461 = vmatmul.bf16.gmra.mxu0 %v3543
    %v4462 = vpop.f32.mrf.mxu0
    %v4463 = vadd.f32 %v4374, %v4462
    %v4464 = vpop.f32.mrf.mxu0
    %v4465 = vadd.f32 %v4376, %v4464
    %4466 = vmatmul.bf16.gmra.mxu0 %v3547
    %v4467 = vpop.f32.mrf.mxu0
    %v4468 = vadd.f32 %v4379, %v4467
    %v4469 = vpop.f32.mrf.mxu0
    %v4470 = vadd.f32 %v4381, %v4469
    %4471 = vmatmul.bf16.gmra.mxu0 %v3551
    %v4472 = vpop.f32.mrf.mxu0
    %v4473 = vadd.f32 %v4384, %v4472
    %v4474 = vpop.f32.mrf.mxu0
    %v4475 = vadd.f32 %v4386, %v4474
    %4476 = vmatmul.bf16.gmra.mxu0 %v3555
    %v4477 = vpop.f32.mrf.mxu0
    %v4478 = vadd.f32 %v4389, %v4477
    %v4479 = vpop.f32.mrf.mxu0
    %v4480 = vadd.f32 %v4391, %v4479
    %4481 = vdwg.mxu0
    %4482 = vmatpush.bf16.msra.mxu0 %v3867
    %4483 = vmatpush.bf16.msra.mxu0 %v3865
    %4484 = vmatpush.bf16.msra.mxu0 %v3863
    %4485 = vmatpush.bf16.msra.mxu0 %v3861
    %4486 = vmatpush.bf16.msra.mxu0 %v3859
    %4487 = vmatpush.bf16.msra.mxu0 %v3857
    %4488 = vmatpush.bf16.msra.mxu0 %v3855
    %4489 = vmatpush.bf16.msra.mxu0 %v3853
    %4490 = vmatmul.bf16.gmra.mxu0 %v3496
    %v4491 = vpop.f32.mrf.mxu0
    %v4492 = vadd.f32 %v4403, %v4491
    %v4493 = vpop.f32.mrf.mxu0
    %v4494 = vadd.f32 %v4405, %v4493
    %4495 = vmatmul.bf16.gmra.mxu0 %v3500
    %v4496 = vpop.f32.mrf.mxu0
    %v4497 = vadd.f32 %v4408, %v4496
    %v4498 = vpop.f32.mrf.mxu0
    %v4499 = vadd.f32 %v4410, %v4498
    %4500 = vmatmul.bf16.gmra.mxu0 %v3504
    %v4501 = vpop.f32.mrf.mxu0
    %v4502 = vadd.f32 %v4413, %v4501
    %v4503 = vpop.f32.mrf.mxu0
    %v4504 = vadd.f32 %v4415, %v4503
    %4505 = vmatmul.bf16.gmra.mxu0 %v3508
    %v4506 = vpop.f32.mrf.mxu0
    %v4507 = vadd.f32 %v4418, %v4506
    %v4508 = vpop.f32.mrf.mxu0
    %v4509 = vadd.f32 %v4420, %v4508
    %4510 = vmatmul.bf16.gmra.mxu0 %v3512
    %v4511 = vpop.f32.mrf.mxu0
    %v4512 = vadd.f32 %v4423, %v4511
    %v4513 = vpop.f32.mrf.mxu0
    %v4514 = vadd.f32 %v4425, %v4513
    %4515 = vmatmul.bf16.gmra.mxu0 %v3516
    %v4516 = vpop.f32.mrf.mxu0
    %v4517 = vadd.f32 %v4428, %v4516
    %v4518 = vpop.f32.mrf.mxu0
    %v4519 = vadd.f32 %v4430, %v4518
    %4520 = vmatmul.bf16.gmra.mxu0 %v3520
    %v4521 = vpop.f32.mrf.mxu0
    %v4522 = vadd.f32 %v4433, %v4521
    %v4523 = vpop.f32.mrf.mxu0
    %v4524 = vadd.f32 %v4435, %v4523
    %4525 = vmatmul.bf16.gmra.mxu0 %v3524
    %v4526 = vpop.f32.mrf.mxu0
    %v4527 = vadd.f32 %v4438, %v4526
    %v4528 = vpop.f32.mrf.mxu0
    %v4529 = vadd.f32 %v4440, %v4528
    %4530 = vmatmul.bf16.gmra.mxu0 %v3528
    %v4531 = vpop.f32.mrf.mxu0
    %v4532 = vadd.f32 %v4443, %v4531
    %v4533 = vpop.f32.mrf.mxu0
    %v4534 = vadd.f32 %v4445, %v4533
    %4535 = vmatmul.bf16.gmra.mxu0 %v3532
    %v4536 = vpop.f32.mrf.mxu0
    %v4537 = vadd.f32 %v4448, %v4536
    %v4538 = vpop.f32.mrf.mxu0
    %v4539 = vadd.f32 %v4450, %v4538
    %4540 = vmatmul.bf16.gmra.mxu0 %v3536
    %v4541 = vpop.f32.mrf.mxu0
    %v4542 = vadd.f32 %v4453, %v4541
    %v4543 = vpop.f32.mrf.mxu0
    %v4544 = vadd.f32 %v4455, %v4543
    %4545 = vmatmul.bf16.gmra.mxu0 %v3540
    %v4546 = vpop.f32.mrf.mxu0
    %v4547 = vadd.f32 %v4458, %v4546
    %v4548 = vpop.f32.mrf.mxu0
    %v4549 = vadd.f32 %v4460, %v4548
    %4550 = vmatmul.bf16.gmra.mxu0 %v3544
    %v4551 = vpop.f32.mrf.mxu0
    %v4552 = vadd.f32 %v4463, %v4551
    %v4553 = vpop.f32.mrf.mxu0
    %v4554 = vadd.f32 %v4465, %v4553
    %4555 = vmatmul.bf16.gmra.mxu0 %v3548
    %v4556 = vpop.f32.mrf.mxu0
    %v4557 = vadd.f32 %v4468, %v4556
    %v4558 = vpop.f32.mrf.mxu0
    %v4559 = vadd.f32 %v4470, %v4558
    %4560 = vmatmul.bf16.gmra.mxu0 %v3552
    %v4561 = vpop.f32.mrf.mxu0
    %v4562 = vadd.f32 %v4473, %v4561
    %v4563 = vpop.f32.mrf.mxu0
    %v4564 = vadd.f32 %v4475, %v4563
    %4565 = vmatmul.bf16.gmra.mxu0 %v3556
    %v4566 = vpop.f32.mrf.mxu0
    %v4567 = vadd.f32 %v4478, %v4566
    %v4568 = vpop.f32.mrf.mxu0
    %v4569 = vadd.f32 %v4480, %v4568
    %4570 = vdwg.mxu0
    %4571 = vmatpush.bf16.msra.mxu0 %v3883
    %4572 = vmatpush.bf16.msra.mxu0 %v3881
    %4573 = vmatpush.bf16.msra.mxu0 %v3879
    %4574 = vmatpush.bf16.msra.mxu0 %v3877
    %4575 = vmatpush.bf16.msra.mxu0 %v3875
    %4576 = vmatpush.bf16.msra.mxu0 %v3873
    %4577 = vmatpush.bf16.msra.mxu0 %v3871
    %4578 = vmatpush.bf16.msra.mxu0 %v3869
    %4579 = vmatmul.bf16.gmra.mxu0 %v3497
    %v4580 = vpop.f32.mrf.mxu0
    %v4581 = vadd.f32 %v4492, %v4580
    %v4582 = vpop.f32.mrf.mxu0
    %v4583 = vadd.f32 %v4494, %v4582
    %4584 = vmatmul.bf16.gmra.mxu0 %v3501
    %v4585 = vpop.f32.mrf.mxu0
    %v4586 = vadd.f32 %v4497, %v4585
    %v4587 = vpop.f32.mrf.mxu0
    %v4588 = vadd.f32 %v4499, %v4587
    %4589 = vmatmul.bf16.gmra.mxu0 %v3505
    %v4590 = vpop.f32.mrf.mxu0
    %v4591 = vadd.f32 %v4502, %v4590
    %v4592 = vpop.f32.mrf.mxu0
    %v4593 = vadd.f32 %v4504, %v4592
    %4594 = vmatmul.bf16.gmra.mxu0 %v3509
    %v4595 = vpop.f32.mrf.mxu0
    %v4596 = vadd.f32 %v4507, %v4595
    %v4597 = vpop.f32.mrf.mxu0
    %v4598 = vadd.f32 %v4509, %v4597
    %4599 = vmatmul.bf16.gmra.mxu0 %v3513
    %v4600 = vpop.f32.mrf.mxu0
    %v4601 = vadd.f32 %v4512, %v4600
    %v4602 = vpop.f32.mrf.mxu0
    %v4603 = vadd.f32 %v4514, %v4602
    %4604 = vmatmul.bf16.gmra.mxu0 %v3517
    %v4605 = vpop.f32.mrf.mxu0
    %v4606 = vadd.f32 %v4517, %v4605
    %v4607 = vpop.f32.mrf.mxu0
    %v4608 = vadd.f32 %v4519, %v4607
    %4609 = vmatmul.bf16.gmra.mxu0 %v3521
    %v4610 = vpop.f32.mrf.mxu0
    %v4611 = vadd.f32 %v4522, %v4610
    %v4612 = vpop.f32.mrf.mxu0
    %v4613 = vadd.f32 %v4524, %v4612
    %4614 = vmatmul.bf16.gmra.mxu0 %v3525
    %v4615 = vpop.f32.mrf.mxu0
    %v4616 = vadd.f32 %v4527, %v4615
    %v4617 = vpop.f32.mrf.mxu0
    %v4618 = vadd.f32 %v4529, %v4617
    %4619 = vmatmul.bf16.gmra.mxu0 %v3529
    %v4620 = vpop.f32.mrf.mxu0
    %v4621 = vadd.f32 %v4532, %v4620
    %v4622 = vpop.f32.mrf.mxu0
    %v4623 = vadd.f32 %v4534, %v4622
    %4624 = vmatmul.bf16.gmra.mxu0 %v3533
    %v4625 = vpop.f32.mrf.mxu0
    %v4626 = vadd.f32 %v4537, %v4625
    %v4627 = vpop.f32.mrf.mxu0
    %v4628 = vadd.f32 %v4539, %v4627
    %4629 = vmatmul.bf16.gmra.mxu0 %v3537
    %v4630 = vpop.f32.mrf.mxu0
    %v4631 = vadd.f32 %v4542, %v4630
    %v4632 = vpop.f32.mrf.mxu0
    %v4633 = vadd.f32 %v4544, %v4632
    %4634 = vmatmul.bf16.gmra.mxu0 %v3541
    %v4635 = vpop.f32.mrf.mxu0
    %v4636 = vadd.f32 %v4547, %v4635
    %v4637 = vpop.f32.mrf.mxu0
    %v4638 = vadd.f32 %v4549, %v4637
    %4639 = vmatmul.bf16.gmra.mxu0 %v3545
    %v4640 = vpop.f32.mrf.mxu0
    %v4641 = vadd.f32 %v4552, %v4640
    %v4642 = vpop.f32.mrf.mxu0
    %v4643 = vadd.f32 %v4554, %v4642
    %4644 = vmatmul.bf16.gmra.mxu0 %v3549
    %v4645 = vpop.f32.mrf.mxu0
    %v4646 = vadd.f32 %v4557, %v4645
    %v4647 = vpop.f32.mrf.mxu0
    %v4648 = vadd.f32 %v4559, %v4647
    %4649 = vmatmul.bf16.gmra.mxu0 %v3553
    %v4650 = vpop.f32.mrf.mxu0
    %v4651 = vadd.f32 %v4562, %v4650
    %v4652 = vpop.f32.mrf.mxu0
    %v4653 = vadd.f32 %v4564, %v4652
    %4654 = vmatmul.bf16.gmra.mxu0 %v3557
    %v4655 = vpop.f32.mrf.mxu0
    %v4656 = vadd.f32 %v4567, %v4655
    %v4657 = vpop.f32.mrf.mxu0
    %v4658 = vadd.f32 %v4569, %v4657
    %4659 = vdwg.mxu0
    %v4660 = vmax.f32 %v4225, %v4227
    %v4661 = vmax.f32 %v4660, %v4230
    %v4662 = vmax.f32 %v4661, %v4232
    %v4663 = vrot.slane %v4662, 4
    %v4664 = vmax.f32 %v4662, %v4663
    %v4665 = vrot.slane %v4664, 2
    %v4666 = vmax.f32 %v4664, %v4665
    %v4667 = vrot.slane %v4666, 1
    %v4668 = vmax.f32 %v4666, %v4667
    %v4669 = vmax.f32 %v4581, %v4583
    %v4670 = vmax.f32 %v4669, %v4586
    %v4671 = vmax.f32 %v4670, %v4588
    %v4672 = vrot.slane %v4671, 4
    %v4673 = vmax.f32 %v4671, %v4672
    %v4674 = vrot.slane %v4673, 2
    %v4675 = vmax.f32 %v4673, %v4674
    %v4676 = vrot.slane %v4675, 1
    %v4677 = vmax.f32 %v4675, %v4676
    %v4678 = vmax.f32 %v4235, %v4237
    %v4679 = vmax.f32 %v4678, %v4240
    %v4680 = vmax.f32 %v4679, %v4242
    %v4681 = vrot.slane %v4680, 4
    %v4682 = vmax.f32 %v4680, %v4681
    %v4683 = vrot.slane %v4682, 2
    %v4684 = vmax.f32 %v4682, %v4683
    %v4685 = vrot.slane %v4684, 1
    %v4686 = vmax.f32 %v4684, %v4685
    %v4687 = vmax.f32 %v4591, %v4593
    %v4688 = vmax.f32 %v4687, %v4596
    %v4689 = vmax.f32 %v4688, %v4598
    %v4690 = vrot.slane %v4689, 4
    %v4691 = vmax.f32 %v4689, %v4690
    %v4692 = vrot.slane %v4691, 2
    %v4693 = vmax.f32 %v4691, %v4692
    %v4694 = vrot.slane %v4693, 1
    %v4695 = vmax.f32 %v4693, %v4694
    %v4696 = vmax.f32 %v4245, %v4247
    %v4697 = vmax.f32 %v4696, %v4250
    %v4698 = vmax.f32 %v4697, %v4252
    %v4699 = vrot.slane %v4698, 4
    %v4700 = vmax.f32 %v4698, %v4699
    %v4701 = vrot.slane %v4700, 2
    %v4702 = vmax.f32 %v4700, %v4701
    %v4703 = vrot.slane %v4702, 1
    %v4704 = vmax.f32 %v4702, %v4703
    %v4705 = vmax.f32 %v4601, %v4603
    %v4706 = vmax.f32 %v4705, %v4606
    %v4707 = vmax.f32 %v4706, %v4608
    %v4708 = vrot.slane %v4707, 4
    %v4709 = vmax.f32 %v4707, %v4708
    %v4710 = vrot.slane %v4709, 2
    %v4711 = vmax.f32 %v4709, %v4710
    %v4712 = vrot.slane %v4711, 1
    %v4713 = vmax.f32 %v4711, %v4712
    %v4714 = vmax.f32 %v4255, %v4257
    %v4715 = vmax.f32 %v4714, %v4260
    %v4716 = vmax.f32 %v4715, %v4262
    %v4717 = vrot.slane %v4716, 4
    %v4718 = vmax.f32 %v4716, %v4717
    %v4719 = vrot.slane %v4718, 2
    %v4720 = vmax.f32 %v4718, %v4719
    %v4721 = vrot.slane %v4720, 1
    %v4722 = vmax.f32 %v4720, %v4721
    %v4723 = vmax.f32 %v4611, %v4613
    %v4724 = vmax.f32 %v4723, %v4616
    %v4725 = vmax.f32 %v4724, %v4618
    %v4726 = vrot.slane %v4725, 4
    %v4727 = vmax.f32 %v4725, %v4726
    %v4728 = vrot.slane %v4727, 2
    %v4729 = vmax.f32 %v4727, %v4728
    %v4730 = vrot.slane %v4729, 1
    %v4731 = vmax.f32 %v4729, %v4730
    %v4732 = vmax.f32 %v4265, %v4267
    %v4733 = vmax.f32 %v4732, %v4270
    %v4734 = vmax.f32 %v4733, %v4272
    %v4735 = vrot.slane %v4734, 4
    %v4736 = vmax.f32 %v4734, %v4735
    %v4737 = vrot.slane %v4736, 2
    %v4738 = vmax.f32 %v4736, %v4737
    %v4739 = vrot.slane %v4738, 1
    %v4740 = vmax.f32 %v4738, %v4739
    %v4741 = vmax.f32 %v4621, %v4623
    %v4742 = vmax.f32 %v4741, %v4626
    %v4743 = vmax.f32 %v4742, %v4628
    %v4744 = vrot.slane %v4743, 4
    %v4745 = vmax.f32 %v4743, %v4744
    %v4746 = vrot.slane %v4745, 2
    %v4747 = vmax.f32 %v4745, %v4746
    %v4748 = vrot.slane %v4747, 1
    %v4749 = vmax.f32 %v4747, %v4748
    %v4750 = vmax.f32 %v4275, %v4277
    %v4751 = vmax.f32 %v4750, %v4280
    %v4752 = vmax.f32 %v4751, %v4282
    %v4753 = vrot.slane %v4752, 4
    %v4754 = vmax.f32 %v4752, %v4753
    %v4755 = vrot.slane %v4754, 2
    %v4756 = vmax.f32 %v4754, %v4755
    %v4757 = vrot.slane %v4756, 1
    %v4758 = vmax.f32 %v4756, %v4757
    %v4759 = vmax.f32 %v4631, %v4633
    %v4760 = vmax.f32 %v4759, %v4636
    %v4761 = vmax.f32 %v4760, %v4638
    %v4762 = vrot.slane %v4761, 4
    %v4763 = vmax.f32 %v4761, %v4762
    %v4764 = vrot.slane %v4763, 2
    %v4765 = vmax.f32 %v4763, %v4764
    %v4766 = vrot.slane %v4765, 1
    %v4767 = vmax.f32 %v4765, %v4766
    %v4768 = vmax.f32 %v4285, %v4287
    %v4769 = vmax.f32 %v4768, %v4290
    %v4770 = vmax.f32 %v4769, %v4292
    %v4771 = vrot.slane %v4770, 4
    %v4772 = vmax.f32 %v4770, %v4771
    %v4773 = vrot.slane %v4772, 2
    %v4774 = vmax.f32 %v4772, %v4773
    %v4775 = vrot.slane %v4774, 1
    %v4776 = vmax.f32 %v4774, %v4775
    %v4777 = vmax.f32 %v4641, %v4643
    %v4778 = vmax.f32 %v4777, %v4646
    %v4779 = vmax.f32 %v4778, %v4648
    %v4780 = vrot.slane %v4779, 4
    %v4781 = vmax.f32 %v4779, %v4780
    %v4782 = vrot.slane %v4781, 2
    %v4783 = vmax.f32 %v4781, %v4782
    %v4784 = vrot.slane %v4783, 1
    %v4785 = vmax.f32 %v4783, %v4784
    %v4786 = vmax.f32 %v4295, %v4297
    %v4787 = vmax.f32 %v4786, %v4300
    %v4788 = vmax.f32 %v4787, %v4302
    %v4789 = vrot.slane %v4788, 4
    %v4790 = vmax.f32 %v4788, %v4789
    %v4791 = vrot.slane %v4790, 2
    %v4792 = vmax.f32 %v4790, %v4791
    %v4793 = vrot.slane %v4792, 1
    %v4794 = vmax.f32 %v4792, %v4793
    %v4795 = vmax.f32 %v4651, %v4653
    %v4796 = vmax.f32 %v4795, %v4656
    %v4797 = vmax.f32 %v4796, %v4658
    %v4798 = vrot.slane %v4797, 4
    %v4799 = vmax.f32 %v4797, %v4798
    %v4800 = vrot.slane %v4799, 2
    %v4801 = vmax.f32 %v4799, %v4800
    %v4802 = vrot.slane %v4801, 1
    %v4803 = vmax.f32 %v4801, %v4802
    %v4820 = vsel %vm1421, %v4686, %v4668
    %v4821 = vsel %vm1423, %v4704, %v4820
    %v4822 = vsel %vm1425, %v4722, %v4821
    %v4823 = vsel %vm1427, %v4740, %v4822
    %v4824 = vsel %vm1429, %v4758, %v4823
    %v4825 = vsel %vm1431, %v4776, %v4824
    %v4826 = vsel %vm1433, %v4794, %v4825
    %v4827 = vsel %vm1421, %v4695, %v4677
    %v4828 = vsel %vm1423, %v4713, %v4827
    %v4829 = vsel %vm1425, %v4731, %v4828
    %v4830 = vsel %vm1427, %v4749, %v4829
    %v4831 = vsel %vm1429, %v4767, %v4830
    %v4832 = vsel %vm1431, %v4785, %v4831
    %v4833 = vsel %vm1433, %v4803, %v4832
    %4836 = vst [vmem:[#allocation8] sm:$0xff] %v4826
    %4837 = vst [vmem:[#allocation8 + $0x8] sm:$0xff] %v4833
    // Predicated region
    $region54: #{tpu_custom_call.1} parent=1 // pred_check
      _
    $region55: #{tpu_custom_call.1} parent=1 // pred_check_branch
      %4839 = sbr.rel (0) target = $region57
    $region56: #{tpu_custom_call.1} parent=1 // pred_region
      %4841 = vsyncadd [#allocation4], 0
      %s4843 = sshll.u32 [#allocation8], 4
      %s4844 = int_to_ptr.vmem [resolvable:$true] %s4843
      %s4845 = sshll.u32 %s10, 4
      %s4846 = int_to_ptr.hbm [resolvable:$true] %s4845
      %4848 = dma.vmem_to_hbm [thread:$0]  %s4844, 256, %s4846, [#allocation4]
    $region57: #{tpu_custom_call.1} parent=1 // pred_fallthru
      _
    // Predicated region
    $region58: #{tpu_custom_call.1} parent=1 // pred_check
      _
    $region59: #{tpu_custom_call.1} parent=1 // pred_check_branch
      %4850 = sbr.rel (0) target = $region61
    $region60: #{tpu_custom_call.1} parent=1 // pred_region
      %4852 = dma.done [#allocation4], 256
    $region61: #{tpu_custom_call.1} parent=1 // pred_fallthru
      _
    %4853 = vsyncpa [#allocation3], 1
    %4854 = vsyncpa [#allocation6], 1
    %4855 = vsyncpa [#allocation4], 1

</llo_original>
